<compile_context>
chip_gen: v5e
topology: v5e:2x2
jax: 0.10.0
libtpu: 0.0.40
codegen_flags: <defaults>
</compile_context>

<pallas_src>
import functools
import math

import jax
import jax.numpy as jnp
from jax.experimental import pallas as pl
from jax.experimental.pallas import tpu as pltpu

# ---- small ViT config (structurally identical to ViT-base, scaled down) ----
IMG = 16            # image height/width
PATCH = 8           # patch size -> 2x2 = 4 patches
CHANNELS = 3
HIDDEN = 64
HEADS = 4
HEAD_DIM = HIDDEN // HEADS
LAYERS = 2
INTERMEDIATE = 128
NUM_LABELS = 2
NUM_LABELS_PAD = 128        # lane-dense classifier output, sliced to NUM_LABELS
LN_EPS = 1e-12              # HF ViT layer_norm_eps
N_PATCHES = (IMG // PATCH) ** 2
SEQ = N_PATCHES + 1         # CLS token + patches
CPP = CHANNELS * PATCH * PATCH
VEC_W = 3 * HIDDEN          # width of the packed per-layer vector slab (192)


# ----------------------------- in-kernel math -------------------------------

def _erf_f32(x):
    # Abramowitz & Stegun 7.1.26, max abs error ~1.5e-7.
    # TODO(synk): lax.erf lowering inside Pallas/Mosaic is not guaranteed across
    # jax versions, so exact GELU uses this in-kernel polynomial instead.
    p = 0.3275911
    a1, a2, a3, a4, a5 = (0.254829592, -0.284496736, 1.421413741,
                          -1.453152027, 1.061405429)
    z = jnp.abs(x)
    t = 1.0 / (1.0 + p * z)
    poly = ((((a5 * t + a4) * t + a3) * t + a2) * t + a1) * t
    y = 1.0 - poly * jnp.exp(-z * z)
    return jnp.where(x < 0.0, -y, y)


def _gelu_exact(x):
    # At toy size this is noise; at ViT-base scale swap for tanh-approx GELU
    # (1 EUP tanh) to offload the VALU -- trades HF bit-exactness.
    return 0.5 * x * (1.0 + _erf_f32(x * (1.0 / math.sqrt(2.0))))


# ------------------------------ fused ViT kernel ----------------------------

def _vit_kernel(tok_ref, patch_w_ref, emb_bias_ref, vecs_ref,
                qkv_w_ref, o_w_ref, fc1_w_ref, fc2_w_ref,
                final_vecs_ref, cls_w_ref, out_ref, *, bb):
    """Full ViT forward for `bb` batch elements in one grid step.

    Row layout of every activation: element b occupies rows [b*SEQ, (b+1)*SEQ).
    """

    def layernorm(x, g, b):
        mean = jnp.mean(x, axis=-1, keepdims=True)
        var = jnp.mean((x - mean) ** 2, axis=-1, keepdims=True)  # biased, like torch
        return (x - mean) * jax.lax.rsqrt(var + LN_EPS) * g + b

    scale = 1.0 / math.sqrt(HEAD_DIM)

    # ---- patch embedding (single fused matmul over all batch elements) ----
    pe = jnp.dot(tok_ref[...], patch_w_ref[...],
                 preferred_element_type=jnp.float32)              # (bb*NP, HIDDEN)
    emb = emb_bias_ref[...]                                       # (SEQ, HIDDEN)
    # emb row 0 = cls_token + pos[0]; rows 1.. = patch_bias + pos[1..]
    rows = []
    for b in range(bb):
        rows.append(emb[0:1, :])                                  # CLS embedding
        rows.append(pe[b * N_PATCHES:(b + 1) * N_PATCHES, :] + emb[1:, :])
    h = jnp.concatenate(rows, axis=0)                             # (bb*SEQ, HIDDEN)

    for li in range(LAYERS):
        vec = vecs_ref[li]                                        # (8, VEC_W)
        ln1_g = vec[0:1, 0:HIDDEN]
        ln1_b = vec[1:2, 0:HIDDEN]
        qkv_b = vec[2:3, 0:3 * HIDDEN]
        o_b = vec[3:4, 0:HIDDEN]
        ln2_g = vec[4:5, 0:HIDDEN]
        ln2_b = vec[5:6, 0:HIDDEN]
        fc1_b = vec[6:7, 0:INTERMEDIATE]
        fc2_b = vec[7:8, 0:HIDDEN]

        # ---- self-attention block (pre-LayerNorm, as in HF ViT) ----
        hn = layernorm(h, ln1_g, ln1_b)                           # (bb*SEQ, HIDDEN)
        # one fused QKV matmul per layer (N = 3*HIDDEN = 192)
        qkv = jnp.dot(hn, qkv_w_ref[li],
                      preferred_element_type=jnp.float32) + qkv_b  # (bb*SEQ, 192)

        ctx_rows = []
        for b in range(bb):
            r0 = b * SEQ
            q_b = qkv[r0:r0 + SEQ, 0:HIDDEN]
            k_b = qkv[r0:r0 + SEQ, HIDDEN:2 * HIDDEN]
            v_b = qkv[r0:r0 + SEQ, 2 * HIDDEN:3 * HIDDEN]
            head_ctx = []
            for hd in range(HEADS):
                c0 = hd * HEAD_DIM
                q_h = q_b[:, c0:c0 + HEAD_DIM]                    # (SEQ, HEAD_DIM)
                k_h = k_b[:, c0:c0 + HEAD_DIM]
                v_h = v_b[:, c0:c0 + HEAD_DIM]
                # contract on last axes -> no explicit k.T transpose/relayout
                s = jax.lax.dot_general(
                    q_h, k_h, (((1,), (1,)), ((), ())),
                    preferred_element_type=jnp.float32) * scale   # (SEQ, SEQ)
                s = s - jnp.max(s, axis=-1, keepdims=True)
                p = jnp.exp(s)
                p = p / jnp.sum(p, axis=-1, keepdims=True)        # exact divide
                head_ctx.append(jnp.dot(p, v_h,
                                        preferred_element_type=jnp.float32))
            ctx_rows.append(jnp.concatenate(head_ctx, axis=-1))   # (SEQ, HIDDEN)
        ctx = jnp.concatenate(ctx_rows, axis=0)                   # (bb*SEQ, HIDDEN)
        # single full-width output projection + fused residual/bias
        h = h + jnp.dot(ctx, o_w_ref[li],
                        preferred_element_type=jnp.float32) + o_b

        # ---- MLP block (pre-LayerNorm), GELU + residual fused in-kernel ----
        hn2 = layernorm(h, ln2_g, ln2_b)
        inter = jnp.dot(hn2, fc1_w_ref[li],
                        preferred_element_type=jnp.float32) + fc1_b
        inter = _gelu_exact(inter)
        h = h + jnp.dot(inter, fc2_w_ref[li],
                        preferred_element_type=jnp.float32) + fc2_b

    # ---- final LayerNorm + classifier on the CLS tokens ----
    fvec = final_vecs_ref[...]                                    # (3, NUM_LABELS_PAD)
    fln_g = fvec[0:1, 0:HIDDEN]
    fln_b = fvec[1:2, 0:HIDDEN]
    cls_b = fvec[2:3, :]
    hf = layernorm(h, fln_g, fln_b)
    cls_tok = jnp.concatenate([hf[b * SEQ:b * SEQ + 1, :] for b in range(bb)],
                              axis=0)                             # (bb, HIDDEN)
    out_ref[...] = jnp.dot(cls_tok, cls_w_ref[...],
                           preferred_element_type=jnp.float32) + cls_b


# --------------------------- parameter construction -------------------------

def init_params(key):
    ks = jax.random.split(key, 4 + LAYERS)

    def w(k, shape, scale=0.02):
        return (scale * jax.random.normal(k, shape)).astype(jnp.float32)

    params = {
        "patch_w": w(ks[0], (CPP, HIDDEN)),
        "patch_b": jnp.zeros((HIDDEN,), jnp.float32),
        "cls_token": w(ks[1], (1, 1, HIDDEN)),
        "pos_emb": w(ks[2], (1, SEQ, HIDDEN)),
        "final_ln_g": jnp.ones((HIDDEN,), jnp.float32),
        "final_ln_b": jnp.zeros((HIDDEN,), jnp.float32),
        "cls_w": w(ks[3], (HIDDEN, NUM_LABELS)),
        "cls_b": jnp.zeros((NUM_LABELS,), jnp.float32),
    }
    layers = []
    for li in range(LAYERS):
        lk = jax.random.split(ks[4 + li], 6)
        layers.append(dict(
            ln1_g=jnp.ones((HIDDEN,), jnp.float32),
            ln1_b=jnp.zeros((HIDDEN,), jnp.float32),
            q_w=w(lk[0], (HIDDEN, HIDDEN)), q_b=jnp.zeros((HIDDEN,), jnp.float32),
            k_w=w(lk[1], (HIDDEN, HIDDEN)), k_b=jnp.zeros((HIDDEN,), jnp.float32),
            v_w=w(lk[2], (HIDDEN, HIDDEN)), v_b=jnp.zeros((HIDDEN,), jnp.float32),
            o_w=w(lk[3], (HIDDEN, HIDDEN)), o_b=jnp.zeros((HIDDEN,), jnp.float32),
            ln2_g=jnp.ones((HIDDEN,), jnp.float32),
            ln2_b=jnp.zeros((HIDDEN,), jnp.float32),
            fc1_w=w(lk[4], (HIDDEN, INTERMEDIATE)),
            fc1_b=jnp.zeros((INTERMEDIATE,), jnp.float32),
            fc2_w=w(lk[5], (INTERMEDIATE, HIDDEN)),
            fc2_b=jnp.zeros((HIDDEN,), jnp.float32),
        ))
    params["layers"] = layers
    return params


def pack_params(params):
    """One-time repack of PyTorch-layout params into the fused-kernel layout."""
    H = HIDDEN
    layers = params["layers"]

    # Fused QKV weight per layer: columns [Q | K | V]  -> (L, H, 3H)
    qkv_w = jnp.stack([jnp.concatenate([l["q_w"], l["k_w"], l["v_w"]], axis=1)
                       for l in layers])
    o_w = jnp.stack([l["o_w"] for l in layers])                    # (L, H, H)
    fc1_w = jnp.stack([l["fc1_w"] for l in layers])                # (L, H, INTER)
    fc2_w = jnp.stack([l["fc2_w"] for l in layers])                # (L, INTER, H)

    def pad_row(v, width=VEC_W):
        v = jnp.asarray(v, jnp.float32).reshape(1, -1)
        return jnp.pad(v, ((0, 0), (0, width - v.shape[1])))

    # All per-layer bias / LN vectors packed into one (L, 8, VEC_W) slab.
    vecs = jnp.stack([
        jnp.concatenate([
            pad_row(l["ln1_g"]), pad_row(l["ln1_b"]),
            pad_row(jnp.concatenate([l["q_b"], l["k_b"], l["v_b"]])),
            pad_row(l["o_b"]),
            pad_row(l["ln2_g"]), pad_row(l["ln2_b"]),
            pad_row(l["fc1_b"]), pad_row(l["fc2_b"]),
        ], axis=0)
        for l in layers])                                          # (L, 8, VEC_W)

    # Fused additive term: row 0 = cls_token + pos[0]; rows 1.. = patch_b + pos[1..]
    cls_row = params["cls_token"].reshape(1, H)
    patch_rows = jnp.broadcast_to(params["patch_b"].reshape(1, H), (N_PATCHES, H))
    emb_bias = params["pos_emb"].reshape(SEQ, H) + jnp.concatenate(
        [cls_row, patch_rows], axis=0)

    cls_w = jnp.zeros((H, NUM_LABELS_PAD), jnp.float32).at[:, :NUM_LABELS].set(
        params["cls_w"])
    final_vecs = jnp.zeros((3, NUM_LABELS_PAD), jnp.float32)
    final_vecs = final_vecs.at[0, :H].set(params["final_ln_g"])
    final_vecs = final_vecs.at[1, :H].set(params["final_ln_b"])
    final_vecs = final_vecs.at[2, :NUM_LABELS].set(params["cls_b"])

    return dict(
        patch_w=params["patch_w"], emb_bias=emb_bias, vecs=vecs,
        qkv_w=qkv_w, o_w=o_w, fc1_w=fc1_w, fc2_w=fc2_w,
        final_vecs=final_vecs, cls_w=cls_w,
    )


# --------------------------------- forward ---------------------------------

def _const_spec(*shape):
    return pl.BlockSpec(shape, lambda g, _s=len(shape): (0,) * _s)


def vit_forward(packed, x):
    """x: (B, C, H, W) f32 (NCHW) -> logits (B, NUM_LABELS) f32."""
    B, C, Himg, Wimg = x.shape
    assert C == CHANNELS and Himg == IMG and Wimg == IMG
    nh, nw = Himg // PATCH, Wimg // PATCH

    # Patch extraction (pure reshape/transpose glue) in (C, ph, pw) flatten
    # order, matching a flattened Conv2d(C, hidden, P, stride=P).  No CLS row
    # is materialized here; the kernel builds it from emb_bias.
    patches = x.reshape(B, C, nh, PATCH, nw, PATCH).transpose(0, 2, 4, 1, 3, 5)
    tok = patches.reshape(B * nh * nw, CPP)                       # (B*N_PATCHES, CPP)

    kernel = functools.partial(_vit_kernel, bb=B)

    out = pl.pallas_call(
        kernel,
        out_shape=jax.ShapeDtypeStruct((B, NUM_LABELS_PAD), jnp.float32),
        grid=(1,),
        in_specs=[
            _const_spec(B * N_PATCHES, CPP),                      # tokens (all batch)
            _const_spec(CPP, HIDDEN),                             # patch_w
            _const_spec(SEQ, HIDDEN),                             # emb_bias
            _const_spec(LAYERS, 8, VEC_W),                        # packed bias/LN vectors
            _const_spec(LAYERS, HIDDEN, 3 * HIDDEN),              # fused qkv_w
            _const_spec(LAYERS, HIDDEN, HIDDEN),                  # o_w
            _const_spec(LAYERS, HIDDEN, INTERMEDIATE),            # fc1_w
            _const_spec(LAYERS, INTERMEDIATE, HIDDEN),            # fc2_w
            _const_spec(3, NUM_LABELS_PAD),                       # final LN g/b + cls_b
            _const_spec(HIDDEN, NUM_LABELS_PAD),                  # cls_w (padded)
        ],
        out_specs=pl.BlockSpec((B, NUM_LABELS_PAD), lambda g: (0, 0)),
        compiler_params=pltpu.CompilerParams(
            dimension_semantics=("arbitrary",)),
    )(
        tok, packed["patch_w"], packed["emb_bias"], packed["vecs"],
        packed["qkv_w"], packed["o_w"], packed["fc1_w"], packed["fc2_w"],
        packed["final_vecs"], packed["cls_w"],
    )
    return out[:, :NUM_LABELS]                                    # (B, NUM_LABELS)


if __name__ == "__main__":
    key = jax.random.PRNGKey(0)
    pkey, xkey = jax.random.split(key)
    params = init_params(pkey)
    packed = pack_params(params)
    x = jax.random.normal(xkey, (2, CHANNELS, IMG, IMG), dtype=jnp.float32)

    logits = jax.jit(vit_forward)(packed, x)
    logits = jax.block_until_ready(logits)
    assert logits.shape == (2, NUM_LABELS) and logits.dtype == jnp.float32
    assert bool(jnp.all(jnp.isfinite(logits)))
    print("KERNEL_OK")
</pallas_src>

<mosaic_0001>
module attributes {stable_mosaic.version = 11 : i64} {
  func.func @_vit_kernel(%arg0: i32, %arg1: memref<8x192xf32, #tpu.memory_space<vmem>>, %arg2: memref<192x64xf32, #tpu.memory_space<vmem>>, %arg3: memref<5x64xf32, #tpu.memory_space<vmem>>, %arg4: memref<2x8x192xf32, #tpu.memory_space<vmem>>, %arg5: memref<2x64x192xf32, #tpu.memory_space<vmem>>, %arg6: memref<2x64x64xf32, #tpu.memory_space<vmem>>, %arg7: memref<2x64x128xf32, #tpu.memory_space<vmem>>, %arg8: memref<2x128x64xf32, #tpu.memory_space<vmem>>, %arg9: memref<3x128xf32, #tpu.memory_space<vmem>>, %arg10: memref<64x128xf32, #tpu.memory_space<vmem>>, %arg11: memref<2x128xf32, #tpu.memory_space<vmem>>) attributes {dimension_semantics = [#tpu.dimension_semantics<arbitrary>], iteration_bounds = array<i64: 1>, scalar_prefetch = 0 : i64, scratch_operands = 0 : i64, tpu.core_type = #tpu.core_type<tc>, window_params = [{pipeline_mode = #tpu.pipeline_mode<synchronous>, transform_indices = @transform_0, window_bounds = array<i64: 8, 192>}, {pipeline_mode = #tpu.pipeline_mode<synchronous>, transform_indices = @transform_1, window_bounds = array<i64: 192, 64>}, {pipeline_mode = #tpu.pipeline_mode<synchronous>, transform_indices = @transform_2, window_bounds = array<i64: 5, 64>}, {pipeline_mode = #tpu.pipeline_mode<synchronous>, transform_indices = @transform_3, window_bounds = array<i64: 2, 8, 192>}, {pipeline_mode = #tpu.pipeline_mode<synchronous>, transform_indices = @transform_4, window_bounds = array<i64: 2, 64, 192>}, {pipeline_mode = #tpu.pipeline_mode<synchronous>, transform_indices = @transform_5, window_bounds = array<i64: 2, 64, 64>}, {pipeline_mode = #tpu.pipeline_mode<synchronous>, transform_indices = @transform_6, window_bounds = array<i64: 2, 64, 128>}, {pipeline_mode = #tpu.pipeline_mode<synchronous>, transform_indices = @transform_7, window_bounds = array<i64: 2, 128, 64>}, {pipeline_mode = #tpu.pipeline_mode<synchronous>, transform_indices = @transform_8, window_bounds = array<i64: 3, 128>}, {pipeline_mode = #tpu.pipeline_mode<synchronous>, transform_indices = @transform_9, window_bounds = array<i64: 64, 128>}, {pipeline_mode = #tpu.pipeline_mode<synchronous>, transform_indices = @transform_10, window_bounds = array<i64: 2, 128>}]} {
    %c0 = arith.constant 0 : index
    %c0_0 = arith.constant 0 : index
    %0 = vector.load %arg1[%c0, %c0_0] : memref<8x192xf32, #tpu.memory_space<vmem>>, vector<8x192xf32>
    %c0_1 = arith.constant 0 : index
    %c0_2 = arith.constant 0 : index
    %1 = vector.load %arg2[%c0_1, %c0_2] : memref<192x64xf32, #tpu.memory_space<vmem>>, vector<192x64xf32>
    %cst = arith.constant dense<0.000000e+00> : vector<8x64xf32>
    %2 = tpu.matmul %0, %1, %cst {dimension_numbers = #tpu.dot_dimension_numbers<[1], [0], [0], [1], [0, 0, 1, 1], [], []>} : vector<8x192xf32>, vector<192x64xf32>, vector<8x64xf32> -> vector<8x64xf32>
    %c0_3 = arith.constant 0 : index
    %c0_4 = arith.constant 0 : index
    %3 = vector.load %arg3[%c0_3, %c0_4] : memref<5x64xf32, #tpu.memory_space<vmem>>, vector<5x64xf32>
    %4 = vector.extract_strided_slice %3 {offsets = [0, 0], sizes = [1, 64], strides = [1, 1]} : vector<5x64xf32> to vector<1x64xf32>
    %5 = vector.extract_strided_slice %2 {offsets = [0, 0], sizes = [4, 64], strides = [1, 1]} : vector<8x64xf32> to vector<4x64xf32>
    %6 = vector.extract_strided_slice %3 {offsets = [1, 0], sizes = [4, 64], strides = [1, 1]} : vector<5x64xf32> to vector<4x64xf32>
    %7 = arith.addf %5, %6 : vector<4x64xf32>
    %8 = vector.extract_strided_slice %3 {offsets = [0, 0], sizes = [1, 64], strides = [1, 1]} : vector<5x64xf32> to vector<1x64xf32>
    %9 = vector.extract_strided_slice %2 {offsets = [4, 0], sizes = [4, 64], strides = [1, 1]} : vector<8x64xf32> to vector<4x64xf32>
    %10 = vector.extract_strided_slice %3 {offsets = [1, 0], sizes = [4, 64], strides = [1, 1]} : vector<5x64xf32> to vector<4x64xf32>
    %11 = arith.addf %9, %10 : vector<4x64xf32>
    %12 = tpu.concatenate %4, %7, %8, %11 in 0 : vector<1x64xf32>, vector<4x64xf32>, vector<1x64xf32>, vector<4x64xf32> -> vector<10x64xf32>
    %c0_5 = arith.constant 0 : index
    %c0_6 = arith.constant 0 : index
    %c0_7 = arith.constant 0 : index
    %13 = vector.load %arg4[%c0_5, %c0_6, %c0_7] : memref<2x8x192xf32, #tpu.memory_space<vmem>>, vector<1x8x192xf32>
    %14 = vector.shape_cast %13 : vector<1x8x192xf32> to vector<8x192xf32>
    %15 = vector.extract_strided_slice %14 {offsets = [0, 0], sizes = [1, 64], strides = [1, 1]} : vector<8x192xf32> to vector<1x64xf32>
    %16 = vector.extract_strided_slice %14 {offsets = [1, 0], sizes = [1, 64], strides = [1, 1]} : vector<8x192xf32> to vector<1x64xf32>
    %17 = vector.extract_strided_slice %14 {offsets = [2, 0], sizes = [1, 192], strides = [1, 1]} : vector<8x192xf32> to vector<1x192xf32>
    %18 = vector.extract_strided_slice %14 {offsets = [3, 0], sizes = [1, 64], strides = [1, 1]} : vector<8x192xf32> to vector<1x64xf32>
    %19 = vector.extract_strided_slice %14 {offsets = [4, 0], sizes = [1, 64], strides = [1, 1]} : vector<8x192xf32> to vector<1x64xf32>
    %20 = vector.extract_strided_slice %14 {offsets = [5, 0], sizes = [1, 64], strides = [1, 1]} : vector<8x192xf32> to vector<1x64xf32>
    %21 = vector.extract_strided_slice %14 {offsets = [6, 0], sizes = [1, 128], strides = [1, 1]} : vector<8x192xf32> to vector<1x128xf32>
    %22 = vector.extract_strided_slice %14 {offsets = [7, 0], sizes = [1, 64], strides = [1, 1]} : vector<8x192xf32> to vector<1x64xf32>
    %cst_8 = arith.constant dense<0.000000e+00> : vector<10xf32>
    %23 = vector.multi_reduction <add>, %12, %cst_8 [1] : vector<10x64xf32> to vector<10xf32>
    %24 = vector.shape_cast %23 : vector<10xf32> to vector<10x1xf32>
    %cst_9 = arith.constant 6.400000e+01 : f32
    %25 = vector.broadcast %cst_9 : f32 to vector<10x1xf32>
    %26 = arith.divf %24, %25 : vector<10x1xf32>
    %27 = vector.broadcast %26 : vector<10x1xf32> to vector<10x64xf32>
    %28 = arith.subf %12, %27 : vector<10x64xf32>
    %29 = arith.mulf %28, %28 : vector<10x64xf32>
    %cst_10 = arith.constant dense<0.000000e+00> : vector<10xf32>
    %30 = vector.multi_reduction <add>, %29, %cst_10 [1] : vector<10x64xf32> to vector<10xf32>
    %31 = vector.shape_cast %30 : vector<10xf32> to vector<10x1xf32>
    %cst_11 = arith.constant 6.400000e+01 : f32
    %32 = vector.broadcast %cst_11 : f32 to vector<10x1xf32>
    %33 = arith.divf %31, %32 : vector<10x1xf32>
    %34 = vector.broadcast %26 : vector<10x1xf32> to vector<10x64xf32>
    %35 = arith.subf %12, %34 : vector<10x64xf32>
    %cst_12 = arith.constant 9.99999996E-13 : f32
    %36 = vector.broadcast %cst_12 : f32 to vector<10x1xf32>
    %37 = arith.addf %33, %36 : vector<10x1xf32>
    %38 = math.rsqrt %37 : vector<10x1xf32>
    %39 = vector.broadcast %38 : vector<10x1xf32> to vector<10x64xf32>
    %40 = arith.mulf %35, %39 : vector<10x64xf32>
    %41 = vector.broadcast %15 : vector<1x64xf32> to vector<10x64xf32>
    %42 = arith.mulf %40, %41 : vector<10x64xf32>
    %43 = vector.broadcast %16 : vector<1x64xf32> to vector<10x64xf32>
    %44 = arith.addf %42, %43 : vector<10x64xf32>
    %c0_13 = arith.constant 0 : index
    %c0_14 = arith.constant 0 : index
    %c0_15 = arith.constant 0 : index
    %45 = vector.load %arg5[%c0_13, %c0_14, %c0_15] : memref<2x64x192xf32, #tpu.memory_space<vmem>>, vector<1x64x192xf32>
    %46 = vector.shape_cast %45 : vector<1x64x192xf32> to vector<64x192xf32>
    %cst_16 = arith.constant dense<0.000000e+00> : vector<10x192xf32>
    %47 = tpu.matmul %44, %46, %cst_16 {dimension_numbers = #tpu.dot_dimension_numbers<[1], [0], [0], [1], [0, 0, 1, 1], [], []>} : vector<10x64xf32>, vector<64x192xf32>, vector<10x192xf32> -> vector<10x192xf32>
    %48 = vector.broadcast %17 : vector<1x192xf32> to vector<10x192xf32>
    %49 = arith.addf %47, %48 : vector<10x192xf32>
    %50 = vector.extract_strided_slice %49 {offsets = [0, 0], sizes = [5, 64], strides = [1, 1]} : vector<10x192xf32> to vector<5x64xf32>
    %51 = vector.extract_strided_slice %49 {offsets = [0, 64], sizes = [5, 64], strides = [1, 1]} : vector<10x192xf32> to vector<5x64xf32>
    %52 = vector.extract_strided_slice %49 {offsets = [0, 128], sizes = [5, 64], strides = [1, 1]} : vector<10x192xf32> to vector<5x64xf32>
    %53 = vector.extract_strided_slice %50 {offsets = [0, 0], sizes = [5, 16], strides = [1, 1]} : vector<5x64xf32> to vector<5x16xf32>
    %54 = vector.extract_strided_slice %51 {offsets = [0, 0], sizes = [5, 16], strides = [1, 1]} : vector<5x64xf32> to vector<5x16xf32>
    %55 = vector.extract_strided_slice %52 {offsets = [0, 0], sizes = [5, 16], strides = [1, 1]} : vector<5x64xf32> to vector<5x16xf32>
    %cst_17 = arith.constant dense<0.000000e+00> : vector<5x5xf32>
    %56 = tpu.matmul %53, %54, %cst_17 {dimension_numbers = #tpu.dot_dimension_numbers<[1], [1], [0], [0], [0, 0, 1, 0], [], []>} : vector<5x16xf32>, vector<5x16xf32>, vector<5x5xf32> -> vector<5x5xf32>
    %cst_18 = arith.constant 2.500000e-01 : f32
    %57 = vector.broadcast %cst_18 : f32 to vector<5x5xf32>
    %58 = arith.mulf %56, %57 : vector<5x5xf32>
    %cst_19 = arith.constant dense<0xFF800000> : vector<5xf32>
    %59 = vector.multi_reduction <maximumf>, %58, %cst_19 [1] : vector<5x5xf32> to vector<5xf32>
    %60 = vector.shape_cast %59 : vector<5xf32> to vector<5x1xf32>
    %61 = vector.broadcast %60 : vector<5x1xf32> to vector<5x5xf32>
    %62 = arith.subf %58, %61 : vector<5x5xf32>
    %63 = math.exp %62 : vector<5x5xf32>
    %cst_20 = arith.constant dense<0.000000e+00> : vector<5xf32>
    %64 = vector.multi_reduction <add>, %63, %cst_20 [1] : vector<5x5xf32> to vector<5xf32>
    %65 = vector.shape_cast %64 : vector<5xf32> to vector<5x1xf32>
    %66 = vector.broadcast %65 : vector<5x1xf32> to vector<5x5xf32>
    %67 = arith.divf %63, %66 : vector<5x5xf32>
    %cst_21 = arith.constant dense<0.000000e+00> : vector<5x16xf32>
    %68 = tpu.matmul %67, %55, %cst_21 {dimension_numbers = #tpu.dot_dimension_numbers<[1], [0], [0], [1], [0, 0, 1, 1], [], []>} : vector<5x5xf32>, vector<5x16xf32>, vector<5x16xf32> -> vector<5x16xf32>
    %69 = vector.extract_strided_slice %50 {offsets = [0, 16], sizes = [5, 16], strides = [1, 1]} : vector<5x64xf32> to vector<5x16xf32>
    %70 = vector.extract_strided_slice %51 {offsets = [0, 16], sizes = [5, 16], strides = [1, 1]} : vector<5x64xf32> to vector<5x16xf32>
    %71 = vector.extract_strided_slice %52 {offsets = [0, 16], sizes = [5, 16], strides = [1, 1]} : vector<5x64xf32> to vector<5x16xf32>
    %cst_22 = arith.constant dense<0.000000e+00> : vector<5x5xf32>
    %72 = tpu.matmul %69, %70, %cst_22 {dimension_numbers = #tpu.dot_dimension_numbers<[1], [1], [0], [0], [0, 0, 1, 0], [], []>} : vector<5x16xf32>, vector<5x16xf32>, vector<5x5xf32> -> vector<5x5xf32>
    %cst_23 = arith.constant 2.500000e-01 : f32
    %73 = vector.broadcast %cst_23 : f32 to vector<5x5xf32>
    %74 = arith.mulf %72, %73 : vector<5x5xf32>
    %cst_24 = arith.constant dense<0xFF800000> : vector<5xf32>
    %75 = vector.multi_reduction <maximumf>, %74, %cst_24 [1] : vector<5x5xf32> to vector<5xf32>
    %76 = vector.shape_cast %75 : vector<5xf32> to vector<5x1xf32>
    %77 = vector.broadcast %76 : vector<5x1xf32> to vector<5x5xf32>
    %78 = arith.subf %74, %77 : vector<5x5xf32>
    %79 = math.exp %78 : vector<5x5xf32>
    %cst_25 = arith.constant dense<0.000000e+00> : vector<5xf32>
    %80 = vector.multi_reduction <add>, %79, %cst_25 [1] : vector<5x5xf32> to vector<5xf32>
    %81 = vector.shape_cast %80 : vector<5xf32> to vector<5x1xf32>
    %82 = vector.broadcast %81 : vector<5x1xf32> to vector<5x5xf32>
    %83 = arith.divf %79, %82 : vector<5x5xf32>
    %cst_26 = arith.constant dense<0.000000e+00> : vector<5x16xf32>
    %84 = tpu.matmul %83, %71, %cst_26 {dimension_numbers = #tpu.dot_dimension_numbers<[1], [0], [0], [1], [0, 0, 1, 1], [], []>} : vector<5x5xf32>, vector<5x16xf32>, vector<5x16xf32> -> vector<5x16xf32>
    %85 = vector.extract_strided_slice %50 {offsets = [0, 32], sizes = [5, 16], strides = [1, 1]} : vector<5x64xf32> to vector<5x16xf32>
    %86 = vector.extract_strided_slice %51 {offsets = [0, 32], sizes = [5, 16], strides = [1, 1]} : vector<5x64xf32> to vector<5x16xf32>
    %87 = vector.extract_strided_slice %52 {offsets = [0, 32], sizes = [5, 16], strides = [1, 1]} : vector<5x64xf32> to vector<5x16xf32>
    %cst_27 = arith.constant dense<0.000000e+00> : vector<5x5xf32>
    %88 = tpu.matmul %85, %86, %cst_27 {dimension_numbers = #tpu.dot_dimension_numbers<[1], [1], [0], [0], [0, 0, 1, 0], [], []>} : vector<5x16xf32>, vector<5x16xf32>, vector<5x5xf32> -> vector<5x5xf32>
    %cst_28 = arith.constant 2.500000e-01 : f32
    %89 = vector.broadcast %cst_28 : f32 to vector<5x5xf32>
    %90 = arith.mulf %88, %89 : vector<5x5xf32>
    %cst_29 = arith.constant dense<0xFF800000> : vector<5xf32>
    %91 = vector.multi_reduction <maximumf>, %90, %cst_29 [1] : vector<5x5xf32> to vector<5xf32>
    %92 = vector.shape_cast %91 : vector<5xf32> to vector<5x1xf32>
    %93 = vector.broadcast %92 : vector<5x1xf32> to vector<5x5xf32>
    %94 = arith.subf %90, %93 : vector<5x5xf32>
    %95 = math.exp %94 : vector<5x5xf32>
    %cst_30 = arith.constant dense<0.000000e+00> : vector<5xf32>
    %96 = vector.multi_reduction <add>, %95, %cst_30 [1] : vector<5x5xf32> to vector<5xf32>
    %97 = vector.shape_cast %96 : vector<5xf32> to vector<5x1xf32>
    %98 = vector.broadcast %97 : vector<5x1xf32> to vector<5x5xf32>
    %99 = arith.divf %95, %98 : vector<5x5xf32>
    %cst_31 = arith.constant dense<0.000000e+00> : vector<5x16xf32>
    %100 = tpu.matmul %99, %87, %cst_31 {dimension_numbers = #tpu.dot_dimension_numbers<[1], [0], [0], [1], [0, 0, 1, 1], [], []>} : vector<5x5xf32>, vector<5x16xf32>, vector<5x16xf32> -> vector<5x16xf32>
    %101 = vector.extract_strided_slice %50 {offsets = [0, 48], sizes = [5, 16], strides = [1, 1]} : vector<5x64xf32> to vector<5x16xf32>
    %102 = vector.extract_strided_slice %51 {offsets = [0, 48], sizes = [5, 16], strides = [1, 1]} : vector<5x64xf32> to vector<5x16xf32>
    %103 = vector.extract_strided_slice %52 {offsets = [0, 48], sizes = [5, 16], strides = [1, 1]} : vector<5x64xf32> to vector<5x16xf32>
    %cst_32 = arith.constant dense<0.000000e+00> : vector<5x5xf32>
    %104 = tpu.matmul %101, %102, %cst_32 {dimension_numbers = #tpu.dot_dimension_numbers<[1], [1], [0], [0], [0, 0, 1, 0], [], []>} : vector<5x16xf32>, vector<5x16xf32>, vector<5x5xf32> -> vector<5x5xf32>
    %cst_33 = arith.constant 2.500000e-01 : f32
    %105 = vector.broadcast %cst_33 : f32 to vector<5x5xf32>
    %106 = arith.mulf %104, %105 : vector<5x5xf32>
    %cst_34 = arith.constant dense<0xFF800000> : vector<5xf32>
    %107 = vector.multi_reduction <maximumf>, %106, %cst_34 [1] : vector<5x5xf32> to vector<5xf32>
    %108 = vector.shape_cast %107 : vector<5xf32> to vector<5x1xf32>
    %109 = vector.broadcast %108 : vector<5x1xf32> to vector<5x5xf32>
    %110 = arith.subf %106, %109 : vector<5x5xf32>
    %111 = math.exp %110 : vector<5x5xf32>
    %cst_35 = arith.constant dense<0.000000e+00> : vector<5xf32>
    %112 = vector.multi_reduction <add>, %111, %cst_35 [1] : vector<5x5xf32> to vector<5xf32>
    %113 = vector.shape_cast %112 : vector<5xf32> to vector<5x1xf32>
    %114 = vector.broadcast %113 : vector<5x1xf32> to vector<5x5xf32>
    %115 = arith.divf %111, %114 : vector<5x5xf32>
    %cst_36 = arith.constant dense<0.000000e+00> : vector<5x16xf32>
    %116 = tpu.matmul %115, %103, %cst_36 {dimension_numbers = #tpu.dot_dimension_numbers<[1], [0], [0], [1], [0, 0, 1, 1], [], []>} : vector<5x5xf32>, vector<5x16xf32>, vector<5x16xf32> -> vector<5x16xf32>
    %117 = tpu.concatenate %68, %84, %100, %116 in 1 : vector<5x16xf32>, vector<5x16xf32>, vector<5x16xf32>, vector<5x16xf32> -> vector<5x64xf32>
    %118 = vector.extract_strided_slice %49 {offsets = [5, 0], sizes = [5, 64], strides = [1, 1]} : vector<10x192xf32> to vector<5x64xf32>
    %119 = vector.extract_strided_slice %49 {offsets = [5, 64], sizes = [5, 64], strides = [1, 1]} : vector<10x192xf32> to vector<5x64xf32>
    %120 = vector.extract_strided_slice %49 {offsets = [5, 128], sizes = [5, 64], strides = [1, 1]} : vector<10x192xf32> to vector<5x64xf32>
    %121 = vector.extract_strided_slice %118 {offsets = [0, 0], sizes = [5, 16], strides = [1, 1]} : vector<5x64xf32> to vector<5x16xf32>
    %122 = vector.extract_strided_slice %119 {offsets = [0, 0], sizes = [5, 16], strides = [1, 1]} : vector<5x64xf32> to vector<5x16xf32>
    %123 = vector.extract_strided_slice %120 {offsets = [0, 0], sizes = [5, 16], strides = [1, 1]} : vector<5x64xf32> to vector<5x16xf32>
    %cst_37 = arith.constant dense<0.000000e+00> : vector<5x5xf32>
    %124 = tpu.matmul %121, %122, %cst_37 {dimension_numbers = #tpu.dot_dimension_numbers<[1], [1], [0], [0], [0, 0, 1, 0], [], []>} : vector<5x16xf32>, vector<5x16xf32>, vector<5x5xf32> -> vector<5x5xf32>
    %cst_38 = arith.constant 2.500000e-01 : f32
    %125 = vector.broadcast %cst_38 : f32 to vector<5x5xf32>
    %126 = arith.mulf %124, %125 : vector<5x5xf32>
    %cst_39 = arith.constant dense<0xFF800000> : vector<5xf32>
    %127 = vector.multi_reduction <maximumf>, %126, %cst_39 [1] : vector<5x5xf32> to vector<5xf32>
    %128 = vector.shape_cast %127 : vector<5xf32> to vector<5x1xf32>
    %129 = vector.broadcast %128 : vector<5x1xf32> to vector<5x5xf32>
    %130 = arith.subf %126, %129 : vector<5x5xf32>
    %131 = math.exp %130 : vector<5x5xf32>
    %cst_40 = arith.constant dense<0.000000e+00> : vector<5xf32>
    %132 = vector.multi_reduction <add>, %131, %cst_40 [1] : vector<5x5xf32> to vector<5xf32>
    %133 = vector.shape_cast %132 : vector<5xf32> to vector<5x1xf32>
    %134 = vector.broadcast %133 : vector<5x1xf32> to vector<5x5xf32>
    %135 = arith.divf %131, %134 : vector<5x5xf32>
    %cst_41 = arith.constant dense<0.000000e+00> : vector<5x16xf32>
    %136 = tpu.matmul %135, %123, %cst_41 {dimension_numbers = #tpu.dot_dimension_numbers<[1], [0], [0], [1], [0, 0, 1, 1], [], []>} : vector<5x5xf32>, vector<5x16xf32>, vector<5x16xf32> -> vector<5x16xf32>
    %137 = vector.extract_strided_slice %118 {offsets = [0, 16], sizes = [5, 16], strides = [1, 1]} : vector<5x64xf32> to vector<5x16xf32>
    %138 = vector.extract_strided_slice %119 {offsets = [0, 16], sizes = [5, 16], strides = [1, 1]} : vector<5x64xf32> to vector<5x16xf32>
    %139 = vector.extract_strided_slice %120 {offsets = [0, 16], sizes = [5, 16], strides = [1, 1]} : vector<5x64xf32> to vector<5x16xf32>
    %cst_42 = arith.constant dense<0.000000e+00> : vector<5x5xf32>
    %140 = tpu.matmul %137, %138, %cst_42 {dimension_numbers = #tpu.dot_dimension_numbers<[1], [1], [0], [0], [0, 0, 1, 0], [], []>} : vector<5x16xf32>, vector<5x16xf32>, vector<5x5xf32> -> vector<5x5xf32>
    %cst_43 = arith.constant 2.500000e-01 : f32
    %141 = vector.broadcast %cst_43 : f32 to vector<5x5xf32>
    %142 = arith.mulf %140, %141 : vector<5x5xf32>
    %cst_44 = arith.constant dense<0xFF800000> : vector<5xf32>
    %143 = vector.multi_reduction <maximumf>, %142, %cst_44 [1] : vector<5x5xf32> to vector<5xf32>
    %144 = vector.shape_cast %143 : vector<5xf32> to vector<5x1xf32>
    %145 = vector.broadcast %144 : vector<5x1xf32> to vector<5x5xf32>
    %146 = arith.subf %142, %145 : vector<5x5xf32>
    %147 = math.exp %146 : vector<5x5xf32>
    %cst_45 = arith.constant dense<0.000000e+00> : vector<5xf32>
    %148 = vector.multi_reduction <add>, %147, %cst_45 [1] : vector<5x5xf32> to vector<5xf32>
    %149 = vector.shape_cast %148 : vector<5xf32> to vector<5x1xf32>
    %150 = vector.broadcast %149 : vector<5x1xf32> to vector<5x5xf32>
    %151 = arith.divf %147, %150 : vector<5x5xf32>
    %cst_46 = arith.constant dense<0.000000e+00> : vector<5x16xf32>
    %152 = tpu.matmul %151, %139, %cst_46 {dimension_numbers = #tpu.dot_dimension_numbers<[1], [0], [0], [1], [0, 0, 1, 1], [], []>} : vector<5x5xf32>, vector<5x16xf32>, vector<5x16xf32> -> vector<5x16xf32>
    %153 = vector.extract_strided_slice %118 {offsets = [0, 32], sizes = [5, 16], strides = [1, 1]} : vector<5x64xf32> to vector<5x16xf32>
    %154 = vector.extract_strided_slice %119 {offsets = [0, 32], sizes = [5, 16], strides = [1, 1]} : vector<5x64xf32> to vector<5x16xf32>
    %155 = vector.extract_strided_slice %120 {offsets = [0, 32], sizes = [5, 16], strides = [1, 1]} : vector<5x64xf32> to vector<5x16xf32>
    %cst_47 = arith.constant dense<0.000000e+00> : vector<5x5xf32>
    %156 = tpu.matmul %153, %154, %cst_47 {dimension_numbers = #tpu.dot_dimension_numbers<[1], [1], [0], [0], [0, 0, 1, 0], [], []>} : vector<5x16xf32>, vector<5x16xf32>, vector<5x5xf32> -> vector<5x5xf32>
    %cst_48 = arith.constant 2.500000e-01 : f32
    %157 = vector.broadcast %cst_48 : f32 to vector<5x5xf32>
    %158 = arith.mulf %156, %157 : vector<5x5xf32>
    %cst_49 = arith.constant dense<0xFF800000> : vector<5xf32>
    %159 = vector.multi_reduction <maximumf>, %158, %cst_49 [1] : vector<5x5xf32> to vector<5xf32>
    %160 = vector.shape_cast %159 : vector<5xf32> to vector<5x1xf32>
    %161 = vector.broadcast %160 : vector<5x1xf32> to vector<5x5xf32>
    %162 = arith.subf %158, %161 : vector<5x5xf32>
    %163 = math.exp %162 : vector<5x5xf32>
    %cst_50 = arith.constant dense<0.000000e+00> : vector<5xf32>
    %164 = vector.multi_reduction <add>, %163, %cst_50 [1] : vector<5x5xf32> to vector<5xf32>
    %165 = vector.shape_cast %164 : vector<5xf32> to vector<5x1xf32>
    %166 = vector.broadcast %165 : vector<5x1xf32> to vector<5x5xf32>
    %167 = arith.divf %163, %166 : vector<5x5xf32>
    %cst_51 = arith.constant dense<0.000000e+00> : vector<5x16xf32>
    %168 = tpu.matmul %167, %155, %cst_51 {dimension_numbers = #tpu.dot_dimension_numbers<[1], [0], [0], [1], [0, 0, 1, 1], [], []>} : vector<5x5xf32>, vector<5x16xf32>, vector<5x16xf32> -> vector<5x16xf32>
    %169 = vector.extract_strided_slice %118 {offsets = [0, 48], sizes = [5, 16], strides = [1, 1]} : vector<5x64xf32> to vector<5x16xf32>
    %170 = vector.extract_strided_slice %119 {offsets = [0, 48], sizes = [5, 16], strides = [1, 1]} : vector<5x64xf32> to vector<5x16xf32>
    %171 = vector.extract_strided_slice %120 {offsets = [0, 48], sizes = [5, 16], strides = [1, 1]} : vector<5x64xf32> to vector<5x16xf32>
    %cst_52 = arith.constant dense<0.000000e+00> : vector<5x5xf32>
    %172 = tpu.matmul %169, %170, %cst_52 {dimension_numbers = #tpu.dot_dimension_numbers<[1], [1], [0], [0], [0, 0, 1, 0], [], []>} : vector<5x16xf32>, vector<5x16xf32>, vector<5x5xf32> -> vector<5x5xf32>
    %cst_53 = arith.constant 2.500000e-01 : f32
    %173 = vector.broadcast %cst_53 : f32 to vector<5x5xf32>
    %174 = arith.mulf %172, %173 : vector<5x5xf32>
    %cst_54 = arith.constant dense<0xFF800000> : vector<5xf32>
    %175 = vector.multi_reduction <maximumf>, %174, %cst_54 [1] : vector<5x5xf32> to vector<5xf32>
    %176 = vector.shape_cast %175 : vector<5xf32> to vector<5x1xf32>
    %177 = vector.broadcast %176 : vector<5x1xf32> to vector<5x5xf32>
    %178 = arith.subf %174, %177 : vector<5x5xf32>
    %179 = math.exp %178 : vector<5x5xf32>
    %cst_55 = arith.constant dense<0.000000e+00> : vector<5xf32>
    %180 = vector.multi_reduction <add>, %179, %cst_55 [1] : vector<5x5xf32> to vector<5xf32>
    %181 = vector.shape_cast %180 : vector<5xf32> to vector<5x1xf32>
    %182 = vector.broadcast %181 : vector<5x1xf32> to vector<5x5xf32>
    %183 = arith.divf %179, %182 : vector<5x5xf32>
    %cst_56 = arith.constant dense<0.000000e+00> : vector<5x16xf32>
    %184 = tpu.matmul %183, %171, %cst_56 {dimension_numbers = #tpu.dot_dimension_numbers<[1], [0], [0], [1], [0, 0, 1, 1], [], []>} : vector<5x5xf32>, vector<5x16xf32>, vector<5x16xf32> -> vector<5x16xf32>
    %185 = tpu.concatenate %136, %152, %168, %184 in 1 : vector<5x16xf32>, vector<5x16xf32>, vector<5x16xf32>, vector<5x16xf32> -> vector<5x64xf32>
    %186 = tpu.concatenate %117, %185 in 0 : vector<5x64xf32>, vector<5x64xf32> -> vector<10x64xf32>
    %c0_57 = arith.constant 0 : index
    %c0_58 = arith.constant 0 : index
    %c0_59 = arith.constant 0 : index
    %187 = vector.load %arg6[%c0_57, %c0_58, %c0_59] : memref<2x64x64xf32, #tpu.memory_space<vmem>>, vector<1x64x64xf32>
    %188 = vector.shape_cast %187 : vector<1x64x64xf32> to vector<64x64xf32>
    %cst_60 = arith.constant dense<0.000000e+00> : vector<10x64xf32>
    %189 = tpu.matmul %186, %188, %cst_60 {dimension_numbers = #tpu.dot_dimension_numbers<[1], [0], [0], [1], [0, 0, 1, 1], [], []>} : vector<10x64xf32>, vector<64x64xf32>, vector<10x64xf32> -> vector<10x64xf32>
    %190 = arith.addf %12, %189 : vector<10x64xf32>
    %191 = vector.broadcast %18 : vector<1x64xf32> to vector<10x64xf32>
    %192 = arith.addf %190, %191 : vector<10x64xf32>
    %cst_61 = arith.constant dense<0.000000e+00> : vector<10xf32>
    %193 = vector.multi_reduction <add>, %192, %cst_61 [1] : vector<10x64xf32> to vector<10xf32>
    %194 = vector.shape_cast %193 : vector<10xf32> to vector<10x1xf32>
    %cst_62 = arith.constant 6.400000e+01 : f32
    %195 = vector.broadcast %cst_62 : f32 to vector<10x1xf32>
    %196 = arith.divf %194, %195 : vector<10x1xf32>
    %197 = vector.broadcast %196 : vector<10x1xf32> to vector<10x64xf32>
    %198 = arith.subf %192, %197 : vector<10x64xf32>
    %199 = arith.mulf %198, %198 : vector<10x64xf32>
    %cst_63 = arith.constant dense<0.000000e+00> : vector<10xf32>
    %200 = vector.multi_reduction <add>, %199, %cst_63 [1] : vector<10x64xf32> to vector<10xf32>
    %201 = vector.shape_cast %200 : vector<10xf32> to vector<10x1xf32>
    %cst_64 = arith.constant 6.400000e+01 : f32
    %202 = vector.broadcast %cst_64 : f32 to vector<10x1xf32>
    %203 = arith.divf %201, %202 : vector<10x1xf32>
    %204 = vector.broadcast %196 : vector<10x1xf32> to vector<10x64xf32>
    %205 = arith.subf %192, %204 : vector<10x64xf32>
    %cst_65 = arith.constant 9.99999996E-13 : f32
    %206 = vector.broadcast %cst_65 : f32 to vector<10x1xf32>
    %207 = arith.addf %203, %206 : vector<10x1xf32>
    %208 = math.rsqrt %207 : vector<10x1xf32>
    %209 = vector.broadcast %208 : vector<10x1xf32> to vector<10x64xf32>
    %210 = arith.mulf %205, %209 : vector<10x64xf32>
    %211 = vector.broadcast %19 : vector<1x64xf32> to vector<10x64xf32>
    %212 = arith.mulf %210, %211 : vector<10x64xf32>
    %213 = vector.broadcast %20 : vector<1x64xf32> to vector<10x64xf32>
    %214 = arith.addf %212, %213 : vector<10x64xf32>
    %c0_66 = arith.constant 0 : index
    %c0_67 = arith.constant 0 : index
    %c0_68 = arith.constant 0 : index
    %215 = vector.load %arg7[%c0_66, %c0_67, %c0_68] : memref<2x64x128xf32, #tpu.memory_space<vmem>>, vector<1x64x128xf32>
    %216 = vector.shape_cast %215 : vector<1x64x128xf32> to vector<64x128xf32>
    %cst_69 = arith.constant dense<0.000000e+00> : vector<10x128xf32>
    %217 = tpu.matmul %214, %216, %cst_69 {dimension_numbers = #tpu.dot_dimension_numbers<[1], [0], [0], [1], [0, 0, 1, 1], [], []>} : vector<10x64xf32>, vector<64x128xf32>, vector<10x128xf32> -> vector<10x128xf32>
    %218 = vector.broadcast %21 : vector<1x128xf32> to vector<10x128xf32>
    %219 = arith.addf %217, %218 : vector<10x128xf32>
    %cst_70 = arith.constant 5.000000e-01 : f32
    %220 = vector.broadcast %cst_70 : f32 to vector<10x128xf32>
    %221 = arith.mulf %220, %219 : vector<10x128xf32>
    %cst_71 = arith.constant 0.707106769 : f32
    %222 = vector.broadcast %cst_71 : f32 to vector<10x128xf32>
    %223 = arith.mulf %219, %222 : vector<10x128xf32>
    %224 = math.absf %223 : vector<10x128xf32>
    %cst_72 = arith.constant 0.327591091 : f32
    %225 = vector.broadcast %cst_72 : f32 to vector<10x128xf32>
    %226 = arith.mulf %225, %224 : vector<10x128xf32>
    %cst_73 = arith.constant 1.000000e+00 : f32
    %227 = vector.broadcast %cst_73 : f32 to vector<10x128xf32>
    %228 = arith.addf %227, %226 : vector<10x128xf32>
    %cst_74 = arith.constant 1.000000e+00 : f32
    %229 = vector.broadcast %cst_74 : f32 to vector<10x128xf32>
    %230 = arith.divf %229, %228 : vector<10x128xf32>
    %cst_75 = arith.constant 1.06140542 : f32
    %231 = vector.broadcast %cst_75 : f32 to vector<10x128xf32>
    %232 = arith.mulf %231, %230 : vector<10x128xf32>
    %cst_76 = arith.constant -1.45315206 : f32
    %233 = vector.broadcast %cst_76 : f32 to vector<10x128xf32>
    %234 = arith.addf %232, %233 : vector<10x128xf32>
    %235 = arith.mulf %234, %230 : vector<10x128xf32>
    %cst_77 = arith.constant 1.42141378 : f32
    %236 = vector.broadcast %cst_77 : f32 to vector<10x128xf32>
    %237 = arith.addf %235, %236 : vector<10x128xf32>
    %238 = arith.mulf %237, %230 : vector<10x128xf32>
    %cst_78 = arith.constant -0.284496725 : f32
    %239 = vector.broadcast %cst_78 : f32 to vector<10x128xf32>
    %240 = arith.addf %238, %239 : vector<10x128xf32>
    %241 = arith.mulf %240, %230 : vector<10x128xf32>
    %cst_79 = arith.constant 0.254829586 : f32
    %242 = vector.broadcast %cst_79 : f32 to vector<10x128xf32>
    %243 = arith.addf %241, %242 : vector<10x128xf32>
    %244 = arith.mulf %243, %230 : vector<10x128xf32>
    %cst_80 = arith.constant 0.000000e+00 : f32
    %245 = vector.broadcast %cst_80 : f32 to vector<10x128xf32>
    %246 = arith.subf %245, %224 : vector<10x128xf32>
    %247 = arith.mulf %246, %224 : vector<10x128xf32>
    %248 = math.exp %247 : vector<10x128xf32>
    %249 = arith.mulf %244, %248 : vector<10x128xf32>
    %cst_81 = arith.constant 1.000000e+00 : f32
    %250 = vector.broadcast %cst_81 : f32 to vector<10x128xf32>
    %251 = arith.subf %250, %249 : vector<10x128xf32>
    %cst_82 = arith.constant 0.000000e+00 : f32
    %252 = vector.broadcast %cst_82 : f32 to vector<10x128xf32>
    %253 = arith.cmpf olt, %223, %252 : vector<10x128xf32>
    %cst_83 = arith.constant 0.000000e+00 : f32
    %254 = vector.broadcast %cst_83 : f32 to vector<10x128xf32>
    %255 = arith.subf %254, %251 : vector<10x128xf32>
    %256 = arith.select %253, %255, %251 : vector<10x128xi1>, vector<10x128xf32>
    %cst_84 = arith.constant 1.000000e+00 : f32
    %257 = vector.broadcast %cst_84 : f32 to vector<10x128xf32>
    %258 = arith.addf %257, %256 : vector<10x128xf32>
    %259 = arith.mulf %221, %258 : vector<10x128xf32>
    %c0_85 = arith.constant 0 : index
    %c0_86 = arith.constant 0 : index
    %c0_87 = arith.constant 0 : index
    %260 = vector.load %arg8[%c0_85, %c0_86, %c0_87] : memref<2x128x64xf32, #tpu.memory_space<vmem>>, vector<1x128x64xf32>
    %261 = vector.shape_cast %260 : vector<1x128x64xf32> to vector<128x64xf32>
    %cst_88 = arith.constant dense<0.000000e+00> : vector<10x64xf32>
    %262 = tpu.matmul %259, %261, %cst_88 {dimension_numbers = #tpu.dot_dimension_numbers<[1], [0], [0], [1], [0, 0, 1, 1], [], []>} : vector<10x128xf32>, vector<128x64xf32>, vector<10x64xf32> -> vector<10x64xf32>
    %263 = arith.addf %192, %262 : vector<10x64xf32>
    %264 = vector.broadcast %22 : vector<1x64xf32> to vector<10x64xf32>
    %265 = arith.addf %263, %264 : vector<10x64xf32>
    %c1 = arith.constant 1 : index
    %c0_89 = arith.constant 0 : index
    %c0_90 = arith.constant 0 : index
    %266 = vector.load %arg4[%c1, %c0_89, %c0_90] : memref<2x8x192xf32, #tpu.memory_space<vmem>>, vector<1x8x192xf32>
    %267 = vector.shape_cast %266 : vector<1x8x192xf32> to vector<8x192xf32>
    %268 = vector.extract_strided_slice %267 {offsets = [0, 0], sizes = [1, 64], strides = [1, 1]} : vector<8x192xf32> to vector<1x64xf32>
    %269 = vector.extract_strided_slice %267 {offsets = [1, 0], sizes = [1, 64], strides = [1, 1]} : vector<8x192xf32> to vector<1x64xf32>
    %270 = vector.extract_strided_slice %267 {offsets = [2, 0], sizes = [1, 192], strides = [1, 1]} : vector<8x192xf32> to vector<1x192xf32>
    %271 = vector.extract_strided_slice %267 {offsets = [3, 0], sizes = [1, 64], strides = [1, 1]} : vector<8x192xf32> to vector<1x64xf32>
    %272 = vector.extract_strided_slice %267 {offsets = [4, 0], sizes = [1, 64], strides = [1, 1]} : vector<8x192xf32> to vector<1x64xf32>
    %273 = vector.extract_strided_slice %267 {offsets = [5, 0], sizes = [1, 64], strides = [1, 1]} : vector<8x192xf32> to vector<1x64xf32>
    %274 = vector.extract_strided_slice %267 {offsets = [6, 0], sizes = [1, 128], strides = [1, 1]} : vector<8x192xf32> to vector<1x128xf32>
    %275 = vector.extract_strided_slice %267 {offsets = [7, 0], sizes = [1, 64], strides = [1, 1]} : vector<8x192xf32> to vector<1x64xf32>
    %cst_91 = arith.constant dense<0.000000e+00> : vector<10xf32>
    %276 = vector.multi_reduction <add>, %265, %cst_91 [1] : vector<10x64xf32> to vector<10xf32>
    %277 = vector.shape_cast %276 : vector<10xf32> to vector<10x1xf32>
    %cst_92 = arith.constant 6.400000e+01 : f32
    %278 = vector.broadcast %cst_92 : f32 to vector<10x1xf32>
    %279 = arith.divf %277, %278 : vector<10x1xf32>
    %280 = vector.broadcast %279 : vector<10x1xf32> to vector<10x64xf32>
    %281 = arith.subf %265, %280 : vector<10x64xf32>
    %282 = arith.mulf %281, %281 : vector<10x64xf32>
    %cst_93 = arith.constant dense<0.000000e+00> : vector<10xf32>
    %283 = vector.multi_reduction <add>, %282, %cst_93 [1] : vector<10x64xf32> to vector<10xf32>
    %284 = vector.shape_cast %283 : vector<10xf32> to vector<10x1xf32>
    %cst_94 = arith.constant 6.400000e+01 : f32
    %285 = vector.broadcast %cst_94 : f32 to vector<10x1xf32>
    %286 = arith.divf %284, %285 : vector<10x1xf32>
    %287 = vector.broadcast %279 : vector<10x1xf32> to vector<10x64xf32>
    %288 = arith.subf %265, %287 : vector<10x64xf32>
    %cst_95 = arith.constant 9.99999996E-13 : f32
    %289 = vector.broadcast %cst_95 : f32 to vector<10x1xf32>
    %290 = arith.addf %286, %289 : vector<10x1xf32>
    %291 = math.rsqrt %290 : vector<10x1xf32>
    %292 = vector.broadcast %291 : vector<10x1xf32> to vector<10x64xf32>
    %293 = arith.mulf %288, %292 : vector<10x64xf32>
    %294 = vector.broadcast %268 : vector<1x64xf32> to vector<10x64xf32>
    %295 = arith.mulf %293, %294 : vector<10x64xf32>
    %296 = vector.broadcast %269 : vector<1x64xf32> to vector<10x64xf32>
    %297 = arith.addf %295, %296 : vector<10x64xf32>
    %c1_96 = arith.constant 1 : index
    %c0_97 = arith.constant 0 : index
    %c0_98 = arith.constant 0 : index
    %298 = vector.load %arg5[%c1_96, %c0_97, %c0_98] : memref<2x64x192xf32, #tpu.memory_space<vmem>>, vector<1x64x192xf32>
    %299 = vector.shape_cast %298 : vector<1x64x192xf32> to vector<64x192xf32>
    %cst_99 = arith.constant dense<0.000000e+00> : vector<10x192xf32>
    %300 = tpu.matmul %297, %299, %cst_99 {dimension_numbers = #tpu.dot_dimension_numbers<[1], [0], [0], [1], [0, 0, 1, 1], [], []>} : vector<10x64xf32>, vector<64x192xf32>, vector<10x192xf32> -> vector<10x192xf32>
    %301 = vector.broadcast %270 : vector<1x192xf32> to vector<10x192xf32>
    %302 = arith.addf %300, %301 : vector<10x192xf32>
    %303 = vector.extract_strided_slice %302 {offsets = [0, 0], sizes = [5, 64], strides = [1, 1]} : vector<10x192xf32> to vector<5x64xf32>
    %304 = vector.extract_strided_slice %302 {offsets = [0, 64], sizes = [5, 64], strides = [1, 1]} : vector<10x192xf32> to vector<5x64xf32>
    %305 = vector.extract_strided_slice %302 {offsets = [0, 128], sizes = [5, 64], strides = [1, 1]} : vector<10x192xf32> to vector<5x64xf32>
    %306 = vector.extract_strided_slice %303 {offsets = [0, 0], sizes = [5, 16], strides = [1, 1]} : vector<5x64xf32> to vector<5x16xf32>
    %307 = vector.extract_strided_slice %304 {offsets = [0, 0], sizes = [5, 16], strides = [1, 1]} : vector<5x64xf32> to vector<5x16xf32>
    %308 = vector.extract_strided_slice %305 {offsets = [0, 0], sizes = [5, 16], strides = [1, 1]} : vector<5x64xf32> to vector<5x16xf32>
    %cst_100 = arith.constant dense<0.000000e+00> : vector<5x5xf32>
    %309 = tpu.matmul %306, %307, %cst_100 {dimension_numbers = #tpu.dot_dimension_numbers<[1], [1], [0], [0], [0, 0, 1, 0], [], []>} : vector<5x16xf32>, vector<5x16xf32>, vector<5x5xf32> -> vector<5x5xf32>
    %cst_101 = arith.constant 2.500000e-01 : f32
    %310 = vector.broadcast %cst_101 : f32 to vector<5x5xf32>
    %311 = arith.mulf %309, %310 : vector<5x5xf32>
    %cst_102 = arith.constant dense<0xFF800000> : vector<5xf32>
    %312 = vector.multi_reduction <maximumf>, %311, %cst_102 [1] : vector<5x5xf32> to vector<5xf32>
    %313 = vector.shape_cast %312 : vector<5xf32> to vector<5x1xf32>
    %314 = vector.broadcast %313 : vector<5x1xf32> to vector<5x5xf32>
    %315 = arith.subf %311, %314 : vector<5x5xf32>
    %316 = math.exp %315 : vector<5x5xf32>
    %cst_103 = arith.constant dense<0.000000e+00> : vector<5xf32>
    %317 = vector.multi_reduction <add>, %316, %cst_103 [1] : vector<5x5xf32> to vector<5xf32>
    %318 = vector.shape_cast %317 : vector<5xf32> to vector<5x1xf32>
    %319 = vector.broadcast %318 : vector<5x1xf32> to vector<5x5xf32>
    %320 = arith.divf %316, %319 : vector<5x5xf32>
    %cst_104 = arith.constant dense<0.000000e+00> : vector<5x16xf32>
    %321 = tpu.matmul %320, %308, %cst_104 {dimension_numbers = #tpu.dot_dimension_numbers<[1], [0], [0], [1], [0, 0, 1, 1], [], []>} : vector<5x5xf32>, vector<5x16xf32>, vector<5x16xf32> -> vector<5x16xf32>
    %322 = vector.extract_strided_slice %303 {offsets = [0, 16], sizes = [5, 16], strides = [1, 1]} : vector<5x64xf32> to vector<5x16xf32>
    %323 = vector.extract_strided_slice %304 {offsets = [0, 16], sizes = [5, 16], strides = [1, 1]} : vector<5x64xf32> to vector<5x16xf32>
    %324 = vector.extract_strided_slice %305 {offsets = [0, 16], sizes = [5, 16], strides = [1, 1]} : vector<5x64xf32> to vector<5x16xf32>
    %cst_105 = arith.constant dense<0.000000e+00> : vector<5x5xf32>
    %325 = tpu.matmul %322, %323, %cst_105 {dimension_numbers = #tpu.dot_dimension_numbers<[1], [1], [0], [0], [0, 0, 1, 0], [], []>} : vector<5x16xf32>, vector<5x16xf32>, vector<5x5xf32> -> vector<5x5xf32>
    %cst_106 = arith.constant 2.500000e-01 : f32
    %326 = vector.broadcast %cst_106 : f32 to vector<5x5xf32>
    %327 = arith.mulf %325, %326 : vector<5x5xf32>
    %cst_107 = arith.constant dense<0xFF800000> : vector<5xf32>
    %328 = vector.multi_reduction <maximumf>, %327, %cst_107 [1] : vector<5x5xf32> to vector<5xf32>
    %329 = vector.shape_cast %328 : vector<5xf32> to vector<5x1xf32>
    %330 = vector.broadcast %329 : vector<5x1xf32> to vector<5x5xf32>
    %331 = arith.subf %327, %330 : vector<5x5xf32>
    %332 = math.exp %331 : vector<5x5xf32>
    %cst_108 = arith.constant dense<0.000000e+00> : vector<5xf32>
    %333 = vector.multi_reduction <add>, %332, %cst_108 [1] : vector<5x5xf32> to vector<5xf32>
    %334 = vector.shape_cast %333 : vector<5xf32> to vector<5x1xf32>
    %335 = vector.broadcast %334 : vector<5x1xf32> to vector<5x5xf32>
    %336 = arith.divf %332, %335 : vector<5x5xf32>
    %cst_109 = arith.constant dense<0.000000e+00> : vector<5x16xf32>
    %337 = tpu.matmul %336, %324, %cst_109 {dimension_numbers = #tpu.dot_dimension_numbers<[1], [0], [0], [1], [0, 0, 1, 1], [], []>} : vector<5x5xf32>, vector<5x16xf32>, vector<5x16xf32> -> vector<5x16xf32>
    %338 = vector.extract_strided_slice %303 {offsets = [0, 32], sizes = [5, 16], strides = [1, 1]} : vector<5x64xf32> to vector<5x16xf32>
    %339 = vector.extract_strided_slice %304 {offsets = [0, 32], sizes = [5, 16], strides = [1, 1]} : vector<5x64xf32> to vector<5x16xf32>
    %340 = vector.extract_strided_slice %305 {offsets = [0, 32], sizes = [5, 16], strides = [1, 1]} : vector<5x64xf32> to vector<5x16xf32>
    %cst_110 = arith.constant dense<0.000000e+00> : vector<5x5xf32>
    %341 = tpu.matmul %338, %339, %cst_110 {dimension_numbers = #tpu.dot_dimension_numbers<[1], [1], [0], [0], [0, 0, 1, 0], [], []>} : vector<5x16xf32>, vector<5x16xf32>, vector<5x5xf32> -> vector<5x5xf32>
    %cst_111 = arith.constant 2.500000e-01 : f32
    %342 = vector.broadcast %cst_111 : f32 to vector<5x5xf32>
    %343 = arith.mulf %341, %342 : vector<5x5xf32>
    %cst_112 = arith.constant dense<0xFF800000> : vector<5xf32>
    %344 = vector.multi_reduction <maximumf>, %343, %cst_112 [1] : vector<5x5xf32> to vector<5xf32>
    %345 = vector.shape_cast %344 : vector<5xf32> to vector<5x1xf32>
    %346 = vector.broadcast %345 : vector<5x1xf32> to vector<5x5xf32>
    %347 = arith.subf %343, %346 : vector<5x5xf32>
    %348 = math.exp %347 : vector<5x5xf32>
    %cst_113 = arith.constant dense<0.000000e+00> : vector<5xf32>
    %349 = vector.multi_reduction <add>, %348, %cst_113 [1] : vector<5x5xf32> to vector<5xf32>
    %350 = vector.shape_cast %349 : vector<5xf32> to vector<5x1xf32>
    %351 = vector.broadcast %350 : vector<5x1xf32> to vector<5x5xf32>
    %352 = arith.divf %348, %351 : vector<5x5xf32>
    %cst_114 = arith.constant dense<0.000000e+00> : vector<5x16xf32>
    %353 = tpu.matmul %352, %340, %cst_114 {dimension_numbers = #tpu.dot_dimension_numbers<[1], [0], [0], [1], [0, 0, 1, 1], [], []>} : vector<5x5xf32>, vector<5x16xf32>, vector<5x16xf32> -> vector<5x16xf32>
    %354 = vector.extract_strided_slice %303 {offsets = [0, 48], sizes = [5, 16], strides = [1, 1]} : vector<5x64xf32> to vector<5x16xf32>
    %355 = vector.extract_strided_slice %304 {offsets = [0, 48], sizes = [5, 16], strides = [1, 1]} : vector<5x64xf32> to vector<5x16xf32>
    %356 = vector.extract_strided_slice %305 {offsets = [0, 48], sizes = [5, 16], strides = [1, 1]} : vector<5x64xf32> to vector<5x16xf32>
    %cst_115 = arith.constant dense<0.000000e+00> : vector<5x5xf32>
    %357 = tpu.matmul %354, %355, %cst_115 {dimension_numbers = #tpu.dot_dimension_numbers<[1], [1], [0], [0], [0, 0, 1, 0], [], []>} : vector<5x16xf32>, vector<5x16xf32>, vector<5x5xf32> -> vector<5x5xf32>
    %cst_116 = arith.constant 2.500000e-01 : f32
    %358 = vector.broadcast %cst_116 : f32 to vector<5x5xf32>
    %359 = arith.mulf %357, %358 : vector<5x5xf32>
    %cst_117 = arith.constant dense<0xFF800000> : vector<5xf32>
    %360 = vector.multi_reduction <maximumf>, %359, %cst_117 [1] : vector<5x5xf32> to vector<5xf32>
    %361 = vector.shape_cast %360 : vector<5xf32> to vector<5x1xf32>
    %362 = vector.broadcast %361 : vector<5x1xf32> to vector<5x5xf32>
    %363 = arith.subf %359, %362 : vector<5x5xf32>
    %364 = math.exp %363 : vector<5x5xf32>
    %cst_118 = arith.constant dense<0.000000e+00> : vector<5xf32>
    %365 = vector.multi_reduction <add>, %364, %cst_118 [1] : vector<5x5xf32> to vector<5xf32>
    %366 = vector.shape_cast %365 : vector<5xf32> to vector<5x1xf32>
    %367 = vector.broadcast %366 : vector<5x1xf32> to vector<5x5xf32>
    %368 = arith.divf %364, %367 : vector<5x5xf32>
    %cst_119 = arith.constant dense<0.000000e+00> : vector<5x16xf32>
    %369 = tpu.matmul %368, %356, %cst_119 {dimension_numbers = #tpu.dot_dimension_numbers<[1], [0], [0], [1], [0, 0, 1, 1], [], []>} : vector<5x5xf32>, vector<5x16xf32>, vector<5x16xf32> -> vector<5x16xf32>
    %370 = tpu.concatenate %321, %337, %353, %369 in 1 : vector<5x16xf32>, vector<5x16xf32>, vector<5x16xf32>, vector<5x16xf32> -> vector<5x64xf32>
    %371 = vector.extract_strided_slice %302 {offsets = [5, 0], sizes = [5, 64], strides = [1, 1]} : vector<10x192xf32> to vector<5x64xf32>
    %372 = vector.extract_strided_slice %302 {offsets = [5, 64], sizes = [5, 64], strides = [1, 1]} : vector<10x192xf32> to vector<5x64xf32>
    %373 = vector.extract_strided_slice %302 {offsets = [5, 128], sizes = [5, 64], strides = [1, 1]} : vector<10x192xf32> to vector<5x64xf32>
    %374 = vector.extract_strided_slice %371 {offsets = [0, 0], sizes = [5, 16], strides = [1, 1]} : vector<5x64xf32> to vector<5x16xf32>
    %375 = vector.extract_strided_slice %372 {offsets = [0, 0], sizes = [5, 16], strides = [1, 1]} : vector<5x64xf32> to vector<5x16xf32>
    %376 = vector.extract_strided_slice %373 {offsets = [0, 0], sizes = [5, 16], strides = [1, 1]} : vector<5x64xf32> to vector<5x16xf32>
    %cst_120 = arith.constant dense<0.000000e+00> : vector<5x5xf32>
    %377 = tpu.matmul %374, %375, %cst_120 {dimension_numbers = #tpu.dot_dimension_numbers<[1], [1], [0], [0], [0, 0, 1, 0], [], []>} : vector<5x16xf32>, vector<5x16xf32>, vector<5x5xf32> -> vector<5x5xf32>
    %cst_121 = arith.constant 2.500000e-01 : f32
    %378 = vector.broadcast %cst_121 : f32 to vector<5x5xf32>
    %379 = arith.mulf %377, %378 : vector<5x5xf32>
    %cst_122 = arith.constant dense<0xFF800000> : vector<5xf32>
    %380 = vector.multi_reduction <maximumf>, %379, %cst_122 [1] : vector<5x5xf32> to vector<5xf32>
    %381 = vector.shape_cast %380 : vector<5xf32> to vector<5x1xf32>
    %382 = vector.broadcast %381 : vector<5x1xf32> to vector<5x5xf32>
    %383 = arith.subf %379, %382 : vector<5x5xf32>
    %384 = math.exp %383 : vector<5x5xf32>
    %cst_123 = arith.constant dense<0.000000e+00> : vector<5xf32>
    %385 = vector.multi_reduction <add>, %384, %cst_123 [1] : vector<5x5xf32> to vector<5xf32>
    %386 = vector.shape_cast %385 : vector<5xf32> to vector<5x1xf32>
    %387 = vector.broadcast %386 : vector<5x1xf32> to vector<5x5xf32>
    %388 = arith.divf %384, %387 : vector<5x5xf32>
    %cst_124 = arith.constant dense<0.000000e+00> : vector<5x16xf32>
    %389 = tpu.matmul %388, %376, %cst_124 {dimension_numbers = #tpu.dot_dimension_numbers<[1], [0], [0], [1], [0, 0, 1, 1], [], []>} : vector<5x5xf32>, vector<5x16xf32>, vector<5x16xf32> -> vector<5x16xf32>
    %390 = vector.extract_strided_slice %371 {offsets = [0, 16], sizes = [5, 16], strides = [1, 1]} : vector<5x64xf32> to vector<5x16xf32>
    %391 = vector.extract_strided_slice %372 {offsets = [0, 16], sizes = [5, 16], strides = [1, 1]} : vector<5x64xf32> to vector<5x16xf32>
    %392 = vector.extract_strided_slice %373 {offsets = [0, 16], sizes = [5, 16], strides = [1, 1]} : vector<5x64xf32> to vector<5x16xf32>
    %cst_125 = arith.constant dense<0.000000e+00> : vector<5x5xf32>
    %393 = tpu.matmul %390, %391, %cst_125 {dimension_numbers = #tpu.dot_dimension_numbers<[1], [1], [0], [0], [0, 0, 1, 0], [], []>} : vector<5x16xf32>, vector<5x16xf32>, vector<5x5xf32> -> vector<5x5xf32>
    %cst_126 = arith.constant 2.500000e-01 : f32
    %394 = vector.broadcast %cst_126 : f32 to vector<5x5xf32>
    %395 = arith.mulf %393, %394 : vector<5x5xf32>
    %cst_127 = arith.constant dense<0xFF800000> : vector<5xf32>
    %396 = vector.multi_reduction <maximumf>, %395, %cst_127 [1] : vector<5x5xf32> to vector<5xf32>
    %397 = vector.shape_cast %396 : vector<5xf32> to vector<5x1xf32>
    %398 = vector.broadcast %397 : vector<5x1xf32> to vector<5x5xf32>
    %399 = arith.subf %395, %398 : vector<5x5xf32>
    %400 = math.exp %399 : vector<5x5xf32>
    %cst_128 = arith.constant dense<0.000000e+00> : vector<5xf32>
    %401 = vector.multi_reduction <add>, %400, %cst_128 [1] : vector<5x5xf32> to vector<5xf32>
    %402 = vector.shape_cast %401 : vector<5xf32> to vector<5x1xf32>
    %403 = vector.broadcast %402 : vector<5x1xf32> to vector<5x5xf32>
    %404 = arith.divf %400, %403 : vector<5x5xf32>
    %cst_129 = arith.constant dense<0.000000e+00> : vector<5x16xf32>
    %405 = tpu.matmul %404, %392, %cst_129 {dimension_numbers = #tpu.dot_dimension_numbers<[1], [0], [0], [1], [0, 0, 1, 1], [], []>} : vector<5x5xf32>, vector<5x16xf32>, vector<5x16xf32> -> vector<5x16xf32>
    %406 = vector.extract_strided_slice %371 {offsets = [0, 32], sizes = [5, 16], strides = [1, 1]} : vector<5x64xf32> to vector<5x16xf32>
    %407 = vector.extract_strided_slice %372 {offsets = [0, 32], sizes = [5, 16], strides = [1, 1]} : vector<5x64xf32> to vector<5x16xf32>
    %408 = vector.extract_strided_slice %373 {offsets = [0, 32], sizes = [5, 16], strides = [1, 1]} : vector<5x64xf32> to vector<5x16xf32>
    %cst_130 = arith.constant dense<0.000000e+00> : vector<5x5xf32>
    %409 = tpu.matmul %406, %407, %cst_130 {dimension_numbers = #tpu.dot_dimension_numbers<[1], [1], [0], [0], [0, 0, 1, 0], [], []>} : vector<5x16xf32>, vector<5x16xf32>, vector<5x5xf32> -> vector<5x5xf32>
    %cst_131 = arith.constant 2.500000e-01 : f32
    %410 = vector.broadcast %cst_131 : f32 to vector<5x5xf32>
    %411 = arith.mulf %409, %410 : vector<5x5xf32>
    %cst_132 = arith.constant dense<0xFF800000> : vector<5xf32>
    %412 = vector.multi_reduction <maximumf>, %411, %cst_132 [1] : vector<5x5xf32> to vector<5xf32>
    %413 = vector.shape_cast %412 : vector<5xf32> to vector<5x1xf32>
    %414 = vector.broadcast %413 : vector<5x1xf32> to vector<5x5xf32>
    %415 = arith.subf %411, %414 : vector<5x5xf32>
    %416 = math.exp %415 : vector<5x5xf32>
    %cst_133 = arith.constant dense<0.000000e+00> : vector<5xf32>
    %417 = vector.multi_reduction <add>, %416, %cst_133 [1] : vector<5x5xf32> to vector<5xf32>
    %418 = vector.shape_cast %417 : vector<5xf32> to vector<5x1xf32>
    %419 = vector.broadcast %418 : vector<5x1xf32> to vector<5x5xf32>
    %420 = arith.divf %416, %419 : vector<5x5xf32>
    %cst_134 = arith.constant dense<0.000000e+00> : vector<5x16xf32>
    %421 = tpu.matmul %420, %408, %cst_134 {dimension_numbers = #tpu.dot_dimension_numbers<[1], [0], [0], [1], [0, 0, 1, 1], [], []>} : vector<5x5xf32>, vector<5x16xf32>, vector<5x16xf32> -> vector<5x16xf32>
    %422 = vector.extract_strided_slice %371 {offsets = [0, 48], sizes = [5, 16], strides = [1, 1]} : vector<5x64xf32> to vector<5x16xf32>
    %423 = vector.extract_strided_slice %372 {offsets = [0, 48], sizes = [5, 16], strides = [1, 1]} : vector<5x64xf32> to vector<5x16xf32>
    %424 = vector.extract_strided_slice %373 {offsets = [0, 48], sizes = [5, 16], strides = [1, 1]} : vector<5x64xf32> to vector<5x16xf32>
    %cst_135 = arith.constant dense<0.000000e+00> : vector<5x5xf32>
    %425 = tpu.matmul %422, %423, %cst_135 {dimension_numbers = #tpu.dot_dimension_numbers<[1], [1], [0], [0], [0, 0, 1, 0], [], []>} : vector<5x16xf32>, vector<5x16xf32>, vector<5x5xf32> -> vector<5x5xf32>
    %cst_136 = arith.constant 2.500000e-01 : f32
    %426 = vector.broadcast %cst_136 : f32 to vector<5x5xf32>
    %427 = arith.mulf %425, %426 : vector<5x5xf32>
    %cst_137 = arith.constant dense<0xFF800000> : vector<5xf32>
    %428 = vector.multi_reduction <maximumf>, %427, %cst_137 [1] : vector<5x5xf32> to vector<5xf32>
    %429 = vector.shape_cast %428 : vector<5xf32> to vector<5x1xf32>
    %430 = vector.broadcast %429 : vector<5x1xf32> to vector<5x5xf32>
    %431 = arith.subf %427, %430 : vector<5x5xf32>
    %432 = math.exp %431 : vector<5x5xf32>
    %cst_138 = arith.constant dense<0.000000e+00> : vector<5xf32>
    %433 = vector.multi_reduction <add>, %432, %cst_138 [1] : vector<5x5xf32> to vector<5xf32>
    %434 = vector.shape_cast %433 : vector<5xf32> to vector<5x1xf32>
    %435 = vector.broadcast %434 : vector<5x1xf32> to vector<5x5xf32>
    %436 = arith.divf %432, %435 : vector<5x5xf32>
    %cst_139 = arith.constant dense<0.000000e+00> : vector<5x16xf32>
    %437 = tpu.matmul %436, %424, %cst_139 {dimension_numbers = #tpu.dot_dimension_numbers<[1], [0], [0], [1], [0, 0, 1, 1], [], []>} : vector<5x5xf32>, vector<5x16xf32>, vector<5x16xf32> -> vector<5x16xf32>
    %438 = tpu.concatenate %389, %405, %421, %437 in 1 : vector<5x16xf32>, vector<5x16xf32>, vector<5x16xf32>, vector<5x16xf32> -> vector<5x64xf32>
    %439 = tpu.concatenate %370, %438 in 0 : vector<5x64xf32>, vector<5x64xf32> -> vector<10x64xf32>
    %c1_140 = arith.constant 1 : index
    %c0_141 = arith.constant 0 : index
    %c0_142 = arith.constant 0 : index
    %440 = vector.load %arg6[%c1_140, %c0_141, %c0_142] : memref<2x64x64xf32, #tpu.memory_space<vmem>>, vector<1x64x64xf32>
    %441 = vector.shape_cast %440 : vector<1x64x64xf32> to vector<64x64xf32>
    %cst_143 = arith.constant dense<0.000000e+00> : vector<10x64xf32>
    %442 = tpu.matmul %439, %441, %cst_143 {dimension_numbers = #tpu.dot_dimension_numbers<[1], [0], [0], [1], [0, 0, 1, 1], [], []>} : vector<10x64xf32>, vector<64x64xf32>, vector<10x64xf32> -> vector<10x64xf32>
    %443 = arith.addf %265, %442 : vector<10x64xf32>
    %444 = vector.broadcast %271 : vector<1x64xf32> to vector<10x64xf32>
    %445 = arith.addf %443, %444 : vector<10x64xf32>
    %cst_144 = arith.constant dense<0.000000e+00> : vector<10xf32>
    %446 = vector.multi_reduction <add>, %445, %cst_144 [1] : vector<10x64xf32> to vector<10xf32>
    %447 = vector.shape_cast %446 : vector<10xf32> to vector<10x1xf32>
    %cst_145 = arith.constant 6.400000e+01 : f32
    %448 = vector.broadcast %cst_145 : f32 to vector<10x1xf32>
    %449 = arith.divf %447, %448 : vector<10x1xf32>
    %450 = vector.broadcast %449 : vector<10x1xf32> to vector<10x64xf32>
    %451 = arith.subf %445, %450 : vector<10x64xf32>
    %452 = arith.mulf %451, %451 : vector<10x64xf32>
    %cst_146 = arith.constant dense<0.000000e+00> : vector<10xf32>
    %453 = vector.multi_reduction <add>, %452, %cst_146 [1] : vector<10x64xf32> to vector<10xf32>
    %454 = vector.shape_cast %453 : vector<10xf32> to vector<10x1xf32>
    %cst_147 = arith.constant 6.400000e+01 : f32
    %455 = vector.broadcast %cst_147 : f32 to vector<10x1xf32>
    %456 = arith.divf %454, %455 : vector<10x1xf32>
    %457 = vector.broadcast %449 : vector<10x1xf32> to vector<10x64xf32>
    %458 = arith.subf %445, %457 : vector<10x64xf32>
    %cst_148 = arith.constant 9.99999996E-13 : f32
    %459 = vector.broadcast %cst_148 : f32 to vector<10x1xf32>
    %460 = arith.addf %456, %459 : vector<10x1xf32>
    %461 = math.rsqrt %460 : vector<10x1xf32>
    %462 = vector.broadcast %461 : vector<10x1xf32> to vector<10x64xf32>
    %463 = arith.mulf %458, %462 : vector<10x64xf32>
    %464 = vector.broadcast %272 : vector<1x64xf32> to vector<10x64xf32>
    %465 = arith.mulf %463, %464 : vector<10x64xf32>
    %466 = vector.broadcast %273 : vector<1x64xf32> to vector<10x64xf32>
    %467 = arith.addf %465, %466 : vector<10x64xf32>
    %c1_149 = arith.constant 1 : index
    %c0_150 = arith.constant 0 : index
    %c0_151 = arith.constant 0 : index
    %468 = vector.load %arg7[%c1_149, %c0_150, %c0_151] : memref<2x64x128xf32, #tpu.memory_space<vmem>>, vector<1x64x128xf32>
    %469 = vector.shape_cast %468 : vector<1x64x128xf32> to vector<64x128xf32>
    %cst_152 = arith.constant dense<0.000000e+00> : vector<10x128xf32>
    %470 = tpu.matmul %467, %469, %cst_152 {dimension_numbers = #tpu.dot_dimension_numbers<[1], [0], [0], [1], [0, 0, 1, 1], [], []>} : vector<10x64xf32>, vector<64x128xf32>, vector<10x128xf32> -> vector<10x128xf32>
    %471 = vector.broadcast %274 : vector<1x128xf32> to vector<10x128xf32>
    %472 = arith.addf %470, %471 : vector<10x128xf32>
    %cst_153 = arith.constant 5.000000e-01 : f32
    %473 = vector.broadcast %cst_153 : f32 to vector<10x128xf32>
    %474 = arith.mulf %473, %472 : vector<10x128xf32>
    %cst_154 = arith.constant 0.707106769 : f32
    %475 = vector.broadcast %cst_154 : f32 to vector<10x128xf32>
    %476 = arith.mulf %472, %475 : vector<10x128xf32>
    %477 = math.absf %476 : vector<10x128xf32>
    %cst_155 = arith.constant 0.327591091 : f32
    %478 = vector.broadcast %cst_155 : f32 to vector<10x128xf32>
    %479 = arith.mulf %478, %477 : vector<10x128xf32>
    %cst_156 = arith.constant 1.000000e+00 : f32
    %480 = vector.broadcast %cst_156 : f32 to vector<10x128xf32>
    %481 = arith.addf %480, %479 : vector<10x128xf32>
    %cst_157 = arith.constant 1.000000e+00 : f32
    %482 = vector.broadcast %cst_157 : f32 to vector<10x128xf32>
    %483 = arith.divf %482, %481 : vector<10x128xf32>
    %cst_158 = arith.constant 1.06140542 : f32
    %484 = vector.broadcast %cst_158 : f32 to vector<10x128xf32>
    %485 = arith.mulf %484, %483 : vector<10x128xf32>
    %cst_159 = arith.constant -1.45315206 : f32
    %486 = vector.broadcast %cst_159 : f32 to vector<10x128xf32>
    %487 = arith.addf %485, %486 : vector<10x128xf32>
    %488 = arith.mulf %487, %483 : vector<10x128xf32>
    %cst_160 = arith.constant 1.42141378 : f32
    %489 = vector.broadcast %cst_160 : f32 to vector<10x128xf32>
    %490 = arith.addf %488, %489 : vector<10x128xf32>
    %491 = arith.mulf %490, %483 : vector<10x128xf32>
    %cst_161 = arith.constant -0.284496725 : f32
    %492 = vector.broadcast %cst_161 : f32 to vector<10x128xf32>
    %493 = arith.addf %491, %492 : vector<10x128xf32>
    %494 = arith.mulf %493, %483 : vector<10x128xf32>
    %cst_162 = arith.constant 0.254829586 : f32
    %495 = vector.broadcast %cst_162 : f32 to vector<10x128xf32>
    %496 = arith.addf %494, %495 : vector<10x128xf32>
    %497 = arith.mulf %496, %483 : vector<10x128xf32>
    %cst_163 = arith.constant 0.000000e+00 : f32
    %498 = vector.broadcast %cst_163 : f32 to vector<10x128xf32>
    %499 = arith.subf %498, %477 : vector<10x128xf32>
    %500 = arith.mulf %499, %477 : vector<10x128xf32>
    %501 = math.exp %500 : vector<10x128xf32>
    %502 = arith.mulf %497, %501 : vector<10x128xf32>
    %cst_164 = arith.constant 1.000000e+00 : f32
    %503 = vector.broadcast %cst_164 : f32 to vector<10x128xf32>
    %504 = arith.subf %503, %502 : vector<10x128xf32>
    %cst_165 = arith.constant 0.000000e+00 : f32
    %505 = vector.broadcast %cst_165 : f32 to vector<10x128xf32>
    %506 = arith.cmpf olt, %476, %505 : vector<10x128xf32>
    %cst_166 = arith.constant 0.000000e+00 : f32
    %507 = vector.broadcast %cst_166 : f32 to vector<10x128xf32>
    %508 = arith.subf %507, %504 : vector<10x128xf32>
    %509 = arith.select %506, %508, %504 : vector<10x128xi1>, vector<10x128xf32>
    %cst_167 = arith.constant 1.000000e+00 : f32
    %510 = vector.broadcast %cst_167 : f32 to vector<10x128xf32>
    %511 = arith.addf %510, %509 : vector<10x128xf32>
    %512 = arith.mulf %474, %511 : vector<10x128xf32>
    %c1_168 = arith.constant 1 : index
    %c0_169 = arith.constant 0 : index
    %c0_170 = arith.constant 0 : index
    %513 = vector.load %arg8[%c1_168, %c0_169, %c0_170] : memref<2x128x64xf32, #tpu.memory_space<vmem>>, vector<1x128x64xf32>
    %514 = vector.shape_cast %513 : vector<1x128x64xf32> to vector<128x64xf32>
    %cst_171 = arith.constant dense<0.000000e+00> : vector<10x64xf32>
    %515 = tpu.matmul %512, %514, %cst_171 {dimension_numbers = #tpu.dot_dimension_numbers<[1], [0], [0], [1], [0, 0, 1, 1], [], []>} : vector<10x128xf32>, vector<128x64xf32>, vector<10x64xf32> -> vector<10x64xf32>
    %516 = arith.addf %445, %515 : vector<10x64xf32>
    %517 = vector.broadcast %275 : vector<1x64xf32> to vector<10x64xf32>
    %518 = arith.addf %516, %517 : vector<10x64xf32>
    %c0_172 = arith.constant 0 : index
    %c0_173 = arith.constant 0 : index
    %519 = vector.load %arg9[%c0_172, %c0_173] : memref<3x128xf32, #tpu.memory_space<vmem>>, vector<3x128xf32>
    %520 = vector.extract_strided_slice %519 {offsets = [0, 0], sizes = [1, 64], strides = [1, 1]} : vector<3x128xf32> to vector<1x64xf32>
    %521 = vector.extract_strided_slice %519 {offsets = [1, 0], sizes = [1, 64], strides = [1, 1]} : vector<3x128xf32> to vector<1x64xf32>
    %522 = vector.extract_strided_slice %519 {offsets = [2, 0], sizes = [1, 128], strides = [1, 1]} : vector<3x128xf32> to vector<1x128xf32>
    %cst_174 = arith.constant dense<0.000000e+00> : vector<10xf32>
    %523 = vector.multi_reduction <add>, %518, %cst_174 [1] : vector<10x64xf32> to vector<10xf32>
    %524 = vector.shape_cast %523 : vector<10xf32> to vector<10x1xf32>
    %cst_175 = arith.constant 6.400000e+01 : f32
    %525 = vector.broadcast %cst_175 : f32 to vector<10x1xf32>
    %526 = arith.divf %524, %525 : vector<10x1xf32>
    %527 = vector.broadcast %526 : vector<10x1xf32> to vector<10x64xf32>
    %528 = arith.subf %518, %527 : vector<10x64xf32>
    %529 = arith.mulf %528, %528 : vector<10x64xf32>
    %cst_176 = arith.constant dense<0.000000e+00> : vector<10xf32>
    %530 = vector.multi_reduction <add>, %529, %cst_176 [1] : vector<10x64xf32> to vector<10xf32>
    %531 = vector.shape_cast %530 : vector<10xf32> to vector<10x1xf32>
    %cst_177 = arith.constant 6.400000e+01 : f32
    %532 = vector.broadcast %cst_177 : f32 to vector<10x1xf32>
    %533 = arith.divf %531, %532 : vector<10x1xf32>
    %534 = vector.broadcast %526 : vector<10x1xf32> to vector<10x64xf32>
    %535 = arith.subf %518, %534 : vector<10x64xf32>
    %cst_178 = arith.constant 9.99999996E-13 : f32
    %536 = vector.broadcast %cst_178 : f32 to vector<10x1xf32>
    %537 = arith.addf %533, %536 : vector<10x1xf32>
    %538 = math.rsqrt %537 : vector<10x1xf32>
    %539 = vector.broadcast %538 : vector<10x1xf32> to vector<10x64xf32>
    %540 = arith.mulf %535, %539 : vector<10x64xf32>
    %541 = vector.broadcast %520 : vector<1x64xf32> to vector<10x64xf32>
    %542 = arith.mulf %540, %541 : vector<10x64xf32>
    %543 = vector.broadcast %521 : vector<1x64xf32> to vector<10x64xf32>
    %544 = arith.addf %542, %543 : vector<10x64xf32>
    %545 = vector.extract_strided_slice %544 {offsets = [0, 0], sizes = [1, 64], strides = [1, 1]} : vector<10x64xf32> to vector<1x64xf32>
    %546 = vector.extract_strided_slice %544 {offsets = [5, 0], sizes = [1, 64], strides = [1, 1]} : vector<10x64xf32> to vector<1x64xf32>
    %547 = tpu.concatenate %545, %546 in 0 : vector<1x64xf32>, vector<1x64xf32> -> vector<2x64xf32>
    %c0_179 = arith.constant 0 : index
    %c0_180 = arith.constant 0 : index
    %548 = vector.load %arg10[%c0_179, %c0_180] : memref<64x128xf32, #tpu.memory_space<vmem>>, vector<64x128xf32>
    %cst_181 = arith.constant dense<0.000000e+00> : vector<2x128xf32>
    %549 = tpu.matmul %547, %548, %cst_181 {dimension_numbers = #tpu.dot_dimension_numbers<[1], [0], [0], [1], [0, 0, 1, 1], [], []>} : vector<2x64xf32>, vector<64x128xf32>, vector<2x128xf32> -> vector<2x128xf32>
    %550 = vector.broadcast %522 : vector<1x128xf32> to vector<2x128xf32>
    %551 = arith.addf %549, %550 : vector<2x128xf32>
    %c0_182 = arith.constant 0 : index
    %c0_183 = arith.constant 0 : index
    %552 = vector.load %arg11[%c0_182, %c0_183] : memref<2x128xf32, #tpu.memory_space<vmem>>, vector<2x128xf32>
    tpu.vector_store %arg11[%c0_182, %c0_183], %551 {strides = array<i32>} : memref<2x128xf32, #tpu.memory_space<vmem>>, vector<2x128xf32>,
    return
  }
  func.func @transform_0(%arg0: i32) -> (i32, i32) {
    %c0_i32 = arith.constant 0 : i32
    %c0_i32_0 = arith.constant 0 : i32
    %c0_i32_1 = arith.constant 0 : i32
    return %c0_i32, %c0_i32_0 : i32, i32
  }
  func.func @transform_1(%arg0: i32) -> (i32, i32) {
    %c0_i32 = arith.constant 0 : i32
    %c0_i32_0 = arith.constant 0 : i32
    %c0_i32_1 = arith.constant 0 : i32
    return %c0_i32, %c0_i32_0 : i32, i32
  }
  func.func @transform_2(%arg0: i32) -> (i32, i32) {
    %c0_i32 = arith.constant 0 : i32
    %c0_i32_0 = arith.constant 0 : i32
    %c0_i32_1 = arith.constant 0 : i32
    return %c0_i32, %c0_i32_0 : i32, i32
  }
  func.func @transform_3(%arg0: i32) -> (i32, i32, i32) {
    %c0_i32 = arith.constant 0 : i32
    %c0_i32_0 = arith.constant 0 : i32
    %c0_i32_1 = arith.constant 0 : i32
    %c0_i32_2 = arith.constant 0 : i32
    return %c0_i32, %c0_i32_0, %c0_i32_1 : i32, i32, i32
  }
  func.func @transform_4(%arg0: i32) -> (i32, i32, i32) {
    %c0_i32 = arith.constant 0 : i32
    %c0_i32_0 = arith.constant 0 : i32
    %c0_i32_1 = arith.constant 0 : i32
    %c0_i32_2 = arith.constant 0 : i32
    return %c0_i32, %c0_i32_0, %c0_i32_1 : i32, i32, i32
  }
  func.func @transform_5(%arg0: i32) -> (i32, i32, i32) {
    %c0_i32 = arith.constant 0 : i32
    %c0_i32_0 = arith.constant 0 : i32
    %c0_i32_1 = arith.constant 0 : i32
    %c0_i32_2 = arith.constant 0 : i32
    return %c0_i32, %c0_i32_0, %c0_i32_1 : i32, i32, i32
  }
  func.func @transform_6(%arg0: i32) -> (i32, i32, i32) {
    %c0_i32 = arith.constant 0 : i32
    %c0_i32_0 = arith.constant 0 : i32
    %c0_i32_1 = arith.constant 0 : i32
    %c0_i32_2 = arith.constant 0 : i32
    return %c0_i32, %c0_i32_0, %c0_i32_1 : i32, i32, i32
  }
  func.func @transform_7(%arg0: i32) -> (i32, i32, i32) {
    %c0_i32 = arith.constant 0 : i32
    %c0_i32_0 = arith.constant 0 : i32
    %c0_i32_1 = arith.constant 0 : i32
    %c0_i32_2 = arith.constant 0 : i32
    return %c0_i32, %c0_i32_0, %c0_i32_1 : i32, i32, i32
  }
  func.func @transform_8(%arg0: i32) -> (i32, i32) {
    %c0_i32 = arith.constant 0 : i32
    %c0_i32_0 = arith.constant 0 : i32
    %c0_i32_1 = arith.constant 0 : i32
    return %c0_i32, %c0_i32_0 : i32, i32
  }
  func.func @transform_9(%arg0: i32) -> (i32, i32) {
    %c0_i32 = arith.constant 0 : i32
    %c0_i32_0 = arith.constant 0 : i32
    %c0_i32_1 = arith.constant 0 : i32
    return %c0_i32, %c0_i32_0 : i32, i32
  }
  func.func @transform_10(%arg0: i32) -> (i32, i32) {
    %c0_i32 = arith.constant 0 : i32
    %c0_i32_0 = arith.constant 0 : i32
    %c0_i32_1 = arith.constant 0 : i32
    return %c0_i32, %c0_i32_0 : i32, i32
  }
}

</mosaic_0001>

<llo_original>
// kernel: vit_forward.1
$region0: #{vit_forward.1}
  #allocation0 [shape = 'u32[]', space=smem, size = 0x4, offset = 0x4, fixed_abs, tag = 'smem constant byte address 0x4 - core index']
  #allocation1 [shape = 'u32[72,128]{1,0:T(1,128)}', space=vmem, size = 0x9000, scoped, tag = 'internal scratch']
  %s0 = inlined_call_operand.vmem [shape: f32[8,192], index: 0, kind: input, shape index: {}]
  %s1 = inlined_call_operand.vmem [shape: f32[192,64], index: 1, kind: input, shape index: {}]
  %s2 = inlined_call_operand.vmem [shape: f32[5,64], index: 2, kind: input, shape index: {}]
  %s3 = inlined_call_operand.vmem [shape: f32[2,8,192], index: 3, kind: input, shape index: {}]
  %s4 = inlined_call_operand.vmem [shape: f32[2,64,192], index: 4, kind: input, shape index: {}]
  %s5 = inlined_call_operand.vmem [shape: f32[2,64,64], index: 5, kind: input, shape index: {}]
  %s6 = inlined_call_operand.vmem [shape: f32[2,64,128], index: 6, kind: input, shape index: {}]
  %s7 = inlined_call_operand.vmem [shape: f32[2,128,64], index: 7, kind: input, shape index: {}]
  %s8 = inlined_call_operand.vmem [shape: f32[3,128], index: 8, kind: input, shape index: {}]
  %s9 = inlined_call_operand.vmem [shape: f32[64,128], index: 9, kind: input, shape index: {}]
  %s10 = inlined_call_operand.hbm [shape: f32[2,128], index: 10, kind: output, shape index: {}]
  %s11 = sld [smem:[#allocation0]]
  $region50: #{vit_forward.1} parent=0
    _
  %s13 = ssub.s32 1, %s11
  %s14 = scalar_select 0, %s13, %s11
  $region1: #{vit_forward.1} parent=0
    #allocation2 [shape = 'u8[1024]{0}', space=vmem, size = 0x400, scoped, tag = 'output window, operand 0, single buffered']
    #allocation3 [shape = 's32[1]{0}', space=sflag, size = 0x4, scoped, tag = 'scoped memory for vit_forward.1']
    %15 = vsyncpa [#allocation3], 0
    // Predicated region
    $region2: #{vit_forward.1} parent=1 // pred_check
      _
    $region3: #{vit_forward.1} parent=1 // pred_check_branch
      %17 = sbr.rel (0) target = $region5
    $region4: #{vit_forward.1} parent=1 // pred_region
      _
    $region5: #{vit_forward.1} parent=1 // pred_fallthru
      _
    // Predicated region
    $region6: #{vit_forward.1} parent=1 // pred_check
      _
    $region7: #{vit_forward.1} parent=1 // pred_check_branch
      %19 = sbr.rel (0) target = $region9
    $region8: #{vit_forward.1} parent=1 // pred_region
      _
    $region9: #{vit_forward.1} parent=1 // pred_fallthru
      _
    // Predicated region
    $region10: #{vit_forward.1} parent=1 // pred_check
      _
    $region11: #{vit_forward.1} parent=1 // pred_check_branch
      %21 = sbr.rel (0) target = $region13
    $region12: #{vit_forward.1} parent=1 // pred_region
      _
    $region13: #{vit_forward.1} parent=1 // pred_fallthru
      _
    // Predicated region
    $region14: #{vit_forward.1} parent=1 // pred_check
      _
    $region15: #{vit_forward.1} parent=1 // pred_check_branch
      %23 = sbr.rel (0) target = $region17
    $region16: #{vit_forward.1} parent=1 // pred_region
      _
    $region17: #{vit_forward.1} parent=1 // pred_fallthru
      _
    // Predicated region
    $region18: #{vit_forward.1} parent=1 // pred_check
      _
    $region19: #{vit_forward.1} parent=1 // pred_check_branch
      %25 = sbr.rel (0) target = $region21
    $region20: #{vit_forward.1} parent=1 // pred_region
      _
    $region21: #{vit_forward.1} parent=1 // pred_fallthru
      _
    // Predicated region
    $region22: #{vit_forward.1} parent=1 // pred_check
      _
    $region23: #{vit_forward.1} parent=1 // pred_check_branch
      %27 = sbr.rel (0) target = $region25
    $region24: #{vit_forward.1} parent=1 // pred_region
      _
    $region25: #{vit_forward.1} parent=1 // pred_fallthru
      _
    // Predicated region
    $region26: #{vit_forward.1} parent=1 // pred_check
      _
    $region27: #{vit_forward.1} parent=1 // pred_check_branch
      %29 = sbr.rel (0) target = $region29
    $region28: #{vit_forward.1} parent=1 // pred_region
      _
    $region29: #{vit_forward.1} parent=1 // pred_fallthru
      _
    // Predicated region
    $region30: #{vit_forward.1} parent=1 // pred_check
      _
    $region31: #{vit_forward.1} parent=1 // pred_check_branch
      %31 = sbr.rel (0) target = $region33
    $region32: #{vit_forward.1} parent=1 // pred_region
      _
    $region33: #{vit_forward.1} parent=1 // pred_fallthru
      _
    // Predicated region
    $region34: #{vit_forward.1} parent=1 // pred_check
      _
    $region35: #{vit_forward.1} parent=1 // pred_check_branch
      %33 = sbr.rel (0) target = $region37
    $region36: #{vit_forward.1} parent=1 // pred_region
      _
    $region37: #{vit_forward.1} parent=1 // pred_fallthru
      _
    // Predicated region
    $region38: #{vit_forward.1} parent=1 // pred_check
      _
    $region39: #{vit_forward.1} parent=1 // pred_check_branch
      %35 = sbr.rel (0) target = $region41
    $region40: #{vit_forward.1} parent=1 // pred_region
      _
    $region41: #{vit_forward.1} parent=1 // pred_fallthru
      _
    %v36 = vld [vmem:[%s0] sm:$0xff]
    %v37 = vld [vmem:[%s0 + $0x8] sm:$0xff]
    %v38 = vld [vmem:[%s1] sm:$0xff]
    %v39 = vld [vmem:[%s1 + $0x8] sm:$0xff]
    %v40 = vld [vmem:[%s1 + $0x10] sm:$0xff]
    %v41 = vld [vmem:[%s1 + $0x18] sm:$0xff]
    %v42 = vld [vmem:[%s1 + $0x20] sm:$0xff]
    %v43 = vld [vmem:[%s1 + $0x28] sm:$0xff]
    %v44 = vld [vmem:[%s1 + $0x30] sm:$0xff]
    %v45 = vld [vmem:[%s1 + $0x38] sm:$0xff]
    %v46 = vld [vmem:[%s1 + $0x40] sm:$0xff]
    %v47 = vld [vmem:[%s1 + $0x48] sm:$0xff]
    %v48 = vld [vmem:[%s1 + $0x50] sm:$0xff]
    %v49 = vld [vmem:[%s1 + $0x58] sm:$0xff]
    %v50 = vld [vmem:[%s1 + $0x60] sm:$0xff]
    %v51 = vld [vmem:[%s1 + $0x68] sm:$0xff]
    %v52 = vld [vmem:[%s1 + $0x70] sm:$0xff]
    %v53 = vld [vmem:[%s1 + $0x78] sm:$0xff]
    %v54 = vld [vmem:[%s1 + $0x80] sm:$0xff]
    %v55 = vld [vmem:[%s1 + $0x88] sm:$0xff]
    %v56 = vld [vmem:[%s1 + $0x90] sm:$0xff]
    %v57 = vld [vmem:[%s1 + $0x98] sm:$0xff]
    %v58 = vld [vmem:[%s1 + $0xa0] sm:$0xff]
    %v59 = vld [vmem:[%s1 + $0xa8] sm:$0xff]
    %v60 = vld [vmem:[%s1 + $0xb0] sm:$0xff]
    %v61 = vld [vmem:[%s1 + $0xb8] sm:$0xff]
    %vm62 = vcmask 523264
    %v64 = vsel %vm62, %v37, 0
    %66 = vmatpush.msra.mxu0 %v53
    %67 = vmatpush.msra.mxu0 %v52
    %68 = vmatpush.msra.mxu0 %v51
    %69 = vmatpush.msra.mxu0 %v50
    %70 = vmatpush.msra.mxu0 %v49
    %71 = vmatpush.msra.mxu0 %v48
    %72 = vmatpush.msra.mxu0 %v47
    %73 = vmatpush.msra.mxu0 %v46
    %74 = vmatpush.msra.mxu0 %v45
    %75 = vmatpush.msra.mxu0 %v44
    %76 = vmatpush.msra.mxu0 %v43
    %77 = vmatpush.msra.mxu0 %v42
    %78 = vmatpush.msra.mxu0 %v41
    %79 = vmatpush.msra.mxu0 %v40
    %80 = vmatpush.msra.mxu0 %v39
    %81 = vmatpush.msra.mxu0 %v38
    %82 = vmatmul.f32.gmra.mxu0 %v36
    %v83 = vpop.f32.mrf.mxu0
    %v84 = vadd.f32 0.0, %v83
    %85 = vdwg.mxu0
    %86 = vmatpush.msra.mxu0 0.0
    %87 = vmatpush.msra.mxu0 0.0
    %88 = vmatpush.msra.mxu0 0.0
    %89 = vmatpush.msra.mxu0 0.0
    %90 = vmatpush.msra.mxu0 0.0
    %91 = vmatpush.msra.mxu0 0.0
    %92 = vmatpush.msra.mxu0 0.0
    %93 = vmatpush.msra.mxu0 0.0
    %94 = vmatpush.msra.mxu0 %v61
    %95 = vmatpush.msra.mxu0 %v60
    %96 = vmatpush.msra.mxu0 %v59
    %97 = vmatpush.msra.mxu0 %v58
    %98 = vmatpush.msra.mxu0 %v57
    %99 = vmatpush.msra.mxu0 %v56
    %100 = vmatpush.msra.mxu0 %v55
    %101 = vmatpush.msra.mxu0 %v54
    %102 = vmatmul.f32.gmra.mxu0 %v64
    %v103 = vpop.f32.mrf.mxu0
    %v104 = vadd.f32 %v84, %v103
    %105 = vdwg.mxu0
    %v106 = vld [vmem:[%s2] sm:$0x1f]
    %v108 = vrot.slane %v106, 1
    %v110 = vadd.f32 %v104, %v108
    %v111 = vrot.slane %v106, 5
    %v113 = vadd.f32 %v104, %v111
    %v115 = vrot.slane %v110, 7
    %v117 = vrot.slane %v106, 3
    %v120 = vrot.slane %v113, 6
    %vm122 = vcmask 1040384
    %v123 = vsel %vm122, %v106, %v115
    %vm124 = vcmask 1044480
    %v125 = vsel %vm124, %v123, %v117
    %vm126 = vcmask 1045504
    %v127 = vsel %vm126, %v125, %v120
    %v128 = vld [vmem:[%s3] sm:$0xff]
    %v129 = vld [vmem:[%s3 + $0x8] sm:$0xff]
    %v130 = vsel %vm62, %v127, 0.0
    %131 = vadd.xlane.f32.xlu0 %v130
    %v132 = vpop.xlane.xlu0 %131
    %vm133 = vcmask 517120
    %v134 = vsel %vm133, %v120, 0.0
    %135 = vadd.xlane.f32.xlu0 %v134
    %v136 = vpop.xlane.xlu0 %135
    %v137 = vrcp.pop 64.0
    %v138 = vmul.f32 64.0, %v137
    %v139 = vsub.f32 1.0, %v138
    %v140 = vmul.f32 %v137, %v139
    %v141 = vadd.f32 %v137, %v140
    %vm142 = vweird.f32 %v137
    %v143 = vsel %vm142, %v137, %v141
    %v144 = vmul.f32 %v132, %v143
    %v145 = vmul.f32 %v136, %v143
    %v146 = vsub.f32 %v127, %v144
    %v147 = vsub.f32 %v120, %v145
    %v148 = vmul.f32 %v146, %v146
    %v149 = vmul.f32 %v147, %v147
    %v150 = vsel %vm62, %v148, 0.0
    %151 = vadd.xlane.f32.xlu0 %v150
    %v152 = vpop.xlane.xlu0 %151
    %v153 = vsel %vm133, %v149, 0.0
    %154 = vadd.xlane.f32.xlu0 %v153
    %v155 = vpop.xlane.xlu0 %154
    %v156 = vmul.f32 %v152, %v143
    %v157 = vmul.f32 %v155, %v143
    %v158 = vadd.f32 %v156, 1e-12
    %v159 = vadd.f32 %v157, 1e-12
    %v160 = vrsqrt.pop %v158
    %v161 = vmul.f32 %v160, %v158
    %v162 = vmul.f32 %v161, %v160
    %v163 = vmul.f32 0.5, %v162
    %v164 = vsub.f32 1.5, %v163
    %v165 = vmul.f32 %v160, %v164
    %vm166 = vweird.f32 %v158
    %vm167 = vweird.f32 %v160
    %vm168 = vmor %vm166, %vm167
    %v169 = vsel %vm168, %v160, %v165
    %v170 = vrsqrt.pop %v159
    %v171 = vmul.f32 %v170, %v159
    %v172 = vmul.f32 %v171, %v170
    %v173 = vmul.f32 0.5, %v172
    %v174 = vsub.f32 1.5, %v173
    %v175 = vmul.f32 %v170, %v174
    %vm176 = vweird.f32 %v159
    %vm177 = vweird.f32 %v170
    %vm178 = vmor %vm176, %vm177
    %v179 = vsel %vm178, %v170, %v175
    %v180 = vmul.f32 %v146, %v169
    %v181 = vmul.f32 %v147, %v179
    %v182 = vperm.slane %v128, 0
    %v183 = vmul.f32 %v180, %v182
    %v184 = vmul.f32 %v181, %v182
    %v185 = vperm.slane %v128, 1
    %v186 = vadd.f32 %v183, %v185
    %v187 = vadd.f32 %v184, %v185
    %v188 = vld [vmem:[%s4] sm:$0xff]
    %v189 = vld [vmem:[%s4 + $0x8] sm:$0xff]
    %v190 = vld [vmem:[%s4 + $0x10] sm:$0xff]
    %v191 = vld [vmem:[%s4 + $0x18] sm:$0xff]
    %v192 = vld [vmem:[%s4 + $0x20] sm:$0xff]
    %v193 = vld [vmem:[%s4 + $0x28] sm:$0xff]
    %v194 = vld [vmem:[%s4 + $0x30] sm:$0xff]
    %v195 = vld [vmem:[%s4 + $0x38] sm:$0xff]
    %v196 = vld [vmem:[%s4 + $0x40] sm:$0xff]
    %v197 = vld [vmem:[%s4 + $0x48] sm:$0xff]
    %v198 = vld [vmem:[%s4 + $0x50] sm:$0xff]
    %v199 = vld [vmem:[%s4 + $0x58] sm:$0xff]
    %v200 = vld [vmem:[%s4 + $0x60] sm:$0xff]
    %v201 = vld [vmem:[%s4 + $0x68] sm:$0xff]
    %v202 = vld [vmem:[%s4 + $0x70] sm:$0xff]
    %v203 = vld [vmem:[%s4 + $0x78] sm:$0xff]
    %v204 = vperm.slane %v128, 2
    %v205 = vperm.slane %v129, 2
    %v207 = vsel %vm62, %v186, 0
    %v210 = vsel %vm62, %v187, 0
    %212 = vmatpush.msra.mxu0 0.0
    %213 = vmatpush.msra.mxu0 0.0
    %214 = vmatpush.msra.mxu0 0.0
    %215 = vmatpush.msra.mxu0 0.0
    %216 = vmatpush.msra.mxu0 0.0
    %217 = vmatpush.msra.mxu0 0.0
    %218 = vmatpush.msra.mxu0 0.0
    %219 = vmatpush.msra.mxu0 0.0
    %220 = vmatpush.msra.mxu0 %v202
    %221 = vmatpush.msra.mxu0 %v200
    %222 = vmatpush.msra.mxu0 %v198
    %223 = vmatpush.msra.mxu0 %v196
    %224 = vmatpush.msra.mxu0 %v194
    %225 = vmatpush.msra.mxu0 %v192
    %226 = vmatpush.msra.mxu0 %v190
    %227 = vmatpush.msra.mxu0 %v188
    %228 = vmatmul.f32.gmra.mxu0 %v207
    %v229 = vpop.f32.mrf.mxu0
    %v230 = vadd.f32 %v204, %v229
    %231 = vmatmul.f32.gmra.mxu0 %v210
    %v232 = vpop.f32.mrf.mxu0
    %v233 = vadd.f32 %v204, %v232
    %234 = vdwg.mxu0
    %235 = vmatpush.msra.mxu0 0.0
    %236 = vmatpush.msra.mxu0 0.0
    %237 = vmatpush.msra.mxu0 0.0
    %238 = vmatpush.msra.mxu0 0.0
    %239 = vmatpush.msra.mxu0 0.0
    %240 = vmatpush.msra.mxu0 0.0
    %241 = vmatpush.msra.mxu0 0.0
    %242 = vmatpush.msra.mxu0 0.0
    %243 = vmatpush.msra.mxu0 %v203
    %244 = vmatpush.msra.mxu0 %v201
    %245 = vmatpush.msra.mxu0 %v199
    %246 = vmatpush.msra.mxu0 %v197
    %247 = vmatpush.msra.mxu0 %v195
    %248 = vmatpush.msra.mxu0 %v193
    %249 = vmatpush.msra.mxu0 %v191
    %250 = vmatpush.msra.mxu0 %v189
    %251 = vmatmul.f32.gmra.mxu0 %v207
    %v252 = vpop.f32.mrf.mxu0
    %v253 = vadd.f32 %v205, %v252
    %254 = vmatmul.f32.gmra.mxu0 %v210
    %v255 = vpop.f32.mrf.mxu0
    %v256 = vadd.f32 %v205, %v255
    %257 = vdwg.mxu0
    %259 = vrot.lane.b32.xlu0 %v230, 64
    %v260 = vpop.permute.xlu0 %259
    %vm261 = vcmask 130048
    %v262 = vsel %vm261, %v230, 0
    %v264 = vsel %vm261, %v260, 0
    %266 = vmatpush.xpose.msra.mxu0 0.0
    %267 = vmatpush.xpose.msra.mxu0 0.0
    %268 = vmatpush.xpose.msra.mxu0 0.0
    %269 = vmatpush.xpose.msra.mxu0 0.0
    %270 = vmatpush.xpose.msra.mxu0 0.0
    %271 = vmatpush.xpose.msra.mxu0 0.0
    %272 = vmatpush.xpose.msra.mxu0 0.0
    %273 = vmatpush.xpose.msra.mxu0 0.0
    %274 = vmatpush.xpose.msra.mxu0 0.0
    %275 = vmatpush.xpose.msra.mxu0 0.0
    %276 = vmatpush.xpose.msra.mxu0 0.0
    %277 = vmatpush.xpose.msra.mxu0 0.0
    %278 = vmatpush.xpose.msra.mxu0 0.0
    %279 = vmatpush.xpose.msra.mxu0 0.0
    %280 = vmatpush.xpose.msra.mxu0 0.0
    %281 = vmatpush.xpose.msra.mxu0 %v264
    %282 = vmatmul.f32.gmra.mxu0 %v262
    %v283 = vpop.f32.mrf.mxu0
    %v284 = vadd.f32 0.0, %v283
    %285 = vdwg.mxu0
    %v286 = vmul.f32 %v284, 0.25
    %vm287 = vcmask 36864
    %v288 = vsel %vm287, %v286, -inf
    %289 = vmax.xlane.f32.xlu0 %v288
    %v290 = vpop.xlane.xlu0 %289
    %v291 = vsub.f32 %v286, %v290
    %v292 = vmul.f32 %v291, 1.442695
    %v293 = vpow.pop %v292
    %v294 = vsel %vm287, %v293, 0.0
    %295 = vadd.xlane.f32.xlu0 %v294
    %v296 = vpop.xlane.xlu0 %295
    %v297 = vrcp.pop %v296
    %v298 = vmul.f32 %v296, %v297
    %v299 = vsub.f32 1.0, %v298
    %v300 = vmul.f32 %v297, %v299
    %v301 = vadd.f32 %v297, %v300
    %vm302 = vweird.f32 %v296
    %vm303 = vweird.f32 %v297
    %vm304 = vmor %vm302, %vm303
    %v305 = vsel %vm304, %v297, %v301
    %v306 = vand.u32 2147483647, %v296
    %vm307 = vcmp.eq.f32.partialorder %v306, 8.507059e+37
    %v308 = vand.u32 %v296, 2147483648
    %v309 = vor.u32 1.1754944e-38, %v308
    %v310 = vsel %vm307, %v309, %v305
    %v311 = vmul.f32 %v293, %v310
    %vm312 = vcmask 39936
    %v314 = vsel %vm312, %v311, 0
    %v317 = vsel %vm124, %v253, 0
    %319 = vmatpush.msra.mxu0 0.0
    %320 = vmatpush.msra.mxu0 0.0
    %321 = vmatpush.msra.mxu0 0.0
    %322 = vmatpush.msra.mxu0 0.0
    %323 = vmatpush.msra.mxu0 0.0
    %324 = vmatpush.msra.mxu0 0.0
    %325 = vmatpush.msra.mxu0 0.0
    %326 = vmatpush.msra.mxu0 0.0
    %327 = vmatpush.msra.mxu0 0.0
    %328 = vmatpush.msra.mxu0 0.0
    %329 = vmatpush.msra.mxu0 0.0
    %330 = vmatpush.msra.mxu0 0.0
    %331 = vmatpush.msra.mxu0 0.0
    %332 = vmatpush.msra.mxu0 0.0
    %333 = vmatpush.msra.mxu0 0.0
    %334 = vmatpush.msra.mxu0 %v317
    %335 = vmatmul.f32.gmra.mxu0 %v314
    %v336 = vpop.f32.mrf.mxu0
    %v337 = vadd.f32 0.0, %v336
    %338 = vdwg.mxu0
    %339 = vrot.lane.b32.xlu0 %v230, 112
    %v340 = vpop.permute.xlu0 %339
    %341 = vrot.lane.b32.xlu0 %v230, 48
    %v342 = vpop.permute.xlu0 %341
    %v343 = vsel %vm261, %v340, 0
    %v345 = vsel %vm261, %v342, 0
    %347 = vmatpush.xpose.msra.mxu0 0.0
    %348 = vmatpush.xpose.msra.mxu0 0.0
    %349 = vmatpush.xpose.msra.mxu0 0.0
    %350 = vmatpush.xpose.msra.mxu0 0.0
    %351 = vmatpush.xpose.msra.mxu0 0.0
    %352 = vmatpush.xpose.msra.mxu0 0.0
    %353 = vmatpush.xpose.msra.mxu0 0.0
    %354 = vmatpush.xpose.msra.mxu0 0.0
    %355 = vmatpush.xpose.msra.mxu0 0.0
    %356 = vmatpush.xpose.msra.mxu0 0.0
    %357 = vmatpush.xpose.msra.mxu0 0.0
    %358 = vmatpush.xpose.msra.mxu0 0.0
    %359 = vmatpush.xpose.msra.mxu0 0.0
    %360 = vmatpush.xpose.msra.mxu0 0.0
    %361 = vmatpush.xpose.msra.mxu0 0.0
    %362 = vmatpush.xpose.msra.mxu0 %v345
    %363 = vmatmul.f32.gmra.mxu0 %v343
    %v364 = vpop.f32.mrf.mxu0
    %v365 = vadd.f32 0.0, %v364
    %366 = vdwg.mxu0
    %v367 = vmul.f32 %v365, 0.25
    %v368 = vsel %vm287, %v367, -inf
    %369 = vmax.xlane.f32.xlu0 %v368
    %v370 = vpop.xlane.xlu0 %369
    %v371 = vsub.f32 %v367, %v370
    %v372 = vmul.f32 %v371, 1.442695
    %v373 = vpow.pop %v372
    %v374 = vsel %vm287, %v373, 0.0
    %375 = vadd.xlane.f32.xlu0 %v374
    %v376 = vpop.xlane.xlu0 %375
    %v377 = vrcp.pop %v376
    %v378 = vmul.f32 %v376, %v377
    %v379 = vsub.f32 1.0, %v378
    %v380 = vmul.f32 %v377, %v379
    %v381 = vadd.f32 %v377, %v380
    %vm382 = vweird.f32 %v376
    %vm383 = vweird.f32 %v377
    %vm384 = vmor %vm382, %vm383
    %v385 = vsel %vm384, %v377, %v381
    %v386 = vand.u32 2147483647, %v376
    %vm387 = vcmp.eq.f32.partialorder %v386, 8.507059e+37
    %v388 = vand.u32 %v376, 2147483648
    %v389 = vor.u32 1.1754944e-38, %v388
    %v390 = vsel %vm387, %v389, %v385
    %v391 = vmul.f32 %v373, %v390
    %392 = vrot.lane.b32.xlu0 %v253, 112
    %v393 = vpop.permute.xlu0 %392
    %v395 = vsel %vm312, %v391, 0
    %v397 = vsel %vm124, %v393, 0
    %399 = vmatpush.msra.mxu0 0.0
    %400 = vmatpush.msra.mxu0 0.0
    %401 = vmatpush.msra.mxu0 0.0
    %402 = vmatpush.msra.mxu0 0.0
    %403 = vmatpush.msra.mxu0 0.0
    %404 = vmatpush.msra.mxu0 0.0
    %405 = vmatpush.msra.mxu0 0.0
    %406 = vmatpush.msra.mxu0 0.0
    %407 = vmatpush.msra.mxu0 0.0
    %408 = vmatpush.msra.mxu0 0.0
    %409 = vmatpush.msra.mxu0 0.0
    %410 = vmatpush.msra.mxu0 0.0
    %411 = vmatpush.msra.mxu0 0.0
    %412 = vmatpush.msra.mxu0 0.0
    %413 = vmatpush.msra.mxu0 0.0
    %414 = vmatpush.msra.mxu0 %v397
    %415 = vmatmul.f32.gmra.mxu0 %v395
    %v416 = vpop.f32.mrf.mxu0
    %v417 = vadd.f32 0.0, %v416
    %418 = vdwg.mxu0
    %419 = vrot.lane.b32.xlu0 %v230, 96
    %v420 = vpop.permute.xlu0 %419
    %421 = vrot.lane.b32.xlu0 %v230, 32
    %v422 = vpop.permute.xlu0 %421
    %v423 = vsel %vm261, %v420, 0
    %v425 = vsel %vm261, %v422, 0
    %427 = vmatpush.xpose.msra.mxu0 0.0
    %428 = vmatpush.xpose.msra.mxu0 0.0
    %429 = vmatpush.xpose.msra.mxu0 0.0
    %430 = vmatpush.xpose.msra.mxu0 0.0
    %431 = vmatpush.xpose.msra.mxu0 0.0
    %432 = vmatpush.xpose.msra.mxu0 0.0
    %433 = vmatpush.xpose.msra.mxu0 0.0
    %434 = vmatpush.xpose.msra.mxu0 0.0
    %435 = vmatpush.xpose.msra.mxu0 0.0
    %436 = vmatpush.xpose.msra.mxu0 0.0
    %437 = vmatpush.xpose.msra.mxu0 0.0
    %438 = vmatpush.xpose.msra.mxu0 0.0
    %439 = vmatpush.xpose.msra.mxu0 0.0
    %440 = vmatpush.xpose.msra.mxu0 0.0
    %441 = vmatpush.xpose.msra.mxu0 0.0
    %442 = vmatpush.xpose.msra.mxu0 %v425
    %443 = vmatmul.f32.gmra.mxu0 %v423
    %v444 = vpop.f32.mrf.mxu0
    %v445 = vadd.f32 0.0, %v444
    %446 = vdwg.mxu0
    %v447 = vmul.f32 %v445, 0.25
    %v448 = vsel %vm287, %v447, -inf
    %449 = vmax.xlane.f32.xlu0 %v448
    %v450 = vpop.xlane.xlu0 %449
    %v451 = vsub.f32 %v447, %v450
    %v452 = vmul.f32 %v451, 1.442695
    %v453 = vpow.pop %v452
    %v454 = vsel %vm287, %v453, 0.0
    %455 = vadd.xlane.f32.xlu0 %v454
    %v456 = vpop.xlane.xlu0 %455
    %v457 = vrcp.pop %v456
    %v458 = vmul.f32 %v456, %v457
    %v459 = vsub.f32 1.0, %v458
    %v460 = vmul.f32 %v457, %v459
    %v461 = vadd.f32 %v457, %v460
    %vm462 = vweird.f32 %v456
    %vm463 = vweird.f32 %v457
    %vm464 = vmor %vm462, %vm463
    %v465 = vsel %vm464, %v457, %v461
    %v466 = vand.u32 2147483647, %v456
    %vm467 = vcmp.eq.f32.partialorder %v466, 8.507059e+37
    %v468 = vand.u32 %v456, 2147483648
    %v469 = vor.u32 1.1754944e-38, %v468
    %v470 = vsel %vm467, %v469, %v465
    %v471 = vmul.f32 %v453, %v470
    %472 = vrot.lane.b32.xlu0 %v253, 96
    %v473 = vpop.permute.xlu0 %472
    %v475 = vsel %vm312, %v471, 0
    %v477 = vsel %vm124, %v473, 0
    %479 = vmatpush.msra.mxu0 0.0
    %480 = vmatpush.msra.mxu0 0.0
    %481 = vmatpush.msra.mxu0 0.0
    %482 = vmatpush.msra.mxu0 0.0
    %483 = vmatpush.msra.mxu0 0.0
    %484 = vmatpush.msra.mxu0 0.0
    %485 = vmatpush.msra.mxu0 0.0
    %486 = vmatpush.msra.mxu0 0.0
    %487 = vmatpush.msra.mxu0 0.0
    %488 = vmatpush.msra.mxu0 0.0
    %489 = vmatpush.msra.mxu0 0.0
    %490 = vmatpush.msra.mxu0 0.0
    %491 = vmatpush.msra.mxu0 0.0
    %492 = vmatpush.msra.mxu0 0.0
    %493 = vmatpush.msra.mxu0 0.0
    %494 = vmatpush.msra.mxu0 %v477
    %495 = vmatmul.f32.gmra.mxu0 %v475
    %v496 = vpop.f32.mrf.mxu0
    %v497 = vadd.f32 0.0, %v496
    %498 = vdwg.mxu0
    %499 = vrot.lane.b32.xlu0 %v230, 80
    %v500 = vpop.permute.xlu0 %499
    %501 = vrot.lane.b32.xlu0 %v230, 16
    %v502 = vpop.permute.xlu0 %501
    %v503 = vsel %vm261, %v500, 0
    %v505 = vsel %vm261, %v502, 0
    %507 = vmatpush.xpose.msra.mxu0 0.0
    %508 = vmatpush.xpose.msra.mxu0 0.0
    %509 = vmatpush.xpose.msra.mxu0 0.0
    %510 = vmatpush.xpose.msra.mxu0 0.0
    %511 = vmatpush.xpose.msra.mxu0 0.0
    %512 = vmatpush.xpose.msra.mxu0 0.0
    %513 = vmatpush.xpose.msra.mxu0 0.0
    %514 = vmatpush.xpose.msra.mxu0 0.0
    %515 = vmatpush.xpose.msra.mxu0 0.0
    %516 = vmatpush.xpose.msra.mxu0 0.0
    %517 = vmatpush.xpose.msra.mxu0 0.0
    %518 = vmatpush.xpose.msra.mxu0 0.0
    %519 = vmatpush.xpose.msra.mxu0 0.0
    %520 = vmatpush.xpose.msra.mxu0 0.0
    %521 = vmatpush.xpose.msra.mxu0 0.0
    %522 = vmatpush.xpose.msra.mxu0 %v505
    %523 = vmatmul.f32.gmra.mxu0 %v503
    %v524 = vpop.f32.mrf.mxu0
    %v525 = vadd.f32 0.0, %v524
    %526 = vdwg.mxu0
    %v527 = vmul.f32 %v525, 0.25
    %v528 = vsel %vm287, %v527, -inf
    %529 = vmax.xlane.f32.xlu0 %v528
    %v530 = vpop.xlane.xlu0 %529
    %v531 = vsub.f32 %v527, %v530
    %v532 = vmul.f32 %v531, 1.442695
    %v533 = vpow.pop %v532
    %v534 = vsel %vm287, %v533, 0.0
    %535 = vadd.xlane.f32.xlu0 %v534
    %v536 = vpop.xlane.xlu0 %535
    %v537 = vrcp.pop %v536
    %v538 = vmul.f32 %v536, %v537
    %v539 = vsub.f32 1.0, %v538
    %v540 = vmul.f32 %v537, %v539
    %v541 = vadd.f32 %v537, %v540
    %vm542 = vweird.f32 %v536
    %vm543 = vweird.f32 %v537
    %vm544 = vmor %vm542, %vm543
    %v545 = vsel %vm544, %v537, %v541
    %v546 = vand.u32 2147483647, %v536
    %vm547 = vcmp.eq.f32.partialorder %v546, 8.507059e+37
    %v548 = vand.u32 %v536, 2147483648
    %v549 = vor.u32 1.1754944e-38, %v548
    %v550 = vsel %vm547, %v549, %v545
    %v551 = vmul.f32 %v533, %v550
    %552 = vrot.lane.b32.xlu0 %v253, 80
    %v553 = vpop.permute.xlu0 %552
    %v555 = vsel %vm312, %v551, 0
    %v557 = vsel %vm124, %v553, 0
    %559 = vmatpush.msra.mxu0 0.0
    %560 = vmatpush.msra.mxu0 0.0
    %561 = vmatpush.msra.mxu0 0.0
    %562 = vmatpush.msra.mxu0 0.0
    %563 = vmatpush.msra.mxu0 0.0
    %564 = vmatpush.msra.mxu0 0.0
    %565 = vmatpush.msra.mxu0 0.0
    %566 = vmatpush.msra.mxu0 0.0
    %567 = vmatpush.msra.mxu0 0.0
    %568 = vmatpush.msra.mxu0 0.0
    %569 = vmatpush.msra.mxu0 0.0
    %570 = vmatpush.msra.mxu0 0.0
    %571 = vmatpush.msra.mxu0 0.0
    %572 = vmatpush.msra.mxu0 0.0
    %573 = vmatpush.msra.mxu0 0.0
    %574 = vmatpush.msra.mxu0 %v557
    %575 = vmatmul.f32.gmra.mxu0 %v555
    %v576 = vpop.f32.mrf.mxu0
    %v577 = vadd.f32 0.0, %v576
    %578 = vdwg.mxu0
    %580 = vrot.lane.b32.xlu0 %v417, 16
    %v581 = vpop.permute.xlu0 %580
    %584 = vrot.lane.b32.xlu0 %v497, 32
    %v585 = vpop.permute.xlu0 %584
    %588 = vrot.lane.b32.xlu0 %v577, 48
    %v589 = vpop.permute.xlu0 %588
    %v591 = vsel %vm261, %v337, %v581
    %vm592 = vcmask 261120
    %v593 = vsel %vm592, %v591, %v585
    %vm594 = vcmask 392192
    %v595 = vsel %vm594, %v593, %v589
    %vm597 = vcmask 1042432
    %v598 = vrot.slane %v230, 5
    %v599 = vrot.slane %v233, 5
    %v600 = vsel %vm597, %v598, %v599
    %601 = vrot.lane.b32.xlu0 %v600, 64
    %v602 = vpop.permute.xlu0 %601
    %v603 = vsel %vm261, %v600, 0
    %v605 = vsel %vm261, %v602, 0
    %607 = vmatpush.xpose.msra.mxu0 0.0
    %608 = vmatpush.xpose.msra.mxu0 0.0
    %609 = vmatpush.xpose.msra.mxu0 0.0
    %610 = vmatpush.xpose.msra.mxu0 0.0
    %611 = vmatpush.xpose.msra.mxu0 0.0
    %612 = vmatpush.xpose.msra.mxu0 0.0
    %613 = vmatpush.xpose.msra.mxu0 0.0
    %614 = vmatpush.xpose.msra.mxu0 0.0
    %615 = vmatpush.xpose.msra.mxu0 0.0
    %616 = vmatpush.xpose.msra.mxu0 0.0
    %617 = vmatpush.xpose.msra.mxu0 0.0
    %618 = vmatpush.xpose.msra.mxu0 0.0
    %619 = vmatpush.xpose.msra.mxu0 0.0
    %620 = vmatpush.xpose.msra.mxu0 0.0
    %621 = vmatpush.xpose.msra.mxu0 0.0
    %622 = vmatpush.xpose.msra.mxu0 %v605
    %623 = vmatmul.f32.gmra.mxu0 %v603
    %v624 = vpop.f32.mrf.mxu0
    %v625 = vadd.f32 0.0, %v624
    %626 = vdwg.mxu0
    %v627 = vmul.f32 %v625, 0.25
    %v628 = vsel %vm287, %v627, -inf
    %629 = vmax.xlane.f32.xlu0 %v628
    %v630 = vpop.xlane.xlu0 %629
    %v631 = vsub.f32 %v627, %v630
    %v632 = vmul.f32 %v631, 1.442695
    %v633 = vpow.pop %v632
    %v634 = vsel %vm287, %v633, 0.0
    %635 = vadd.xlane.f32.xlu0 %v634
    %v636 = vpop.xlane.xlu0 %635
    %v637 = vrcp.pop %v636
    %v638 = vmul.f32 %v636, %v637
    %v639 = vsub.f32 1.0, %v638
    %v640 = vmul.f32 %v637, %v639
    %v641 = vadd.f32 %v637, %v640
    %vm642 = vweird.f32 %v636
    %vm643 = vweird.f32 %v637
    %vm644 = vmor %vm642, %vm643
    %v645 = vsel %vm644, %v637, %v641
    %v646 = vand.u32 2147483647, %v636
    %vm647 = vcmp.eq.f32.partialorder %v646, 8.507059e+37
    %v648 = vand.u32 %v636, 2147483648
    %v649 = vor.u32 1.1754944e-38, %v648
    %v650 = vsel %vm647, %v649, %v645
    %v651 = vmul.f32 %v633, %v650
    %v653 = vrot.slane %v253, 5
    %v654 = vrot.slane %v256, 5
    %v655 = vsel %vm597, %v653, %v654
    %v657 = vsel %vm312, %v651, 0
    %v659 = vsel %vm124, %v655, 0
    %661 = vmatpush.msra.mxu0 0.0
    %662 = vmatpush.msra.mxu0 0.0
    %663 = vmatpush.msra.mxu0 0.0
    %664 = vmatpush.msra.mxu0 0.0
    %665 = vmatpush.msra.mxu0 0.0
    %666 = vmatpush.msra.mxu0 0.0
    %667 = vmatpush.msra.mxu0 0.0
    %668 = vmatpush.msra.mxu0 0.0
    %669 = vmatpush.msra.mxu0 0.0
    %670 = vmatpush.msra.mxu0 0.0
    %671 = vmatpush.msra.mxu0 0.0
    %672 = vmatpush.msra.mxu0 0.0
    %673 = vmatpush.msra.mxu0 0.0
    %674 = vmatpush.msra.mxu0 0.0
    %675 = vmatpush.msra.mxu0 0.0
    %676 = vmatpush.msra.mxu0 %v659
    %677 = vmatmul.f32.gmra.mxu0 %v657
    %v678 = vpop.f32.mrf.mxu0
    %v679 = vadd.f32 0.0, %v678
    %680 = vdwg.mxu0
    %681 = vrot.lane.b32.xlu0 %v600, 112
    %v682 = vpop.permute.xlu0 %681
    %683 = vrot.lane.b32.xlu0 %v600, 48
    %v684 = vpop.permute.xlu0 %683
    %v685 = vsel %vm261, %v682, 0
    %v687 = vsel %vm261, %v684, 0
    %689 = vmatpush.xpose.msra.mxu0 0.0
    %690 = vmatpush.xpose.msra.mxu0 0.0
    %691 = vmatpush.xpose.msra.mxu0 0.0
    %692 = vmatpush.xpose.msra.mxu0 0.0
    %693 = vmatpush.xpose.msra.mxu0 0.0
    %694 = vmatpush.xpose.msra.mxu0 0.0
    %695 = vmatpush.xpose.msra.mxu0 0.0
    %696 = vmatpush.xpose.msra.mxu0 0.0
    %697 = vmatpush.xpose.msra.mxu0 0.0
    %698 = vmatpush.xpose.msra.mxu0 0.0
    %699 = vmatpush.xpose.msra.mxu0 0.0
    %700 = vmatpush.xpose.msra.mxu0 0.0
    %701 = vmatpush.xpose.msra.mxu0 0.0
    %702 = vmatpush.xpose.msra.mxu0 0.0
    %703 = vmatpush.xpose.msra.mxu0 0.0
    %704 = vmatpush.xpose.msra.mxu0 %v687
    %705 = vmatmul.f32.gmra.mxu0 %v685
    %v706 = vpop.f32.mrf.mxu0
    %v707 = vadd.f32 0.0, %v706
    %708 = vdwg.mxu0
    %v709 = vmul.f32 %v707, 0.25
    %v710 = vsel %vm287, %v709, -inf
    %711 = vmax.xlane.f32.xlu0 %v710
    %v712 = vpop.xlane.xlu0 %711
    %v713 = vsub.f32 %v709, %v712
    %v714 = vmul.f32 %v713, 1.442695
    %v715 = vpow.pop %v714
    %v716 = vsel %vm287, %v715, 0.0
    %717 = vadd.xlane.f32.xlu0 %v716
    %v718 = vpop.xlane.xlu0 %717
    %v719 = vrcp.pop %v718
    %v720 = vmul.f32 %v718, %v719
    %v721 = vsub.f32 1.0, %v720
    %v722 = vmul.f32 %v719, %v721
    %v723 = vadd.f32 %v719, %v722
    %vm724 = vweird.f32 %v718
    %vm725 = vweird.f32 %v719
    %vm726 = vmor %vm724, %vm725
    %v727 = vsel %vm726, %v719, %v723
    %v728 = vand.u32 2147483647, %v718
    %vm729 = vcmp.eq.f32.partialorder %v728, 8.507059e+37
    %v730 = vand.u32 %v718, 2147483648
    %v731 = vor.u32 1.1754944e-38, %v730
    %v732 = vsel %vm729, %v731, %v727
    %v733 = vmul.f32 %v715, %v732
    %734 = vrot.lane.b32.xlu0 %v655, 112
    %v735 = vpop.permute.xlu0 %734
    %v737 = vsel %vm312, %v733, 0
    %v739 = vsel %vm124, %v735, 0
    %741 = vmatpush.msra.mxu0 0.0
    %742 = vmatpush.msra.mxu0 0.0
    %743 = vmatpush.msra.mxu0 0.0
    %744 = vmatpush.msra.mxu0 0.0
    %745 = vmatpush.msra.mxu0 0.0
    %746 = vmatpush.msra.mxu0 0.0
    %747 = vmatpush.msra.mxu0 0.0
    %748 = vmatpush.msra.mxu0 0.0
    %749 = vmatpush.msra.mxu0 0.0
    %750 = vmatpush.msra.mxu0 0.0
    %751 = vmatpush.msra.mxu0 0.0
    %752 = vmatpush.msra.mxu0 0.0
    %753 = vmatpush.msra.mxu0 0.0
    %754 = vmatpush.msra.mxu0 0.0
    %755 = vmatpush.msra.mxu0 0.0
    %756 = vmatpush.msra.mxu0 %v739
    %757 = vmatmul.f32.gmra.mxu0 %v737
    %v758 = vpop.f32.mrf.mxu0
    %v759 = vadd.f32 0.0, %v758
    %760 = vdwg.mxu0
    %761 = vrot.lane.b32.xlu0 %v600, 96
    %v762 = vpop.permute.xlu0 %761
    %763 = vrot.lane.b32.xlu0 %v600, 32
    %v764 = vpop.permute.xlu0 %763
    %v765 = vsel %vm261, %v762, 0
    %v767 = vsel %vm261, %v764, 0
    %769 = vmatpush.xpose.msra.mxu0 0.0
    %770 = vmatpush.xpose.msra.mxu0 0.0
    %771 = vmatpush.xpose.msra.mxu0 0.0
    %772 = vmatpush.xpose.msra.mxu0 0.0
    %773 = vmatpush.xpose.msra.mxu0 0.0
    %774 = vmatpush.xpose.msra.mxu0 0.0
    %775 = vmatpush.xpose.msra.mxu0 0.0
    %776 = vmatpush.xpose.msra.mxu0 0.0
    %777 = vmatpush.xpose.msra.mxu0 0.0
    %778 = vmatpush.xpose.msra.mxu0 0.0
    %779 = vmatpush.xpose.msra.mxu0 0.0
    %780 = vmatpush.xpose.msra.mxu0 0.0
    %781 = vmatpush.xpose.msra.mxu0 0.0
    %782 = vmatpush.xpose.msra.mxu0 0.0
    %783 = vmatpush.xpose.msra.mxu0 0.0
    %784 = vmatpush.xpose.msra.mxu0 %v767
    %785 = vmatmul.f32.gmra.mxu0 %v765
    %v786 = vpop.f32.mrf.mxu0
    %v787 = vadd.f32 0.0, %v786
    %788 = vdwg.mxu0
    %v789 = vmul.f32 %v787, 0.25
    %v790 = vsel %vm287, %v789, -inf
    %791 = vmax.xlane.f32.xlu0 %v790
    %v792 = vpop.xlane.xlu0 %791
    %v793 = vsub.f32 %v789, %v792
    %v794 = vmul.f32 %v793, 1.442695
    %v795 = vpow.pop %v794
    %v796 = vsel %vm287, %v795, 0.0
    %797 = vadd.xlane.f32.xlu0 %v796
    %v798 = vpop.xlane.xlu0 %797
    %v799 = vrcp.pop %v798
    %v800 = vmul.f32 %v798, %v799
    %v801 = vsub.f32 1.0, %v800
    %v802 = vmul.f32 %v799, %v801
    %v803 = vadd.f32 %v799, %v802
    %vm804 = vweird.f32 %v798
    %vm805 = vweird.f32 %v799
    %vm806 = vmor %vm804, %vm805
    %v807 = vsel %vm806, %v799, %v803
    %v808 = vand.u32 2147483647, %v798
    %vm809 = vcmp.eq.f32.partialorder %v808, 8.507059e+37
    %v810 = vand.u32 %v798, 2147483648
    %v811 = vor.u32 1.1754944e-38, %v810
    %v812 = vsel %vm809, %v811, %v807
    %v813 = vmul.f32 %v795, %v812
    %814 = vrot.lane.b32.xlu0 %v655, 96
    %v815 = vpop.permute.xlu0 %814
    %v817 = vsel %vm312, %v813, 0
    %v819 = vsel %vm124, %v815, 0
    %821 = vmatpush.msra.mxu0 0.0
    %822 = vmatpush.msra.mxu0 0.0
    %823 = vmatpush.msra.mxu0 0.0
    %824 = vmatpush.msra.mxu0 0.0
    %825 = vmatpush.msra.mxu0 0.0
    %826 = vmatpush.msra.mxu0 0.0
    %827 = vmatpush.msra.mxu0 0.0
    %828 = vmatpush.msra.mxu0 0.0
    %829 = vmatpush.msra.mxu0 0.0
    %830 = vmatpush.msra.mxu0 0.0
    %831 = vmatpush.msra.mxu0 0.0
    %832 = vmatpush.msra.mxu0 0.0
    %833 = vmatpush.msra.mxu0 0.0
    %834 = vmatpush.msra.mxu0 0.0
    %835 = vmatpush.msra.mxu0 0.0
    %836 = vmatpush.msra.mxu0 %v819
    %837 = vmatmul.f32.gmra.mxu0 %v817
    %v838 = vpop.f32.mrf.mxu0
    %v839 = vadd.f32 0.0, %v838
    %840 = vdwg.mxu0
    %841 = vrot.lane.b32.xlu0 %v600, 80
    %v842 = vpop.permute.xlu0 %841
    %843 = vrot.lane.b32.xlu0 %v600, 16
    %v844 = vpop.permute.xlu0 %843
    %v845 = vsel %vm261, %v842, 0
    %v847 = vsel %vm261, %v844, 0
    %849 = vmatpush.xpose.msra.mxu0 0.0
    %850 = vmatpush.xpose.msra.mxu0 0.0
    %851 = vmatpush.xpose.msra.mxu0 0.0
    %852 = vmatpush.xpose.msra.mxu0 0.0
    %853 = vmatpush.xpose.msra.mxu0 0.0
    %854 = vmatpush.xpose.msra.mxu0 0.0
    %855 = vmatpush.xpose.msra.mxu0 0.0
    %856 = vmatpush.xpose.msra.mxu0 0.0
    %857 = vmatpush.xpose.msra.mxu0 0.0
    %858 = vmatpush.xpose.msra.mxu0 0.0
    %859 = vmatpush.xpose.msra.mxu0 0.0
    %860 = vmatpush.xpose.msra.mxu0 0.0
    %861 = vmatpush.xpose.msra.mxu0 0.0
    %862 = vmatpush.xpose.msra.mxu0 0.0
    %863 = vmatpush.xpose.msra.mxu0 0.0
    %864 = vmatpush.xpose.msra.mxu0 %v847
    %865 = vmatmul.f32.gmra.mxu0 %v845
    %v866 = vpop.f32.mrf.mxu0
    %v867 = vadd.f32 0.0, %v866
    %868 = vdwg.mxu0
    %v869 = vmul.f32 %v867, 0.25
    %v870 = vsel %vm287, %v869, -inf
    %871 = vmax.xlane.f32.xlu0 %v870
    %v872 = vpop.xlane.xlu0 %871
    %v873 = vsub.f32 %v869, %v872
    %v874 = vmul.f32 %v873, 1.442695
    %v875 = vpow.pop %v874
    %v876 = vsel %vm287, %v875, 0.0
    %877 = vadd.xlane.f32.xlu0 %v876
    %v878 = vpop.xlane.xlu0 %877
    %v879 = vrcp.pop %v878
    %v880 = vmul.f32 %v878, %v879
    %v881 = vsub.f32 1.0, %v880
    %v882 = vmul.f32 %v879, %v881
    %v883 = vadd.f32 %v879, %v882
    %vm884 = vweird.f32 %v878
    %vm885 = vweird.f32 %v879
    %vm886 = vmor %vm884, %vm885
    %v887 = vsel %vm886, %v879, %v883
    %v888 = vand.u32 2147483647, %v878
    %vm889 = vcmp.eq.f32.partialorder %v888, 8.507059e+37
    %v890 = vand.u32 %v878, 2147483648
    %v891 = vor.u32 1.1754944e-38, %v890
    %v892 = vsel %vm889, %v891, %v887
    %v893 = vmul.f32 %v875, %v892
    %894 = vrot.lane.b32.xlu0 %v655, 80
    %v895 = vpop.permute.xlu0 %894
    %v897 = vsel %vm312, %v893, 0
    %v899 = vsel %vm124, %v895, 0
    %901 = vmatpush.msra.mxu0 0.0
    %902 = vmatpush.msra.mxu0 0.0
    %903 = vmatpush.msra.mxu0 0.0
    %904 = vmatpush.msra.mxu0 0.0
    %905 = vmatpush.msra.mxu0 0.0
    %906 = vmatpush.msra.mxu0 0.0
    %907 = vmatpush.msra.mxu0 0.0
    %908 = vmatpush.msra.mxu0 0.0
    %909 = vmatpush.msra.mxu0 0.0
    %910 = vmatpush.msra.mxu0 0.0
    %911 = vmatpush.msra.mxu0 0.0
    %912 = vmatpush.msra.mxu0 0.0
    %913 = vmatpush.msra.mxu0 0.0
    %914 = vmatpush.msra.mxu0 0.0
    %915 = vmatpush.msra.mxu0 0.0
    %916 = vmatpush.msra.mxu0 %v899
    %917 = vmatmul.f32.gmra.mxu0 %v897
    %v918 = vpop.f32.mrf.mxu0
    %v919 = vadd.f32 0.0, %v918
    %920 = vdwg.mxu0
    %922 = vrot.lane.b32.xlu0 %v759, 16
    %v923 = vpop.permute.xlu0 %922
    %926 = vrot.lane.b32.xlu0 %v839, 32
    %v927 = vpop.permute.xlu0 %926
    %930 = vrot.lane.b32.xlu0 %v919, 48
    %v931 = vpop.permute.xlu0 %930
    %v933 = vsel %vm261, %v679, %v923
    %v934 = vsel %vm592, %v933, %v927
    %v935 = vsel %vm594, %v934, %v931
    %v937 = vrot.slane %v935, 3
    %v939 = vsel %vm124, %v595, %v937
    %v940 = vld [vmem:[%s5] sm:$0xff]
    %v941 = vld [vmem:[%s5 + $0x8] sm:$0xff]
    %v942 = vld [vmem:[%s5 + $0x10] sm:$0xff]
    %v943 = vld [vmem:[%s5 + $0x18] sm:$0xff]
    %v944 = vld [vmem:[%s5 + $0x20] sm:$0xff]
    %v945 = vld [vmem:[%s5 + $0x28] sm:$0xff]
    %v946 = vld [vmem:[%s5 + $0x30] sm:$0xff]
    %v947 = vld [vmem:[%s5 + $0x38] sm:$0xff]
    %v949 = vsel %vm62, %v939, 0
    %v951 = vsel %vm62, %v937, 0
    %953 = vmatpush.msra.mxu0 0.0
    %954 = vmatpush.msra.mxu0 0.0
    %955 = vmatpush.msra.mxu0 0.0
    %956 = vmatpush.msra.mxu0 0.0
    %957 = vmatpush.msra.mxu0 0.0
    %958 = vmatpush.msra.mxu0 0.0
    %959 = vmatpush.msra.mxu0 0.0
    %960 = vmatpush.msra.mxu0 0.0
    %961 = vmatpush.msra.mxu0 %v947
    %962 = vmatpush.msra.mxu0 %v946
    %963 = vmatpush.msra.mxu0 %v945
    %964 = vmatpush.msra.mxu0 %v944
    %965 = vmatpush.msra.mxu0 %v943
    %966 = vmatpush.msra.mxu0 %v942
    %967 = vmatpush.msra.mxu0 %v941
    %968 = vmatpush.msra.mxu0 %v940
    %969 = vmatmul.f32.gmra.mxu0 %v949
    %v970 = vpop.f32.mrf.mxu0
    %v971 = vadd.f32 0.0, %v970
    %972 = vmatmul.f32.gmra.mxu0 %v951
    %v973 = vpop.f32.mrf.mxu0
    %v974 = vadd.f32 0.0, %v973
    %975 = vdwg.mxu0
    %v976 = vadd.f32 %v127, %v971
    %v977 = vadd.f32 %v120, %v974
    %v978 = vperm.slane %v128, 3
    %v979 = vadd.f32 %v976, %v978
    %v980 = vadd.f32 %v977, %v978
    %v981 = vsel %vm62, %v979, 0.0
    %982 = vadd.xlane.f32.xlu0 %v981
    %v983 = vpop.xlane.xlu0 %982
    %v984 = vsel %vm133, %v980, 0.0
    %985 = vadd.xlane.f32.xlu0 %v984
    %v986 = vpop.xlane.xlu0 %985
    %v987 = vmul.f32 %v983, %v143
    %v988 = vmul.f32 %v986, %v143
    %v989 = vsub.f32 %v979, %v987
    %v990 = vsub.f32 %v980, %v988
    %v991 = vmul.f32 %v989, %v989
    %v992 = vmul.f32 %v990, %v990
    %v993 = vsel %vm62, %v991, 0.0
    %994 = vadd.xlane.f32.xlu0 %v993
    %v995 = vpop.xlane.xlu0 %994
    %v996 = vsel %vm133, %v992, 0.0
    %997 = vadd.xlane.f32.xlu0 %v996
    %v998 = vpop.xlane.xlu0 %997
    %v999 = vmul.f32 %v995, %v143
    %v1000 = vmul.f32 %v998, %v143
    %v1001 = vadd.f32 %v999, 1e-12
    %v1002 = vadd.f32 %v1000, 1e-12
    %v1003 = vrsqrt.pop %v1001
    %v1004 = vmul.f32 %v1003, %v1001
    %v1005 = vmul.f32 %v1004, %v1003
    %v1006 = vmul.f32 0.5, %v1005
    %v1007 = vsub.f32 1.5, %v1006
    %v1008 = vmul.f32 %v1003, %v1007
    %vm1009 = vweird.f32 %v1001
    %vm1010 = vweird.f32 %v1003
    %vm1011 = vmor %vm1009, %vm1010
    %v1012 = vsel %vm1011, %v1003, %v1008
    %v1013 = vrsqrt.pop %v1002
    %v1014 = vmul.f32 %v1013, %v1002
    %v1015 = vmul.f32 %v1014, %v1013
    %v1016 = vmul.f32 0.5, %v1015
    %v1017 = vsub.f32 1.5, %v1016
    %v1018 = vmul.f32 %v1013, %v1017
    %vm1019 = vweird.f32 %v1002
    %vm1020 = vweird.f32 %v1013
    %vm1021 = vmor %vm1019, %vm1020
    %v1022 = vsel %vm1021, %v1013, %v1018
    %v1023 = vmul.f32 %v989, %v1012
    %v1024 = vmul.f32 %v990, %v1022
    %v1025 = vperm.slane %v128, 4
    %v1026 = vmul.f32 %v1023, %v1025
    %v1027 = vmul.f32 %v1024, %v1025
    %v1028 = vperm.slane %v128, 5
    %v1029 = vadd.f32 %v1026, %v1028
    %v1030 = vadd.f32 %v1027, %v1028
    %v1031 = vld [vmem:[%s6] sm:$0xff]
    %v1032 = vld [vmem:[%s6 + $0x8] sm:$0xff]
    %v1033 = vld [vmem:[%s6 + $0x10] sm:$0xff]
    %v1034 = vld [vmem:[%s6 + $0x18] sm:$0xff]
    %v1035 = vld [vmem:[%s6 + $0x20] sm:$0xff]
    %v1036 = vld [vmem:[%s6 + $0x28] sm:$0xff]
    %v1037 = vld [vmem:[%s6 + $0x30] sm:$0xff]
    %v1038 = vld [vmem:[%s6 + $0x38] sm:$0xff]
    %v1039 = vperm.slane %v128, 6
    %v1041 = vsel %vm62, %v1029, 0
    %v1044 = vsel %vm62, %v1030, 0
    %1046 = vmatpush.msra.mxu0 0.0
    %1047 = vmatpush.msra.mxu0 0.0
    %1048 = vmatpush.msra.mxu0 0.0
    %1049 = vmatpush.msra.mxu0 0.0
    %1050 = vmatpush.msra.mxu0 0.0
    %1051 = vmatpush.msra.mxu0 0.0
    %1052 = vmatpush.msra.mxu0 0.0
    %1053 = vmatpush.msra.mxu0 0.0
    %1054 = vmatpush.msra.mxu0 %v1038
    %1055 = vmatpush.msra.mxu0 %v1037
    %1056 = vmatpush.msra.mxu0 %v1036
    %1057 = vmatpush.msra.mxu0 %v1035
    %1058 = vmatpush.msra.mxu0 %v1034
    %1059 = vmatpush.msra.mxu0 %v1033
    %1060 = vmatpush.msra.mxu0 %v1032
    %1061 = vmatpush.msra.mxu0 %v1031
    %1062 = vmatmul.f32.gmra.mxu0 %v1041
    %v1063 = vpop.f32.mrf.mxu0
    %v1064 = vadd.f32 %v1039, %v1063
    %1065 = vmatmul.f32.gmra.mxu0 %v1044
    %v1066 = vpop.f32.mrf.mxu0
    %v1067 = vadd.f32 %v1039, %v1066
    %1068 = vdwg.mxu0
    %v1069 = vmul.f32 %v1064, 0.5
    %v1070 = vmul.f32 %v1067, 0.5
    %v1071 = vmul.f32 %v1064, 0.70710677
    %v1072 = vmul.f32 %v1067, 0.70710677
    %v1073 = vand.u32 2147483647, %v1071
    %v1074 = vand.u32 2147483647, %v1072
    %v1075 = vmul.f32 %v1073, 0.3275911
    %v1076 = vmul.f32 %v1074, 0.3275911
    %v1077 = vadd.f32 %v1075, 1.0
    %v1078 = vadd.f32 %v1076, 1.0
    %v1079 = vrcp.pop %v1077
    %v1080 = vmul.f32 %v1077, %v1079
    %v1081 = vsub.f32 1.0, %v1080
    %v1082 = vmul.f32 %v1079, %v1081
    %v1083 = vadd.f32 %v1079, %v1082
    %vm1084 = vweird.f32 %v1077
    %vm1085 = vweird.f32 %v1079
    %vm1086 = vmor %vm1084, %vm1085
    %v1087 = vsel %vm1086, %v1079, %v1083
    %v1088 = vand.u32 2147483647, %v1077
    %vm1089 = vcmp.eq.f32.partialorder %v1088, 8.507059e+37
    %v1090 = vand.u32 %v1077, 2147483648
    %v1091 = vor.u32 1.1754944e-38, %v1090
    %v1092 = vsel %vm1089, %v1091, %v1087
    %v1093 = vmul.f32 1.0, %v1092
    %v1094 = vrcp.pop %v1078
    %v1095 = vmul.f32 %v1078, %v1094
    %v1096 = vsub.f32 1.0, %v1095
    %v1097 = vmul.f32 %v1094, %v1096
    %v1098 = vadd.f32 %v1094, %v1097
    %vm1099 = vweird.f32 %v1078
    %vm1100 = vweird.f32 %v1094
    %vm1101 = vmor %vm1099, %vm1100
    %v1102 = vsel %vm1101, %v1094, %v1098
    %v1103 = vand.u32 2147483647, %v1078
    %vm1104 = vcmp.eq.f32.partialorder %v1103, 8.507059e+37
    %v1105 = vand.u32 %v1078, 2147483648
    %v1106 = vor.u32 1.1754944e-38, %v1105
    %v1107 = vsel %vm1104, %v1106, %v1102
    %v1108 = vmul.f32 1.0, %v1107
    %v1109 = vmul.f32 %v1093, 1.0614054
    %v1110 = vmul.f32 %v1108, 1.0614054
    %v1111 = vadd.f32 %v1109, -1.4531521
    %v1112 = vadd.f32 %v1110, -1.4531521
    %v1113 = vmul.f32 %v1111, %v1093
    %v1114 = vmul.f32 %v1112, %v1108
    %v1115 = vadd.f32 %v1113, 1.4214138
    %v1116 = vadd.f32 %v1114, 1.4214138
    %v1117 = vmul.f32 %v1115, %v1093
    %v1118 = vmul.f32 %v1116, %v1108
    %v1119 = vadd.f32 %v1117, -0.28449672
    %v1120 = vadd.f32 %v1118, -0.28449672
    %v1121 = vmul.f32 %v1119, %v1093
    %v1122 = vmul.f32 %v1120, %v1108
    %v1123 = vadd.f32 %v1121, 0.2548296
    %v1124 = vadd.f32 %v1122, 0.2548296
    %v1125 = vmul.f32 %v1123, %v1093
    %v1126 = vmul.f32 %v1124, %v1108
    %v1127 = vsub.f32 0.0, %v1073
    %v1128 = vsub.f32 0.0, %v1074
    %v1129 = vmul.f32 %v1127, %v1073
    %v1130 = vmul.f32 %v1128, %v1074
    %v1131 = vmul.f32 %v1129, 1.442695
    %v1132 = vpow.pop %v1131
    %v1133 = vmul.f32 %v1130, 1.442695
    %v1134 = vpow.pop %v1133
    %v1135 = vmul.f32 %v1125, %v1132
    %v1136 = vmul.f32 %v1126, %v1134
    %v1137 = vsub.f32 1.0, %v1135
    %v1138 = vsub.f32 1.0, %v1136
    %vm1139 = vcmp.lt.f32.partialorder %v1071, 0.0
    %vm1140 = vcmp.lt.f32.partialorder %v1072, 0.0
    %v1141 = vsub.f32 0.0, %v1137
    %v1142 = vsub.f32 0.0, %v1138
    %v1143 = vsel %vm1139, %v1141, %v1137
    %v1144 = vsel %vm1140, %v1142, %v1138
    %v1145 = vadd.f32 %v1143, 1.0
    %v1146 = vadd.f32 %v1144, 1.0
    %v1147 = vmul.f32 %v1069, %v1145
    %v1148 = vmul.f32 %v1070, %v1146
    %v1149 = vld [vmem:[%s7] sm:$0xff]
    %v1150 = vld [vmem:[%s7 + $0x8] sm:$0xff]
    %v1151 = vld [vmem:[%s7 + $0x10] sm:$0xff]
    %v1152 = vld [vmem:[%s7 + $0x18] sm:$0xff]
    %v1153 = vld [vmem:[%s7 + $0x20] sm:$0xff]
    %v1154 = vld [vmem:[%s7 + $0x28] sm:$0xff]
    %v1155 = vld [vmem:[%s7 + $0x30] sm:$0xff]
    %v1156 = vld [vmem:[%s7 + $0x38] sm:$0xff]
    %v1157 = vld [vmem:[%s7 + $0x40] sm:$0xff]
    %v1158 = vld [vmem:[%s7 + $0x48] sm:$0xff]
    %v1159 = vld [vmem:[%s7 + $0x50] sm:$0xff]
    %v1160 = vld [vmem:[%s7 + $0x58] sm:$0xff]
    %v1161 = vld [vmem:[%s7 + $0x60] sm:$0xff]
    %v1162 = vld [vmem:[%s7 + $0x68] sm:$0xff]
    %v1163 = vld [vmem:[%s7 + $0x70] sm:$0xff]
    %v1164 = vld [vmem:[%s7 + $0x78] sm:$0xff]
    %1165 = vmatpush.msra.mxu0 %v1164
    %1166 = vmatpush.msra.mxu0 %v1163
    %1167 = vmatpush.msra.mxu0 %v1162
    %1168 = vmatpush.msra.mxu0 %v1161
    %1169 = vmatpush.msra.mxu0 %v1160
    %1170 = vmatpush.msra.mxu0 %v1159
    %1171 = vmatpush.msra.mxu0 %v1158
    %1172 = vmatpush.msra.mxu0 %v1157
    %1173 = vmatpush.msra.mxu0 %v1156
    %1174 = vmatpush.msra.mxu0 %v1155
    %1175 = vmatpush.msra.mxu0 %v1154
    %1176 = vmatpush.msra.mxu0 %v1153
    %1177 = vmatpush.msra.mxu0 %v1152
    %1178 = vmatpush.msra.mxu0 %v1151
    %1179 = vmatpush.msra.mxu0 %v1150
    %1180 = vmatpush.msra.mxu0 %v1149
    %1181 = vmatmul.f32.gmra.mxu0 %v1147
    %v1182 = vpop.f32.mrf.mxu0
    %v1183 = vadd.f32 0.0, %v1182
    %1184 = vmatmul.f32.gmra.mxu0 %v1148
    %v1185 = vpop.f32.mrf.mxu0
    %v1186 = vadd.f32 0.0, %v1185
    %1187 = vdwg.mxu0
    %v1188 = vadd.f32 %v979, %v1183
    %v1189 = vadd.f32 %v980, %v1186
    %v1190 = vperm.slane %v128, 7
    %v1191 = vadd.f32 %v1188, %v1190
    %v1192 = vadd.f32 %v1189, %v1190
    %s1193 = scalar_lea.vmem %s3, 16
    %v1194 = vld [vmem:[%s1193] sm:$0xff]
    %v1195 = vld [vmem:[%s1193 + $0x8] sm:$0xff]
    %v1196 = vsel %vm62, %v1191, 0.0
    %1197 = vadd.xlane.f32.xlu0 %v1196
    %v1198 = vpop.xlane.xlu0 %1197
    %v1199 = vsel %vm133, %v1192, 0.0
    %1200 = vadd.xlane.f32.xlu0 %v1199
    %v1201 = vpop.xlane.xlu0 %1200
    %v1202 = vmul.f32 %v1198, %v143
    %v1203 = vmul.f32 %v1201, %v143
    %v1204 = vsub.f32 %v1191, %v1202
    %v1205 = vsub.f32 %v1192, %v1203
    %v1206 = vmul.f32 %v1204, %v1204
    %v1207 = vmul.f32 %v1205, %v1205
    %v1208 = vsel %vm62, %v1206, 0.0
    %1209 = vadd.xlane.f32.xlu0 %v1208
    %v1210 = vpop.xlane.xlu0 %1209
    %v1211 = vsel %vm133, %v1207, 0.0
    %1212 = vadd.xlane.f32.xlu0 %v1211
    %v1213 = vpop.xlane.xlu0 %1212
    %v1214 = vmul.f32 %v1210, %v143
    %v1215 = vmul.f32 %v1213, %v143
    %v1216 = vadd.f32 %v1214, 1e-12
    %v1217 = vadd.f32 %v1215, 1e-12
    %v1218 = vrsqrt.pop %v1216
    %v1219 = vmul.f32 %v1218, %v1216
    %v1220 = vmul.f32 %v1219, %v1218
    %v1221 = vmul.f32 0.5, %v1220
    %v1222 = vsub.f32 1.5, %v1221
    %v1223 = vmul.f32 %v1218, %v1222
    %vm1224 = vweird.f32 %v1216
    %vm1225 = vweird.f32 %v1218
    %vm1226 = vmor %vm1224, %vm1225
    %v1227 = vsel %vm1226, %v1218, %v1223
    %v1228 = vrsqrt.pop %v1217
    %v1229 = vmul.f32 %v1228, %v1217
    %v1230 = vmul.f32 %v1229, %v1228
    %v1231 = vmul.f32 0.5, %v1230
    %v1232 = vsub.f32 1.5, %v1231
    %v1233 = vmul.f32 %v1228, %v1232
    %vm1234 = vweird.f32 %v1217
    %vm1235 = vweird.f32 %v1228
    %vm1236 = vmor %vm1234, %vm1235
    %v1237 = vsel %vm1236, %v1228, %v1233
    %v1238 = vmul.f32 %v1204, %v1227
    %v1239 = vmul.f32 %v1205, %v1237
    %v1240 = vperm.slane %v1194, 0
    %v1241 = vmul.f32 %v1238, %v1240
    %v1242 = vmul.f32 %v1239, %v1240
    %v1243 = vperm.slane %v1194, 1
    %v1244 = vadd.f32 %v1241, %v1243
    %v1245 = vadd.f32 %v1242, %v1243
    %s1246 = scalar_lea.vmem %s4, 128
    %v1247 = vld [vmem:[%s1246] sm:$0xff]
    %v1248 = vld [vmem:[%s1246 + $0x8] sm:$0xff]
    %v1249 = vld [vmem:[%s1246 + $0x10] sm:$0xff]
    %v1250 = vld [vmem:[%s1246 + $0x18] sm:$0xff]
    %v1251 = vld [vmem:[%s1246 + $0x20] sm:$0xff]
    %v1252 = vld [vmem:[%s1246 + $0x28] sm:$0xff]
    %v1253 = vld [vmem:[%s1246 + $0x30] sm:$0xff]
    %v1254 = vld [vmem:[%s1246 + $0x38] sm:$0xff]
    %v1255 = vld [vmem:[%s1246 + $0x40] sm:$0xff]
    %v1256 = vld [vmem:[%s1246 + $0x48] sm:$0xff]
    %v1257 = vld [vmem:[%s1246 + $0x50] sm:$0xff]
    %v1258 = vld [vmem:[%s1246 + $0x58] sm:$0xff]
    %v1259 = vld [vmem:[%s1246 + $0x60] sm:$0xff]
    %v1260 = vld [vmem:[%s1246 + $0x68] sm:$0xff]
    %v1261 = vld [vmem:[%s1246 + $0x70] sm:$0xff]
    %v1262 = vld [vmem:[%s1246 + $0x78] sm:$0xff]
    %v1263 = vperm.slane %v1194, 2
    %v1264 = vperm.slane %v1195, 2
    %v1266 = vsel %vm62, %v1244, 0
    %v1269 = vsel %vm62, %v1245, 0
    %1271 = vmatpush.msra.mxu0 0.0
    %1272 = vmatpush.msra.mxu0 0.0
    %1273 = vmatpush.msra.mxu0 0.0
    %1274 = vmatpush.msra.mxu0 0.0
    %1275 = vmatpush.msra.mxu0 0.0
    %1276 = vmatpush.msra.mxu0 0.0
    %1277 = vmatpush.msra.mxu0 0.0
    %1278 = vmatpush.msra.mxu0 0.0
    %1279 = vmatpush.msra.mxu0 %v1261
    %1280 = vmatpush.msra.mxu0 %v1259
    %1281 = vmatpush.msra.mxu0 %v1257
    %1282 = vmatpush.msra.mxu0 %v1255
    %1283 = vmatpush.msra.mxu0 %v1253
    %1284 = vmatpush.msra.mxu0 %v1251
    %1285 = vmatpush.msra.mxu0 %v1249
    %1286 = vmatpush.msra.mxu0 %v1247
    %1287 = vmatmul.f32.gmra.mxu0 %v1266
    %v1288 = vpop.f32.mrf.mxu0
    %v1289 = vadd.f32 %v1263, %v1288
    %1290 = vmatmul.f32.gmra.mxu0 %v1269
    %v1291 = vpop.f32.mrf.mxu0
    %v1292 = vadd.f32 %v1263, %v1291
    %1293 = vdwg.mxu0
    %1294 = vmatpush.msra.mxu0 0.0
    %1295 = vmatpush.msra.mxu0 0.0
    %1296 = vmatpush.msra.mxu0 0.0
    %1297 = vmatpush.msra.mxu0 0.0
    %1298 = vmatpush.msra.mxu0 0.0
    %1299 = vmatpush.msra.mxu0 0.0
    %1300 = vmatpush.msra.mxu0 0.0
    %1301 = vmatpush.msra.mxu0 0.0
    %1302 = vmatpush.msra.mxu0 %v1262
    %1303 = vmatpush.msra.mxu0 %v1260
    %1304 = vmatpush.msra.mxu0 %v1258
    %1305 = vmatpush.msra.mxu0 %v1256
    %1306 = vmatpush.msra.mxu0 %v1254
    %1307 = vmatpush.msra.mxu0 %v1252
    %1308 = vmatpush.msra.mxu0 %v1250
    %1309 = vmatpush.msra.mxu0 %v1248
    %1310 = vmatmul.f32.gmra.mxu0 %v1266
    %v1311 = vpop.f32.mrf.mxu0
    %v1312 = vadd.f32 %v1264, %v1311
    %1313 = vmatmul.f32.gmra.mxu0 %v1269
    %v1314 = vpop.f32.mrf.mxu0
    %v1315 = vadd.f32 %v1264, %v1314
    %1316 = vdwg.mxu0
    %1318 = vrot.lane.b32.xlu0 %v1289, 64
    %v1319 = vpop.permute.xlu0 %1318
    %v1320 = vsel %vm261, %v1289, 0
    %v1322 = vsel %vm261, %v1319, 0
    %1324 = vmatpush.xpose.msra.mxu0 0.0
    %1325 = vmatpush.xpose.msra.mxu0 0.0
    %1326 = vmatpush.xpose.msra.mxu0 0.0
    %1327 = vmatpush.xpose.msra.mxu0 0.0
    %1328 = vmatpush.xpose.msra.mxu0 0.0
    %1329 = vmatpush.xpose.msra.mxu0 0.0
    %1330 = vmatpush.xpose.msra.mxu0 0.0
    %1331 = vmatpush.xpose.msra.mxu0 0.0
    %1332 = vmatpush.xpose.msra.mxu0 0.0
    %1333 = vmatpush.xpose.msra.mxu0 0.0
    %1334 = vmatpush.xpose.msra.mxu0 0.0
    %1335 = vmatpush.xpose.msra.mxu0 0.0
    %1336 = vmatpush.xpose.msra.mxu0 0.0
    %1337 = vmatpush.xpose.msra.mxu0 0.0
    %1338 = vmatpush.xpose.msra.mxu0 0.0
    %1339 = vmatpush.xpose.msra.mxu0 %v1322
    %1340 = vmatmul.f32.gmra.mxu0 %v1320
    %v1341 = vpop.f32.mrf.mxu0
    %v1342 = vadd.f32 0.0, %v1341
    %1343 = vdwg.mxu0
    %v1344 = vmul.f32 %v1342, 0.25
    %v1345 = vsel %vm287, %v1344, -inf
    %1346 = vmax.xlane.f32.xlu0 %v1345
    %v1347 = vpop.xlane.xlu0 %1346
    %v1348 = vsub.f32 %v1344, %v1347
    %v1349 = vmul.f32 %v1348, 1.442695
    %v1350 = vpow.pop %v1349
    %v1351 = vsel %vm287, %v1350, 0.0
    %1352 = vadd.xlane.f32.xlu0 %v1351
    %v1353 = vpop.xlane.xlu0 %1352
    %v1354 = vrcp.pop %v1353
    %v1355 = vmul.f32 %v1353, %v1354
    %v1356 = vsub.f32 1.0, %v1355
    %v1357 = vmul.f32 %v1354, %v1356
    %v1358 = vadd.f32 %v1354, %v1357
    %vm1359 = vweird.f32 %v1353
    %vm1360 = vweird.f32 %v1354
    %vm1361 = vmor %vm1359, %vm1360
    %v1362 = vsel %vm1361, %v1354, %v1358
    %v1363 = vand.u32 2147483647, %v1353
    %vm1364 = vcmp.eq.f32.partialorder %v1363, 8.507059e+37
    %v1365 = vand.u32 %v1353, 2147483648
    %v1366 = vor.u32 1.1754944e-38, %v1365
    %v1367 = vsel %vm1364, %v1366, %v1362
    %v1368 = vmul.f32 %v1350, %v1367
    %v1370 = vsel %vm312, %v1368, 0
    %v1373 = vsel %vm124, %v1312, 0
    %1375 = vmatpush.msra.mxu0 0.0
    %1376 = vmatpush.msra.mxu0 0.0
    %1377 = vmatpush.msra.mxu0 0.0
    %1378 = vmatpush.msra.mxu0 0.0
    %1379 = vmatpush.msra.mxu0 0.0
    %1380 = vmatpush.msra.mxu0 0.0
    %1381 = vmatpush.msra.mxu0 0.0
    %1382 = vmatpush.msra.mxu0 0.0
    %1383 = vmatpush.msra.mxu0 0.0
    %1384 = vmatpush.msra.mxu0 0.0
    %1385 = vmatpush.msra.mxu0 0.0
    %1386 = vmatpush.msra.mxu0 0.0
    %1387 = vmatpush.msra.mxu0 0.0
    %1388 = vmatpush.msra.mxu0 0.0
    %1389 = vmatpush.msra.mxu0 0.0
    %1390 = vmatpush.msra.mxu0 %v1373
    %1391 = vmatmul.f32.gmra.mxu0 %v1370
    %v1392 = vpop.f32.mrf.mxu0
    %v1393 = vadd.f32 0.0, %v1392
    %1394 = vdwg.mxu0
    %1395 = vrot.lane.b32.xlu0 %v1289, 112
    %v1396 = vpop.permute.xlu0 %1395
    %1397 = vrot.lane.b32.xlu0 %v1289, 48
    %v1398 = vpop.permute.xlu0 %1397
    %v1399 = vsel %vm261, %v1396, 0
    %v1401 = vsel %vm261, %v1398, 0
    %1403 = vmatpush.xpose.msra.mxu0 0.0
    %1404 = vmatpush.xpose.msra.mxu0 0.0
    %1405 = vmatpush.xpose.msra.mxu0 0.0
    %1406 = vmatpush.xpose.msra.mxu0 0.0
    %1407 = vmatpush.xpose.msra.mxu0 0.0
    %1408 = vmatpush.xpose.msra.mxu0 0.0
    %1409 = vmatpush.xpose.msra.mxu0 0.0
    %1410 = vmatpush.xpose.msra.mxu0 0.0
    %1411 = vmatpush.xpose.msra.mxu0 0.0
    %1412 = vmatpush.xpose.msra.mxu0 0.0
    %1413 = vmatpush.xpose.msra.mxu0 0.0
    %1414 = vmatpush.xpose.msra.mxu0 0.0
    %1415 = vmatpush.xpose.msra.mxu0 0.0
    %1416 = vmatpush.xpose.msra.mxu0 0.0
    %1417 = vmatpush.xpose.msra.mxu0 0.0
    %1418 = vmatpush.xpose.msra.mxu0 %v1401
    %1419 = vmatmul.f32.gmra.mxu0 %v1399
    %v1420 = vpop.f32.mrf.mxu0
    %v1421 = vadd.f32 0.0, %v1420
    %1422 = vdwg.mxu0
    %v1423 = vmul.f32 %v1421, 0.25
    %v1424 = vsel %vm287, %v1423, -inf
    %1425 = vmax.xlane.f32.xlu0 %v1424
    %v1426 = vpop.xlane.xlu0 %1425
    %v1427 = vsub.f32 %v1423, %v1426
    %v1428 = vmul.f32 %v1427, 1.442695
    %v1429 = vpow.pop %v1428
    %v1430 = vsel %vm287, %v1429, 0.0
    %1431 = vadd.xlane.f32.xlu0 %v1430
    %v1432 = vpop.xlane.xlu0 %1431
    %v1433 = vrcp.pop %v1432
    %v1434 = vmul.f32 %v1432, %v1433
    %v1435 = vsub.f32 1.0, %v1434
    %v1436 = vmul.f32 %v1433, %v1435
    %v1437 = vadd.f32 %v1433, %v1436
    %vm1438 = vweird.f32 %v1432
    %vm1439 = vweird.f32 %v1433
    %vm1440 = vmor %vm1438, %vm1439
    %v1441 = vsel %vm1440, %v1433, %v1437
    %v1442 = vand.u32 2147483647, %v1432
    %vm1443 = vcmp.eq.f32.partialorder %v1442, 8.507059e+37
    %v1444 = vand.u32 %v1432, 2147483648
    %v1445 = vor.u32 1.1754944e-38, %v1444
    %v1446 = vsel %vm1443, %v1445, %v1441
    %v1447 = vmul.f32 %v1429, %v1446
    %1448 = vrot.lane.b32.xlu0 %v1312, 112
    %v1449 = vpop.permute.xlu0 %1448
    %v1451 = vsel %vm312, %v1447, 0
    %v1453 = vsel %vm124, %v1449, 0
    %1455 = vmatpush.msra.mxu0 0.0
    %1456 = vmatpush.msra.mxu0 0.0
    %1457 = vmatpush.msra.mxu0 0.0
    %1458 = vmatpush.msra.mxu0 0.0
    %1459 = vmatpush.msra.mxu0 0.0
    %1460 = vmatpush.msra.mxu0 0.0
    %1461 = vmatpush.msra.mxu0 0.0
    %1462 = vmatpush.msra.mxu0 0.0
    %1463 = vmatpush.msra.mxu0 0.0
    %1464 = vmatpush.msra.mxu0 0.0
    %1465 = vmatpush.msra.mxu0 0.0
    %1466 = vmatpush.msra.mxu0 0.0
    %1467 = vmatpush.msra.mxu0 0.0
    %1468 = vmatpush.msra.mxu0 0.0
    %1469 = vmatpush.msra.mxu0 0.0
    %1470 = vmatpush.msra.mxu0 %v1453
    %1471 = vmatmul.f32.gmra.mxu0 %v1451
    %v1472 = vpop.f32.mrf.mxu0
    %v1473 = vadd.f32 0.0, %v1472
    %1474 = vdwg.mxu0
    %1475 = vrot.lane.b32.xlu0 %v1289, 96
    %v1476 = vpop.permute.xlu0 %1475
    %1477 = vrot.lane.b32.xlu0 %v1289, 32
    %v1478 = vpop.permute.xlu0 %1477
    %v1479 = vsel %vm261, %v1476, 0
    %v1481 = vsel %vm261, %v1478, 0
    %1483 = vmatpush.xpose.msra.mxu0 0.0
    %1484 = vmatpush.xpose.msra.mxu0 0.0
    %1485 = vmatpush.xpose.msra.mxu0 0.0
    %1486 = vmatpush.xpose.msra.mxu0 0.0
    %1487 = vmatpush.xpose.msra.mxu0 0.0
    %1488 = vmatpush.xpose.msra.mxu0 0.0
    %1489 = vmatpush.xpose.msra.mxu0 0.0
    %1490 = vmatpush.xpose.msra.mxu0 0.0
    %1491 = vmatpush.xpose.msra.mxu0 0.0
    %1492 = vmatpush.xpose.msra.mxu0 0.0
    %1493 = vmatpush.xpose.msra.mxu0 0.0
    %1494 = vmatpush.xpose.msra.mxu0 0.0
    %1495 = vmatpush.xpose.msra.mxu0 0.0
    %1496 = vmatpush.xpose.msra.mxu0 0.0
    %1497 = vmatpush.xpose.msra.mxu0 0.0
    %1498 = vmatpush.xpose.msra.mxu0 %v1481
    %1499 = vmatmul.f32.gmra.mxu0 %v1479
    %v1500 = vpop.f32.mrf.mxu0
    %v1501 = vadd.f32 0.0, %v1500
    %1502 = vdwg.mxu0
    %v1503 = vmul.f32 %v1501, 0.25
    %v1504 = vsel %vm287, %v1503, -inf
    %1505 = vmax.xlane.f32.xlu0 %v1504
    %v1506 = vpop.xlane.xlu0 %1505
    %v1507 = vsub.f32 %v1503, %v1506
    %v1508 = vmul.f32 %v1507, 1.442695
    %v1509 = vpow.pop %v1508
    %v1510 = vsel %vm287, %v1509, 0.0
    %1511 = vadd.xlane.f32.xlu0 %v1510
    %v1512 = vpop.xlane.xlu0 %1511
    %v1513 = vrcp.pop %v1512
    %v1514 = vmul.f32 %v1512, %v1513
    %v1515 = vsub.f32 1.0, %v1514
    %v1516 = vmul.f32 %v1513, %v1515
    %v1517 = vadd.f32 %v1513, %v1516
    %vm1518 = vweird.f32 %v1512
    %vm1519 = vweird.f32 %v1513
    %vm1520 = vmor %vm1518, %vm1519
    %v1521 = vsel %vm1520, %v1513, %v1517
    %v1522 = vand.u32 2147483647, %v1512
    %vm1523 = vcmp.eq.f32.partialorder %v1522, 8.507059e+37
    %v1524 = vand.u32 %v1512, 2147483648
    %v1525 = vor.u32 1.1754944e-38, %v1524
    %v1526 = vsel %vm1523, %v1525, %v1521
    %v1527 = vmul.f32 %v1509, %v1526
    %1528 = vrot.lane.b32.xlu0 %v1312, 96
    %v1529 = vpop.permute.xlu0 %1528
    %v1531 = vsel %vm312, %v1527, 0
    %v1533 = vsel %vm124, %v1529, 0
    %1535 = vmatpush.msra.mxu0 0.0
    %1536 = vmatpush.msra.mxu0 0.0
    %1537 = vmatpush.msra.mxu0 0.0
    %1538 = vmatpush.msra.mxu0 0.0
    %1539 = vmatpush.msra.mxu0 0.0
    %1540 = vmatpush.msra.mxu0 0.0
    %1541 = vmatpush.msra.mxu0 0.0
    %1542 = vmatpush.msra.mxu0 0.0
    %1543 = vmatpush.msra.mxu0 0.0
    %1544 = vmatpush.msra.mxu0 0.0
    %1545 = vmatpush.msra.mxu0 0.0
    %1546 = vmatpush.msra.mxu0 0.0
    %1547 = vmatpush.msra.mxu0 0.0
    %1548 = vmatpush.msra.mxu0 0.0
    %1549 = vmatpush.msra.mxu0 0.0
    %1550 = vmatpush.msra.mxu0 %v1533
    %1551 = vmatmul.f32.gmra.mxu0 %v1531
    %v1552 = vpop.f32.mrf.mxu0
    %v1553 = vadd.f32 0.0, %v1552
    %1554 = vdwg.mxu0
    %1555 = vrot.lane.b32.xlu0 %v1289, 80
    %v1556 = vpop.permute.xlu0 %1555
    %1557 = vrot.lane.b32.xlu0 %v1289, 16
    %v1558 = vpop.permute.xlu0 %1557
    %v1559 = vsel %vm261, %v1556, 0
    %v1561 = vsel %vm261, %v1558, 0
    %1563 = vmatpush.xpose.msra.mxu0 0.0
    %1564 = vmatpush.xpose.msra.mxu0 0.0
    %1565 = vmatpush.xpose.msra.mxu0 0.0
    %1566 = vmatpush.xpose.msra.mxu0 0.0
    %1567 = vmatpush.xpose.msra.mxu0 0.0
    %1568 = vmatpush.xpose.msra.mxu0 0.0
    %1569 = vmatpush.xpose.msra.mxu0 0.0
    %1570 = vmatpush.xpose.msra.mxu0 0.0
    %1571 = vmatpush.xpose.msra.mxu0 0.0
    %1572 = vmatpush.xpose.msra.mxu0 0.0
    %1573 = vmatpush.xpose.msra.mxu0 0.0
    %1574 = vmatpush.xpose.msra.mxu0 0.0
    %1575 = vmatpush.xpose.msra.mxu0 0.0
    %1576 = vmatpush.xpose.msra.mxu0 0.0
    %1577 = vmatpush.xpose.msra.mxu0 0.0
    %1578 = vmatpush.xpose.msra.mxu0 %v1561
    %1579 = vmatmul.f32.gmra.mxu0 %v1559
    %v1580 = vpop.f32.mrf.mxu0
    %v1581 = vadd.f32 0.0, %v1580
    %1582 = vdwg.mxu0
    %v1583 = vmul.f32 %v1581, 0.25
    %v1584 = vsel %vm287, %v1583, -inf
    %1585 = vmax.xlane.f32.xlu0 %v1584
    %v1586 = vpop.xlane.xlu0 %1585
    %v1587 = vsub.f32 %v1583, %v1586
    %v1588 = vmul.f32 %v1587, 1.442695
    %v1589 = vpow.pop %v1588
    %v1590 = vsel %vm287, %v1589, 0.0
    %1591 = vadd.xlane.f32.xlu0 %v1590
    %v1592 = vpop.xlane.xlu0 %1591
    %v1593 = vrcp.pop %v1592
    %v1594 = vmul.f32 %v1592, %v1593
    %v1595 = vsub.f32 1.0, %v1594
    %v1596 = vmul.f32 %v1593, %v1595
    %v1597 = vadd.f32 %v1593, %v1596
    %vm1598 = vweird.f32 %v1592
    %vm1599 = vweird.f32 %v1593
    %vm1600 = vmor %vm1598, %vm1599
    %v1601 = vsel %vm1600, %v1593, %v1597
    %v1602 = vand.u32 2147483647, %v1592
    %vm1603 = vcmp.eq.f32.partialorder %v1602, 8.507059e+37
    %v1604 = vand.u32 %v1592, 2147483648
    %v1605 = vor.u32 1.1754944e-38, %v1604
    %v1606 = vsel %vm1603, %v1605, %v1601
    %v1607 = vmul.f32 %v1589, %v1606
    %1608 = vrot.lane.b32.xlu0 %v1312, 80
    %v1609 = vpop.permute.xlu0 %1608
    %v1611 = vsel %vm312, %v1607, 0
    %v1613 = vsel %vm124, %v1609, 0
    %1615 = vmatpush.msra.mxu0 0.0
    %1616 = vmatpush.msra.mxu0 0.0
    %1617 = vmatpush.msra.mxu0 0.0
    %1618 = vmatpush.msra.mxu0 0.0
    %1619 = vmatpush.msra.mxu0 0.0
    %1620 = vmatpush.msra.mxu0 0.0
    %1621 = vmatpush.msra.mxu0 0.0
    %1622 = vmatpush.msra.mxu0 0.0
    %1623 = vmatpush.msra.mxu0 0.0
    %1624 = vmatpush.msra.mxu0 0.0
    %1625 = vmatpush.msra.mxu0 0.0
    %1626 = vmatpush.msra.mxu0 0.0
    %1627 = vmatpush.msra.mxu0 0.0
    %1628 = vmatpush.msra.mxu0 0.0
    %1629 = vmatpush.msra.mxu0 0.0
    %1630 = vmatpush.msra.mxu0 %v1613
    %1631 = vmatmul.f32.gmra.mxu0 %v1611
    %v1632 = vpop.f32.mrf.mxu0
    %v1633 = vadd.f32 0.0, %v1632
    %1634 = vdwg.mxu0
    %1636 = vrot.lane.b32.xlu0 %v1473, 16
    %v1637 = vpop.permute.xlu0 %1636
    %1640 = vrot.lane.b32.xlu0 %v1553, 32
    %v1641 = vpop.permute.xlu0 %1640
    %1644 = vrot.lane.b32.xlu0 %v1633, 48
    %v1645 = vpop.permute.xlu0 %1644
    %v1647 = vsel %vm261, %v1393, %v1637
    %v1648 = vsel %vm592, %v1647, %v1641
    %v1649 = vsel %vm594, %v1648, %v1645
    %v1651 = vrot.slane %v1289, 5
    %v1652 = vrot.slane %v1292, 5
    %v1653 = vsel %vm597, %v1651, %v1652
    %1654 = vrot.lane.b32.xlu0 %v1653, 64
    %v1655 = vpop.permute.xlu0 %1654
    %v1656 = vsel %vm261, %v1653, 0
    %v1658 = vsel %vm261, %v1655, 0
    %1660 = vmatpush.xpose.msra.mxu0 0.0
    %1661 = vmatpush.xpose.msra.mxu0 0.0
    %1662 = vmatpush.xpose.msra.mxu0 0.0
    %1663 = vmatpush.xpose.msra.mxu0 0.0
    %1664 = vmatpush.xpose.msra.mxu0 0.0
    %1665 = vmatpush.xpose.msra.mxu0 0.0
    %1666 = vmatpush.xpose.msra.mxu0 0.0
    %1667 = vmatpush.xpose.msra.mxu0 0.0
    %1668 = vmatpush.xpose.msra.mxu0 0.0
    %1669 = vmatpush.xpose.msra.mxu0 0.0
    %1670 = vmatpush.xpose.msra.mxu0 0.0
    %1671 = vmatpush.xpose.msra.mxu0 0.0
    %1672 = vmatpush.xpose.msra.mxu0 0.0
    %1673 = vmatpush.xpose.msra.mxu0 0.0
    %1674 = vmatpush.xpose.msra.mxu0 0.0
    %1675 = vmatpush.xpose.msra.mxu0 %v1658
    %1676 = vmatmul.f32.gmra.mxu0 %v1656
    %v1677 = vpop.f32.mrf.mxu0
    %v1678 = vadd.f32 0.0, %v1677
    %1679 = vdwg.mxu0
    %v1680 = vmul.f32 %v1678, 0.25
    %v1681 = vsel %vm287, %v1680, -inf
    %1682 = vmax.xlane.f32.xlu0 %v1681
    %v1683 = vpop.xlane.xlu0 %1682
    %v1684 = vsub.f32 %v1680, %v1683
    %v1685 = vmul.f32 %v1684, 1.442695
    %v1686 = vpow.pop %v1685
    %v1687 = vsel %vm287, %v1686, 0.0
    %1688 = vadd.xlane.f32.xlu0 %v1687
    %v1689 = vpop.xlane.xlu0 %1688
    %v1690 = vrcp.pop %v1689
    %v1691 = vmul.f32 %v1689, %v1690
    %v1692 = vsub.f32 1.0, %v1691
    %v1693 = vmul.f32 %v1690, %v1692
    %v1694 = vadd.f32 %v1690, %v1693
    %vm1695 = vweird.f32 %v1689
    %vm1696 = vweird.f32 %v1690
    %vm1697 = vmor %vm1695, %vm1696
    %v1698 = vsel %vm1697, %v1690, %v1694
    %v1699 = vand.u32 2147483647, %v1689
    %vm1700 = vcmp.eq.f32.partialorder %v1699, 8.507059e+37
    %v1701 = vand.u32 %v1689, 2147483648
    %v1702 = vor.u32 1.1754944e-38, %v1701
    %v1703 = vsel %vm1700, %v1702, %v1698
    %v1704 = vmul.f32 %v1686, %v1703
    %v1706 = vrot.slane %v1312, 5
    %v1707 = vrot.slane %v1315, 5
    %v1708 = vsel %vm597, %v1706, %v1707
    %v1710 = vsel %vm312, %v1704, 0
    %v1712 = vsel %vm124, %v1708, 0
    %1714 = vmatpush.msra.mxu0 0.0
    %1715 = vmatpush.msra.mxu0 0.0
    %1716 = vmatpush.msra.mxu0 0.0
    %1717 = vmatpush.msra.mxu0 0.0
    %1718 = vmatpush.msra.mxu0 0.0
    %1719 = vmatpush.msra.mxu0 0.0
    %1720 = vmatpush.msra.mxu0 0.0
    %1721 = vmatpush.msra.mxu0 0.0
    %1722 = vmatpush.msra.mxu0 0.0
    %1723 = vmatpush.msra.mxu0 0.0
    %1724 = vmatpush.msra.mxu0 0.0
    %1725 = vmatpush.msra.mxu0 0.0
    %1726 = vmatpush.msra.mxu0 0.0
    %1727 = vmatpush.msra.mxu0 0.0
    %1728 = vmatpush.msra.mxu0 0.0
    %1729 = vmatpush.msra.mxu0 %v1712
    %1730 = vmatmul.f32.gmra.mxu0 %v1710
    %v1731 = vpop.f32.mrf.mxu0
    %v1732 = vadd.f32 0.0, %v1731
    %1733 = vdwg.mxu0
    %1734 = vrot.lane.b32.xlu0 %v1653, 112
    %v1735 = vpop.permute.xlu0 %1734
    %1736 = vrot.lane.b32.xlu0 %v1653, 48
    %v1737 = vpop.permute.xlu0 %1736
    %v1738 = vsel %vm261, %v1735, 0
    %v1740 = vsel %vm261, %v1737, 0
    %1742 = vmatpush.xpose.msra.mxu0 0.0
    %1743 = vmatpush.xpose.msra.mxu0 0.0
    %1744 = vmatpush.xpose.msra.mxu0 0.0
    %1745 = vmatpush.xpose.msra.mxu0 0.0
    %1746 = vmatpush.xpose.msra.mxu0 0.0
    %1747 = vmatpush.xpose.msra.mxu0 0.0
    %1748 = vmatpush.xpose.msra.mxu0 0.0
    %1749 = vmatpush.xpose.msra.mxu0 0.0
    %1750 = vmatpush.xpose.msra.mxu0 0.0
    %1751 = vmatpush.xpose.msra.mxu0 0.0
    %1752 = vmatpush.xpose.msra.mxu0 0.0
    %1753 = vmatpush.xpose.msra.mxu0 0.0
    %1754 = vmatpush.xpose.msra.mxu0 0.0
    %1755 = vmatpush.xpose.msra.mxu0 0.0
    %1756 = vmatpush.xpose.msra.mxu0 0.0
    %1757 = vmatpush.xpose.msra.mxu0 %v1740
    %1758 = vmatmul.f32.gmra.mxu0 %v1738
    %v1759 = vpop.f32.mrf.mxu0
    %v1760 = vadd.f32 0.0, %v1759
    %1761 = vdwg.mxu0
    %v1762 = vmul.f32 %v1760, 0.25
    %v1763 = vsel %vm287, %v1762, -inf
    %1764 = vmax.xlane.f32.xlu0 %v1763
    %v1765 = vpop.xlane.xlu0 %1764
    %v1766 = vsub.f32 %v1762, %v1765
    %v1767 = vmul.f32 %v1766, 1.442695
    %v1768 = vpow.pop %v1767
    %v1769 = vsel %vm287, %v1768, 0.0
    %1770 = vadd.xlane.f32.xlu0 %v1769
    %v1771 = vpop.xlane.xlu0 %1770
    %v1772 = vrcp.pop %v1771
    %v1773 = vmul.f32 %v1771, %v1772
    %v1774 = vsub.f32 1.0, %v1773
    %v1775 = vmul.f32 %v1772, %v1774
    %v1776 = vadd.f32 %v1772, %v1775
    %vm1777 = vweird.f32 %v1771
    %vm1778 = vweird.f32 %v1772
    %vm1779 = vmor %vm1777, %vm1778
    %v1780 = vsel %vm1779, %v1772, %v1776
    %v1781 = vand.u32 2147483647, %v1771
    %vm1782 = vcmp.eq.f32.partialorder %v1781, 8.507059e+37
    %v1783 = vand.u32 %v1771, 2147483648
    %v1784 = vor.u32 1.1754944e-38, %v1783
    %v1785 = vsel %vm1782, %v1784, %v1780
    %v1786 = vmul.f32 %v1768, %v1785
    %1787 = vrot.lane.b32.xlu0 %v1708, 112
    %v1788 = vpop.permute.xlu0 %1787
    %v1790 = vsel %vm312, %v1786, 0
    %v1792 = vsel %vm124, %v1788, 0
    %1794 = vmatpush.msra.mxu0 0.0
    %1795 = vmatpush.msra.mxu0 0.0
    %1796 = vmatpush.msra.mxu0 0.0
    %1797 = vmatpush.msra.mxu0 0.0
    %1798 = vmatpush.msra.mxu0 0.0
    %1799 = vmatpush.msra.mxu0 0.0
    %1800 = vmatpush.msra.mxu0 0.0
    %1801 = vmatpush.msra.mxu0 0.0
    %1802 = vmatpush.msra.mxu0 0.0
    %1803 = vmatpush.msra.mxu0 0.0
    %1804 = vmatpush.msra.mxu0 0.0
    %1805 = vmatpush.msra.mxu0 0.0
    %1806 = vmatpush.msra.mxu0 0.0
    %1807 = vmatpush.msra.mxu0 0.0
    %1808 = vmatpush.msra.mxu0 0.0
    %1809 = vmatpush.msra.mxu0 %v1792
    %1810 = vmatmul.f32.gmra.mxu0 %v1790
    %v1811 = vpop.f32.mrf.mxu0
    %v1812 = vadd.f32 0.0, %v1811
    %1813 = vdwg.mxu0
    %1814 = vrot.lane.b32.xlu0 %v1653, 96
    %v1815 = vpop.permute.xlu0 %1814
    %1816 = vrot.lane.b32.xlu0 %v1653, 32
    %v1817 = vpop.permute.xlu0 %1816
    %v1818 = vsel %vm261, %v1815, 0
    %v1820 = vsel %vm261, %v1817, 0
    %1822 = vmatpush.xpose.msra.mxu0 0.0
    %1823 = vmatpush.xpose.msra.mxu0 0.0
    %1824 = vmatpush.xpose.msra.mxu0 0.0
    %1825 = vmatpush.xpose.msra.mxu0 0.0
    %1826 = vmatpush.xpose.msra.mxu0 0.0
    %1827 = vmatpush.xpose.msra.mxu0 0.0
    %1828 = vmatpush.xpose.msra.mxu0 0.0
    %1829 = vmatpush.xpose.msra.mxu0 0.0
    %1830 = vmatpush.xpose.msra.mxu0 0.0
    %1831 = vmatpush.xpose.msra.mxu0 0.0
    %1832 = vmatpush.xpose.msra.mxu0 0.0
    %1833 = vmatpush.xpose.msra.mxu0 0.0
    %1834 = vmatpush.xpose.msra.mxu0 0.0
    %1835 = vmatpush.xpose.msra.mxu0 0.0
    %1836 = vmatpush.xpose.msra.mxu0 0.0
    %1837 = vmatpush.xpose.msra.mxu0 %v1820
    %1838 = vmatmul.f32.gmra.mxu0 %v1818
    %v1839 = vpop.f32.mrf.mxu0
    %v1840 = vadd.f32 0.0, %v1839
    %1841 = vdwg.mxu0
    %v1842 = vmul.f32 %v1840, 0.25
    %v1843 = vsel %vm287, %v1842, -inf
    %1844 = vmax.xlane.f32.xlu0 %v1843
    %v1845 = vpop.xlane.xlu0 %1844
    %v1846 = vsub.f32 %v1842, %v1845
    %v1847 = vmul.f32 %v1846, 1.442695
    %v1848 = vpow.pop %v1847
    %v1849 = vsel %vm287, %v1848, 0.0
    %1850 = vadd.xlane.f32.xlu0 %v1849
    %v1851 = vpop.xlane.xlu0 %1850
    %v1852 = vrcp.pop %v1851
    %v1853 = vmul.f32 %v1851, %v1852
    %v1854 = vsub.f32 1.0, %v1853
    %v1855 = vmul.f32 %v1852, %v1854
    %v1856 = vadd.f32 %v1852, %v1855
    %vm1857 = vweird.f32 %v1851
    %vm1858 = vweird.f32 %v1852
    %vm1859 = vmor %vm1857, %vm1858
    %v1860 = vsel %vm1859, %v1852, %v1856
    %v1861 = vand.u32 2147483647, %v1851
    %vm1862 = vcmp.eq.f32.partialorder %v1861, 8.507059e+37
    %v1863 = vand.u32 %v1851, 2147483648
    %v1864 = vor.u32 1.1754944e-38, %v1863
    %v1865 = vsel %vm1862, %v1864, %v1860
    %v1866 = vmul.f32 %v1848, %v1865
    %1867 = vrot.lane.b32.xlu0 %v1708, 96
    %v1868 = vpop.permute.xlu0 %1867
    %v1870 = vsel %vm312, %v1866, 0
    %v1872 = vsel %vm124, %v1868, 0
    %1874 = vmatpush.msra.mxu0 0.0
    %1875 = vmatpush.msra.mxu0 0.0
    %1876 = vmatpush.msra.mxu0 0.0
    %1877 = vmatpush.msra.mxu0 0.0
    %1878 = vmatpush.msra.mxu0 0.0
    %1879 = vmatpush.msra.mxu0 0.0
    %1880 = vmatpush.msra.mxu0 0.0
    %1881 = vmatpush.msra.mxu0 0.0
    %1882 = vmatpush.msra.mxu0 0.0
    %1883 = vmatpush.msra.mxu0 0.0
    %1884 = vmatpush.msra.mxu0 0.0
    %1885 = vmatpush.msra.mxu0 0.0
    %1886 = vmatpush.msra.mxu0 0.0
    %1887 = vmatpush.msra.mxu0 0.0
    %1888 = vmatpush.msra.mxu0 0.0
    %1889 = vmatpush.msra.mxu0 %v1872
    %1890 = vmatmul.f32.gmra.mxu0 %v1870
    %v1891 = vpop.f32.mrf.mxu0
    %v1892 = vadd.f32 0.0, %v1891
    %1893 = vdwg.mxu0
    %1894 = vrot.lane.b32.xlu0 %v1653, 80
    %v1895 = vpop.permute.xlu0 %1894
    %1896 = vrot.lane.b32.xlu0 %v1653, 16
    %v1897 = vpop.permute.xlu0 %1896
    %v1898 = vsel %vm261, %v1895, 0
    %v1900 = vsel %vm261, %v1897, 0
    %1902 = vmatpush.xpose.msra.mxu0 0.0
    %1903 = vmatpush.xpose.msra.mxu0 0.0
    %1904 = vmatpush.xpose.msra.mxu0 0.0
    %1905 = vmatpush.xpose.msra.mxu0 0.0
    %1906 = vmatpush.xpose.msra.mxu0 0.0
    %1907 = vmatpush.xpose.msra.mxu0 0.0
    %1908 = vmatpush.xpose.msra.mxu0 0.0
    %1909 = vmatpush.xpose.msra.mxu0 0.0
    %1910 = vmatpush.xpose.msra.mxu0 0.0
    %1911 = vmatpush.xpose.msra.mxu0 0.0
    %1912 = vmatpush.xpose.msra.mxu0 0.0
    %1913 = vmatpush.xpose.msra.mxu0 0.0
    %1914 = vmatpush.xpose.msra.mxu0 0.0
    %1915 = vmatpush.xpose.msra.mxu0 0.0
    %1916 = vmatpush.xpose.msra.mxu0 0.0
    %1917 = vmatpush.xpose.msra.mxu0 %v1900
    %1918 = vmatmul.f32.gmra.mxu0 %v1898
    %v1919 = vpop.f32.mrf.mxu0
    %v1920 = vadd.f32 0.0, %v1919
    %1921 = vdwg.mxu0
    %v1922 = vmul.f32 %v1920, 0.25
    %v1923 = vsel %vm287, %v1922, -inf
    %1924 = vmax.xlane.f32.xlu0 %v1923
    %v1925 = vpop.xlane.xlu0 %1924
    %v1926 = vsub.f32 %v1922, %v1925
    %v1927 = vmul.f32 %v1926, 1.442695
    %v1928 = vpow.pop %v1927
    %v1929 = vsel %vm287, %v1928, 0.0
    %1930 = vadd.xlane.f32.xlu0 %v1929
    %v1931 = vpop.xlane.xlu0 %1930
    %v1932 = vrcp.pop %v1931
    %v1933 = vmul.f32 %v1931, %v1932
    %v1934 = vsub.f32 1.0, %v1933
    %v1935 = vmul.f32 %v1932, %v1934
    %v1936 = vadd.f32 %v1932, %v1935
    %vm1937 = vweird.f32 %v1931
    %vm1938 = vweird.f32 %v1932
    %vm1939 = vmor %vm1937, %vm1938
    %v1940 = vsel %vm1939, %v1932, %v1936
    %v1941 = vand.u32 2147483647, %v1931
    %vm1942 = vcmp.eq.f32.partialorder %v1941, 8.507059e+37
    %v1943 = vand.u32 %v1931, 2147483648
    %v1944 = vor.u32 1.1754944e-38, %v1943
    %v1945 = vsel %vm1942, %v1944, %v1940
    %v1946 = vmul.f32 %v1928, %v1945
    %1947 = vrot.lane.b32.xlu0 %v1708, 80
    %v1948 = vpop.permute.xlu0 %1947
    %v1950 = vsel %vm312, %v1946, 0
    %v1952 = vsel %vm124, %v1948, 0
    %1954 = vmatpush.msra.mxu0 0.0
    %1955 = vmatpush.msra.mxu0 0.0
    %1956 = vmatpush.msra.mxu0 0.0
    %1957 = vmatpush.msra.mxu0 0.0
    %1958 = vmatpush.msra.mxu0 0.0
    %1959 = vmatpush.msra.mxu0 0.0
    %1960 = vmatpush.msra.mxu0 0.0
    %1961 = vmatpush.msra.mxu0 0.0
    %1962 = vmatpush.msra.mxu0 0.0
    %1963 = vmatpush.msra.mxu0 0.0
    %1964 = vmatpush.msra.mxu0 0.0
    %1965 = vmatpush.msra.mxu0 0.0
    %1966 = vmatpush.msra.mxu0 0.0
    %1967 = vmatpush.msra.mxu0 0.0
    %1968 = vmatpush.msra.mxu0 0.0
    %1969 = vmatpush.msra.mxu0 %v1952
    %1970 = vmatmul.f32.gmra.mxu0 %v1950
    %v1971 = vpop.f32.mrf.mxu0
    %v1972 = vadd.f32 0.0, %v1971
    %1973 = vdwg.mxu0
    %1975 = vrot.lane.b32.xlu0 %v1812, 16
    %v1976 = vpop.permute.xlu0 %1975
    %1979 = vrot.lane.b32.xlu0 %v1892, 32
    %v1980 = vpop.permute.xlu0 %1979
    %1983 = vrot.lane.b32.xlu0 %v1972, 48
    %v1984 = vpop.permute.xlu0 %1983
    %v1986 = vsel %vm261, %v1732, %v1976
    %v1987 = vsel %vm592, %v1986, %v1980
    %v1988 = vsel %vm594, %v1987, %v1984
    %v1990 = vrot.slane %v1988, 3
    %v1992 = vsel %vm124, %v1649, %v1990
    %s1993 = scalar_lea.vmem %s5, 64
    %v1994 = vld [vmem:[%s1993] sm:$0xff]
    %v1995 = vld [vmem:[%s1993 + $0x8] sm:$0xff]
    %v1996 = vld [vmem:[%s1993 + $0x10] sm:$0xff]
    %v1997 = vld [vmem:[%s1993 + $0x18] sm:$0xff]
    %v1998 = vld [vmem:[%s1993 + $0x20] sm:$0xff]
    %v1999 = vld [vmem:[%s1993 + $0x28] sm:$0xff]
    %v2000 = vld [vmem:[%s1993 + $0x30] sm:$0xff]
    %v2001 = vld [vmem:[%s1993 + $0x38] sm:$0xff]
    %v2003 = vsel %vm62, %v1992, 0
    %v2005 = vsel %vm62, %v1990, 0
    %2007 = vmatpush.msra.mxu0 0.0
    %2008 = vmatpush.msra.mxu0 0.0
    %2009 = vmatpush.msra.mxu0 0.0
    %2010 = vmatpush.msra.mxu0 0.0
    %2011 = vmatpush.msra.mxu0 0.0
    %2012 = vmatpush.msra.mxu0 0.0
    %2013 = vmatpush.msra.mxu0 0.0
    %2014 = vmatpush.msra.mxu0 0.0
    %2015 = vmatpush.msra.mxu0 %v2001
    %2016 = vmatpush.msra.mxu0 %v2000
    %2017 = vmatpush.msra.mxu0 %v1999
    %2018 = vmatpush.msra.mxu0 %v1998
    %2019 = vmatpush.msra.mxu0 %v1997
    %2020 = vmatpush.msra.mxu0 %v1996
    %2021 = vmatpush.msra.mxu0 %v1995
    %2022 = vmatpush.msra.mxu0 %v1994
    %2023 = vmatmul.f32.gmra.mxu0 %v2003
    %v2024 = vpop.f32.mrf.mxu0
    %v2025 = vadd.f32 0.0, %v2024
    %2026 = vmatmul.f32.gmra.mxu0 %v2005
    %v2027 = vpop.f32.mrf.mxu0
    %v2028 = vadd.f32 0.0, %v2027
    %2029 = vdwg.mxu0
    %v2030 = vadd.f32 %v1191, %v2025
    %v2031 = vadd.f32 %v1192, %v2028
    %v2032 = vperm.slane %v1194, 3
    %v2033 = vadd.f32 %v2030, %v2032
    %v2034 = vadd.f32 %v2031, %v2032
    %v2035 = vsel %vm62, %v2033, 0.0
    %2036 = vadd.xlane.f32.xlu0 %v2035
    %v2037 = vpop.xlane.xlu0 %2036
    %v2038 = vsel %vm133, %v2034, 0.0
    %2039 = vadd.xlane.f32.xlu0 %v2038
    %v2040 = vpop.xlane.xlu0 %2039
    %v2041 = vmul.f32 %v2037, %v143
    %v2042 = vmul.f32 %v2040, %v143
    %v2043 = vsub.f32 %v2033, %v2041
    %v2044 = vsub.f32 %v2034, %v2042
    %v2045 = vmul.f32 %v2043, %v2043
    %v2046 = vmul.f32 %v2044, %v2044
    %v2047 = vsel %vm62, %v2045, 0.0
    %2048 = vadd.xlane.f32.xlu0 %v2047
    %v2049 = vpop.xlane.xlu0 %2048
    %v2050 = vsel %vm133, %v2046, 0.0
    %2051 = vadd.xlane.f32.xlu0 %v2050
    %v2052 = vpop.xlane.xlu0 %2051
    %v2053 = vmul.f32 %v2049, %v143
    %v2054 = vmul.f32 %v2052, %v143
    %v2055 = vadd.f32 %v2053, 1e-12
    %v2056 = vadd.f32 %v2054, 1e-12
    %v2057 = vrsqrt.pop %v2055
    %v2058 = vmul.f32 %v2057, %v2055
    %v2059 = vmul.f32 %v2058, %v2057
    %v2060 = vmul.f32 0.5, %v2059
    %v2061 = vsub.f32 1.5, %v2060
    %v2062 = vmul.f32 %v2057, %v2061
    %vm2063 = vweird.f32 %v2055
    %vm2064 = vweird.f32 %v2057
    %vm2065 = vmor %vm2063, %vm2064
    %v2066 = vsel %vm2065, %v2057, %v2062
    %v2067 = vrsqrt.pop %v2056
    %v2068 = vmul.f32 %v2067, %v2056
    %v2069 = vmul.f32 %v2068, %v2067
    %v2070 = vmul.f32 0.5, %v2069
    %v2071 = vsub.f32 1.5, %v2070
    %v2072 = vmul.f32 %v2067, %v2071
    %vm2073 = vweird.f32 %v2056
    %vm2074 = vweird.f32 %v2067
    %vm2075 = vmor %vm2073, %vm2074
    %v2076 = vsel %vm2075, %v2067, %v2072
    %v2077 = vmul.f32 %v2043, %v2066
    %v2078 = vmul.f32 %v2044, %v2076
    %v2079 = vperm.slane %v1194, 4
    %v2080 = vmul.f32 %v2077, %v2079
    %v2081 = vmul.f32 %v2078, %v2079
    %v2082 = vperm.slane %v1194, 5
    %v2083 = vadd.f32 %v2080, %v2082
    %v2084 = vadd.f32 %v2081, %v2082
    %s2085 = scalar_lea.vmem %s6, 64
    %v2086 = vld [vmem:[%s2085] sm:$0xff]
    %v2087 = vld [vmem:[%s2085 + $0x8] sm:$0xff]
    %v2088 = vld [vmem:[%s2085 + $0x10] sm:$0xff]
    %v2089 = vld [vmem:[%s2085 + $0x18] sm:$0xff]
    %v2090 = vld [vmem:[%s2085 + $0x20] sm:$0xff]
    %v2091 = vld [vmem:[%s2085 + $0x28] sm:$0xff]
    %v2092 = vld [vmem:[%s2085 + $0x30] sm:$0xff]
    %v2093 = vld [vmem:[%s2085 + $0x38] sm:$0xff]
    %v2094 = vperm.slane %v1194, 6
    %v2096 = vsel %vm62, %v2083, 0
    %v2099 = vsel %vm62, %v2084, 0
    %2101 = vmatpush.msra.mxu0 0.0
    %2102 = vmatpush.msra.mxu0 0.0
    %2103 = vmatpush.msra.mxu0 0.0
    %2104 = vmatpush.msra.mxu0 0.0
    %2105 = vmatpush.msra.mxu0 0.0
    %2106 = vmatpush.msra.mxu0 0.0
    %2107 = vmatpush.msra.mxu0 0.0
    %2108 = vmatpush.msra.mxu0 0.0
    %2109 = vmatpush.msra.mxu0 %v2093
    %2110 = vmatpush.msra.mxu0 %v2092
    %2111 = vmatpush.msra.mxu0 %v2091
    %2112 = vmatpush.msra.mxu0 %v2090
    %2113 = vmatpush.msra.mxu0 %v2089
    %2114 = vmatpush.msra.mxu0 %v2088
    %2115 = vmatpush.msra.mxu0 %v2087
    %2116 = vmatpush.msra.mxu0 %v2086
    %2117 = vmatmul.f32.gmra.mxu0 %v2096
    %v2118 = vpop.f32.mrf.mxu0
    %v2119 = vadd.f32 %v2094, %v2118
    %2120 = vmatmul.f32.gmra.mxu0 %v2099
    %v2121 = vpop.f32.mrf.mxu0
    %v2122 = vadd.f32 %v2094, %v2121
    %2123 = vdwg.mxu0
    %v2124 = vmul.f32 %v2119, 0.5
    %v2125 = vmul.f32 %v2122, 0.5
    %v2126 = vmul.f32 %v2119, 0.70710677
    %v2127 = vmul.f32 %v2122, 0.70710677
    %v2128 = vand.u32 2147483647, %v2126
    %v2129 = vand.u32 2147483647, %v2127
    %v2130 = vmul.f32 %v2128, 0.3275911
    %v2131 = vmul.f32 %v2129, 0.3275911
    %v2132 = vadd.f32 %v2130, 1.0
    %v2133 = vadd.f32 %v2131, 1.0
    %v2134 = vrcp.pop %v2132
    %v2135 = vmul.f32 %v2132, %v2134
    %v2136 = vsub.f32 1.0, %v2135
    %v2137 = vmul.f32 %v2134, %v2136
    %v2138 = vadd.f32 %v2134, %v2137
    %vm2139 = vweird.f32 %v2132
    %vm2140 = vweird.f32 %v2134
    %vm2141 = vmor %vm2139, %vm2140
    %v2142 = vsel %vm2141, %v2134, %v2138
    %v2143 = vand.u32 2147483647, %v2132
    %vm2144 = vcmp.eq.f32.partialorder %v2143, 8.507059e+37
    %v2145 = vand.u32 %v2132, 2147483648
    %v2146 = vor.u32 1.1754944e-38, %v2145
    %v2147 = vsel %vm2144, %v2146, %v2142
    %v2148 = vmul.f32 1.0, %v2147
    %v2149 = vrcp.pop %v2133
    %v2150 = vmul.f32 %v2133, %v2149
    %v2151 = vsub.f32 1.0, %v2150
    %v2152 = vmul.f32 %v2149, %v2151
    %v2153 = vadd.f32 %v2149, %v2152
    %vm2154 = vweird.f32 %v2133
    %vm2155 = vweird.f32 %v2149
    %vm2156 = vmor %vm2154, %vm2155
    %v2157 = vsel %vm2156, %v2149, %v2153
    %v2158 = vand.u32 2147483647, %v2133
    %vm2159 = vcmp.eq.f32.partialorder %v2158, 8.507059e+37
    %v2160 = vand.u32 %v2133, 2147483648
    %v2161 = vor.u32 1.1754944e-38, %v2160
    %v2162 = vsel %vm2159, %v2161, %v2157
    %v2163 = vmul.f32 1.0, %v2162
    %v2164 = vmul.f32 %v2148, 1.0614054
    %v2165 = vmul.f32 %v2163, 1.0614054
    %v2166 = vadd.f32 %v2164, -1.4531521
    %v2167 = vadd.f32 %v2165, -1.4531521
    %v2168 = vmul.f32 %v2166, %v2148
    %v2169 = vmul.f32 %v2167, %v2163
    %v2170 = vadd.f32 %v2168, 1.4214138
    %v2171 = vadd.f32 %v2169, 1.4214138
    %v2172 = vmul.f32 %v2170, %v2148
    %v2173 = vmul.f32 %v2171, %v2163
    %v2174 = vadd.f32 %v2172, -0.28449672
    %v2175 = vadd.f32 %v2173, -0.28449672
    %v2176 = vmul.f32 %v2174, %v2148
    %v2177 = vmul.f32 %v2175, %v2163
    %v2178 = vadd.f32 %v2176, 0.2548296
    %v2179 = vadd.f32 %v2177, 0.2548296
    %v2180 = vmul.f32 %v2178, %v2148
    %v2181 = vmul.f32 %v2179, %v2163
    %v2182 = vsub.f32 0.0, %v2128
    %v2183 = vsub.f32 0.0, %v2129
    %v2184 = vmul.f32 %v2182, %v2128
    %v2185 = vmul.f32 %v2183, %v2129
    %v2186 = vmul.f32 %v2184, 1.442695
    %v2187 = vpow.pop %v2186
    %v2188 = vmul.f32 %v2185, 1.442695
    %v2189 = vpow.pop %v2188
    %v2190 = vmul.f32 %v2180, %v2187
    %v2191 = vmul.f32 %v2181, %v2189
    %v2192 = vsub.f32 1.0, %v2190
    %v2193 = vsub.f32 1.0, %v2191
    %vm2194 = vcmp.lt.f32.partialorder %v2126, 0.0
    %vm2195 = vcmp.lt.f32.partialorder %v2127, 0.0
    %v2196 = vsub.f32 0.0, %v2192
    %v2197 = vsub.f32 0.0, %v2193
    %v2198 = vsel %vm2194, %v2196, %v2192
    %v2199 = vsel %vm2195, %v2197, %v2193
    %v2200 = vadd.f32 %v2198, 1.0
    %v2201 = vadd.f32 %v2199, 1.0
    %v2202 = vmul.f32 %v2124, %v2200
    %v2203 = vmul.f32 %v2125, %v2201
    %s2204 = scalar_lea.vmem %s7, 128
    %v2205 = vld [vmem:[%s2204] sm:$0xff]
    %v2206 = vld [vmem:[%s2204 + $0x8] sm:$0xff]
    %v2207 = vld [vmem:[%s2204 + $0x10] sm:$0xff]
    %v2208 = vld [vmem:[%s2204 + $0x18] sm:$0xff]
    %v2209 = vld [vmem:[%s2204 + $0x20] sm:$0xff]
    %v2210 = vld [vmem:[%s2204 + $0x28] sm:$0xff]
    %v2211 = vld [vmem:[%s2204 + $0x30] sm:$0xff]
    %v2212 = vld [vmem:[%s2204 + $0x38] sm:$0xff]
    %v2213 = vld [vmem:[%s2204 + $0x40] sm:$0xff]
    %v2214 = vld [vmem:[%s2204 + $0x48] sm:$0xff]
    %v2215 = vld [vmem:[%s2204 + $0x50] sm:$0xff]
    %v2216 = vld [vmem:[%s2204 + $0x58] sm:$0xff]
    %v2217 = vld [vmem:[%s2204 + $0x60] sm:$0xff]
    %v2218 = vld [vmem:[%s2204 + $0x68] sm:$0xff]
    %v2219 = vld [vmem:[%s2204 + $0x70] sm:$0xff]
    %v2220 = vld [vmem:[%s2204 + $0x78] sm:$0xff]
    %2221 = vmatpush.msra.mxu0 %v2220
    %2222 = vmatpush.msra.mxu0 %v2219
    %2223 = vmatpush.msra.mxu0 %v2218
    %2224 = vmatpush.msra.mxu0 %v2217
    %2225 = vmatpush.msra.mxu0 %v2216
    %2226 = vmatpush.msra.mxu0 %v2215
    %2227 = vmatpush.msra.mxu0 %v2214
    %2228 = vmatpush.msra.mxu0 %v2213
    %2229 = vmatpush.msra.mxu0 %v2212
    %2230 = vmatpush.msra.mxu0 %v2211
    %2231 = vmatpush.msra.mxu0 %v2210
    %2232 = vmatpush.msra.mxu0 %v2209
    %2233 = vmatpush.msra.mxu0 %v2208
    %2234 = vmatpush.msra.mxu0 %v2207
    %2235 = vmatpush.msra.mxu0 %v2206
    %2236 = vmatpush.msra.mxu0 %v2205
    %2237 = vmatmul.f32.gmra.mxu0 %v2202
    %v2238 = vpop.f32.mrf.mxu0
    %v2239 = vadd.f32 0.0, %v2238
    %2240 = vmatmul.f32.gmra.mxu0 %v2203
    %v2241 = vpop.f32.mrf.mxu0
    %2242 = vdwg.mxu0
    %v2243 = vadd.f32 %v2033, %v2239
    %v2244 = vperm.slane %v1194, 7
    %v2245 = vadd.f32 %v2243, %v2244
    %v2246 = vld [vmem:[%s8] sm:$0x7]
    %v2247 = vsel %vm62, %v2245, 0.0
    %2248 = vadd.xlane.f32.xlu0 %v2247
    %v2249 = vpop.xlane.xlu0 %2248
    %v2250 = vmul.f32 %v2249, %v143
    %v2251 = vsub.f32 %v2245, %v2250
    %v2252 = vmul.f32 %v2251, %v2251
    %v2253 = vsel %vm62, %v2252, 0.0
    %2254 = vadd.xlane.f32.xlu0 %v2253
    %v2255 = vpop.xlane.xlu0 %2254
    %v2256 = vmul.f32 %v2255, %v143
    %v2257 = vadd.f32 %v2256, 1e-12
    %v2258 = vrsqrt.pop %v2257
    %v2259 = vmul.f32 %v2258, %v2257
    %v2260 = vmul.f32 %v2259, %v2258
    %v2261 = vmul.f32 0.5, %v2260
    %v2262 = vsub.f32 1.5, %v2261
    %v2263 = vmul.f32 %v2258, %v2262
    %vm2264 = vweird.f32 %v2257
    %vm2265 = vweird.f32 %v2258
    %vm2266 = vmor %vm2264, %vm2265
    %v2267 = vsel %vm2266, %v2258, %v2263
    %v2268 = vmul.f32 %v2251, %v2267
    %v2269 = vperm.slane %v2246, 0
    %v2270 = vmul.f32 %v2268, %v2269
    %v2271 = vperm.slane %v2246, 1
    %v2272 = vadd.f32 %v2270, %v2271
    %v2274 = vrot.slane %v2272, 4
    %v2276 = vsel %vm122, %v2272, %v2274
    %v2277 = vld [vmem:[%s9] sm:$0xff]
    %v2278 = vld [vmem:[%s9 + $0x8] sm:$0xff]
    %v2279 = vld [vmem:[%s9 + $0x10] sm:$0xff]
    %v2280 = vld [vmem:[%s9 + $0x18] sm:$0xff]
    %v2281 = vld [vmem:[%s9 + $0x20] sm:$0xff]
    %v2282 = vld [vmem:[%s9 + $0x28] sm:$0xff]
    %v2283 = vld [vmem:[%s9 + $0x30] sm:$0xff]
    %v2284 = vld [vmem:[%s9 + $0x38] sm:$0xff]
    %v2285 = vperm.slane %v2246, 2
    %v2287 = vsel %vm62, %v2276, 0
    %2289 = vmatpush.msra.mxu0 0.0
    %2290 = vmatpush.msra.mxu0 0.0
    %2291 = vmatpush.msra.mxu0 0.0
    %2292 = vmatpush.msra.mxu0 0.0
    %2293 = vmatpush.msra.mxu0 0.0
    %2294 = vmatpush.msra.mxu0 0.0
    %2295 = vmatpush.msra.mxu0 0.0
    %2296 = vmatpush.msra.mxu0 0.0
    %2297 = vmatpush.msra.mxu0 %v2284
    %2298 = vmatpush.msra.mxu0 %v2283
    %2299 = vmatpush.msra.mxu0 %v2282
    %2300 = vmatpush.msra.mxu0 %v2281
    %2301 = vmatpush.msra.mxu0 %v2280
    %2302 = vmatpush.msra.mxu0 %v2279
    %2303 = vmatpush.msra.mxu0 %v2278
    %2304 = vmatpush.msra.mxu0 %v2277
    %2305 = vmatmul.f32.gmra.mxu0 %v2287
    %v2306 = vpop.f32.mrf.mxu0
    %v2307 = vadd.f32 %v2285, %v2306
    %2308 = vdwg.mxu0
    %2309 = vst [vmem:[#allocation2] sm:$0x3] %v2307
    // Predicated region
    $region42: #{vit_forward.1} parent=1 // pred_check
      _
    $region43: #{vit_forward.1} parent=1 // pred_check_branch
      %2311 = sbr.rel (0) target = $region45
    $region44: #{vit_forward.1} parent=1 // pred_region
      %2313 = vsyncadd [#allocation3], 0
      %s2315 = sshll.u32 [#allocation2], 4
      %s2316 = int_to_ptr.vmem [resolvable:$true] %s2315
      %s2317 = sshll.u32 %s10, 4
      %s2318 = int_to_ptr.hbm [resolvable:$true] %s2317
      %2320 = dma.vmem_to_hbm [thread:$0]  %s2316, 32, %s2318, [#allocation3]
    $region45: #{vit_forward.1} parent=1 // pred_fallthru
      _
    // Predicated region
    $region46: #{vit_forward.1} parent=1 // pred_check
      _
    $region47: #{vit_forward.1} parent=1 // pred_check_branch
      %2322 = sbr.rel (0) target = $region49
    $region48: #{vit_forward.1} parent=1 // pred_region
      %2324 = dma.done [#allocation3], 32
    $region49: #{vit_forward.1} parent=1 // pred_fallthru
      _
    %2325 = vsyncpa [#allocation3], 1

</llo_original>
